<compile_context>
chip_gen: v6e
topology: v6e:2x2x1
jax: 0.10.0
libtpu: 0.0.40
codegen_flags: <defaults>
</compile_context>

<pallas_src>
import functools

import jax
import jax.numpy as jnp
from jax.experimental import pallas as pl
from jax.experimental.pallas import tpu as pltpu

LANE = 128
_FALLBACK_VMEM = 64 * 2**20  # v7x per-TC capacity (smallest across v5e/v6e/v7x)


def _round_up(x, m):
    return (x + m - 1) // m * m


def _pad2(a, rows, cols):
    out = jnp.zeros((rows, cols), a.dtype)
    return out.at[: a.shape[0], : a.shape[1]].set(a)


def _vmem_capacity_bytes():
    try:
        return int(pltpu.get_tpu_info().vmem_capacity_bytes)
    except Exception:
        return _FALLBACK_VMEM


# ---------------------------------------------------------------------------
# Fused full-forward kernel (small graphs: padded L_hat fits comfortably in
# VMEM).  Single grid step; everything resident.
# ---------------------------------------------------------------------------
def _chebnet_fused_kernel(lhat_ref, x_ref, w10_ref, w11_ref, b1_ref,
                          w20_ref, w21_ref, b2_ref, cmask_ref, out_ref):
    bf = jnp.bfloat16
    x = x_ref[...]
    lhat = lhat_ref[...]

    # ---- layer 1: ChebConv(F -> H) + ReLU ----
    tproj1 = jnp.dot(x, w11_ref[...], preferred_element_type=jnp.float32).astype(bf)
    t0 = jnp.dot(x, w10_ref[...], preferred_element_type=jnp.float32)
    t1 = jnp.dot(lhat, tproj1, preferred_element_type=jnp.float32)
    h = jnp.maximum(t0 + t1 + b1_ref[...], 0.0).astype(bf)
    # TODO(synk): training-mode dropout (pltpu.prng_* Bernoulli mask) omitted;
    # F.dropout with training=False is the identity, matching eval semantics.

    # ---- layer 2: ChebConv(H -> C) + masked log_softmax ----
    tproj2 = jnp.dot(h, w21_ref[...], preferred_element_type=jnp.float32).astype(bf)
    y = (jnp.dot(h, w20_ref[...], preferred_element_type=jnp.float32)
         + jnp.dot(lhat, tproj2, preferred_element_type=jnp.float32)
         + b2_ref[...] + cmask_ref[...])
    m = jnp.max(y, axis=1, keepdims=True)
    z = y - m
    lse = jnp.log(jnp.sum(jnp.exp(z), axis=1, keepdims=True))
    out_ref[...] = (z - lse).astype(out_ref.dtype)


def _chebnet_fused(lhat_p, x_p, w10p, w11p, b1p, w20p, w21p, b2p, cmaskp,
                   vmem_limit):
    n_pad = lhat_p.shape[0]
    f_pad = x_p.shape[1]
    h_pad = w10p.shape[1]
    c_pad = w20p.shape[1]

    flops = (4 * n_pad * f_pad * h_pad + 2 * n_pad * n_pad * h_pad
             + 4 * n_pad * h_pad * c_pad + 2 * n_pad * n_pad * c_pad)
    transcendentals = n_pad * (c_pad + 1)
    bytes_accessed = (lhat_p.size * 2 + x_p.size * 2 + w10p.size * 2
                      + w11p.size * 2 + b1p.size * 4 + w20p.size * 2
                      + w21p.size * 2 + b2p.size * 4 + cmaskp.size * 4
                      + n_pad * c_pad * 4)

    return pl.pallas_call(
        _chebnet_fused_kernel,
        out_shape=jax.ShapeDtypeStruct((n_pad, c_pad), jnp.float32),
        grid_spec=pltpu.PrefetchScalarGridSpec(
            num_scalar_prefetch=0,
            grid=(1,),
            in_specs=[
                pl.BlockSpec((n_pad, n_pad), lambda i: (0, 0)),   # L_hat (resident)
                pl.BlockSpec((n_pad, f_pad), lambda i: (0, 0)),   # X
                pl.BlockSpec((f_pad, h_pad), lambda i: (0, 0)),   # W1_0
                pl.BlockSpec((f_pad, h_pad), lambda i: (0, 0)),   # W1_1
                pl.BlockSpec((1, h_pad), lambda i: (0, 0)),       # b1 (f32)
                pl.BlockSpec((h_pad, c_pad), lambda i: (0, 0)),   # W2_0
                pl.BlockSpec((h_pad, c_pad), lambda i: (0, 0)),   # W2_1
                pl.BlockSpec((1, c_pad), lambda i: (0, 0)),       # b2 (f32)
                pl.BlockSpec((1, c_pad), lambda i: (0, 0)),       # class-col mask (f32)
            ],
            out_specs=pl.BlockSpec((n_pad, c_pad), lambda i: (0, 0)),
        ),
        compiler_params=pltpu.CompilerParams(
            dimension_semantics=("arbitrary",),
            vmem_limit_bytes=int(vmem_limit),
        ),
        cost_estimate=pl.CostEstimate(flops=int(flops),
                                      transcendentals=int(transcendentals),
                                      bytes_accessed=int(bytes_accessed)),
    )(lhat_p, x_p, w10p, w11p, b1p, w20p, w21p, b2p, cmaskp)


# ---------------------------------------------------------------------------
# Scalable path: one ChebConv(K=2) layer, row-tiled over nodes and K-tiled
# over the contraction (neighbor) dimension.  VMEM use is independent of N.
# ---------------------------------------------------------------------------
def _cheb_layer_tiled_kernel(lhat_ref, xin_ref, tproj_ref, w0_ref, b_ref,
                             cmask_ref, out_ref, acc_ref, *, activation):
    k = pl.program_id(1)

    @pl.when(k == 0)
    def _():
        # T0 term: X_tile @ W0 seeds the accumulator.
        acc_ref[...] = jnp.dot(xin_ref[...], w0_ref[...],
                               preferred_element_type=jnp.float32)

    # T1 term: accumulate one K-chunk of L_hat_tile @ (X @ W1).
    acc_ref[...] += jnp.dot(lhat_ref[...], tproj_ref[...],
                            preferred_element_type=jnp.float32)

    @pl.when(k == pl.num_programs(1) - 1)
    def _():
        y = acc_ref[...] + b_ref[...] + cmask_ref[...]
        if activation == "relu":
            out_ref[...] = jnp.maximum(y, 0.0).astype(out_ref.dtype)
        else:  # masked log_softmax (mask already applied additively via cmask)
            m = jnp.max(y, axis=1, keepdims=True)
            z = y - m
            lse = jnp.log(jnp.sum(jnp.exp(z), axis=1, keepdims=True))
            out_ref[...] = (z - lse).astype(out_ref.dtype)


def _cheb_layer_tiled(lhat_p, x_in, tproj, w0, b, cmask, *, activation,
                      out_dtype, tm, tk, vmem_limit):
    n_pad = lhat_p.shape[0]
    f_in = x_in.shape[1]
    h_out = w0.shape[1]
    grid = (n_pad // tm, n_pad // tk)
    out_bytes = jnp.dtype(out_dtype).itemsize

    flops = 2 * n_pad * f_in * h_out + 2 * n_pad * n_pad * h_out
    transc = n_pad * h_out if activation == "log_softmax" else 0
    bytes_accessed = (lhat_p.size * 2 + x_in.size * 2 + tproj.size * 2
                      + w0.size * 2 + b.size * 4 + cmask.size * 4
                      + n_pad * h_out * out_bytes)

    kernel = functools.partial(_cheb_layer_tiled_kernel, activation=activation)

    return pl.pallas_call(
        kernel,
        out_shape=jax.ShapeDtypeStruct((n_pad, h_out), out_dtype),
        grid_spec=pltpu.PrefetchScalarGridSpec(
            num_scalar_prefetch=0,
            grid=grid,
            in_specs=[
                pl.BlockSpec((tm, tk), lambda i, k: (i, k)),       # L_hat block (streamed)
                pl.BlockSpec((tm, f_in), lambda i, k: (i, 0)),     # input row tile
                pl.BlockSpec((tk, h_out), lambda i, k: (k, 0)),    # X @ W1 K-chunk (streamed)
                pl.BlockSpec((f_in, h_out), lambda i, k: (0, 0)),  # W0 (resident)
                pl.BlockSpec((1, h_out), lambda i, k: (0, 0)),     # bias (f32, resident)
                pl.BlockSpec((1, h_out), lambda i, k: (0, 0)),     # additive col mask (f32)
            ],
            out_specs=pl.BlockSpec((tm, h_out), lambda i, k: (i, 0)),
            scratch_shapes=[pltpu.VMEM((tm, h_out), jnp.float32)],
        ),
        compiler_params=pltpu.CompilerParams(
            dimension_semantics=("parallel", "arbitrary"),
            vmem_limit_bytes=int(vmem_limit),
        ),
        cost_estimate=pl.CostEstimate(flops=int(flops),
                                      transcendentals=int(transc),
                                      bytes_accessed=int(bytes_accessed)),
    )(lhat_p, x_in, tproj, w0, b, cmask)


# ---------------------------------------------------------------------------
# Full forward
# ---------------------------------------------------------------------------
def chebnet_forward(lhat, x, w1_0, w1_1, b1, w2_0, w2_1, b2, *,
                    force_tiled=False, tm=None, tk=None):
    """ChebNet forward: ChebConv -> ReLU -> dropout(eval) -> ChebConv -> log_softmax."""
    n, f = x.shape
    hidden = w1_0.shape[1]
    num_classes = w2_0.shape[1]
    bf = jnp.bfloat16

    f_pad = _round_up(f, LANE)
    h_pad = _round_up(hidden, LANE)
    c_pad = _round_up(num_classes, LANE)
    cap = _vmem_capacity_bytes()

    # Lane-dense padded weights / bias / masks (shared by both paths).
    w10p = _pad2(w1_0, f_pad, h_pad).astype(bf)
    w11p = _pad2(w1_1, f_pad, h_pad).astype(bf)
    b1p = _pad2(b1.reshape(1, -1).astype(jnp.float32), 1, h_pad)
    w20p = _pad2(w2_0, h_pad, c_pad).astype(bf)
    w21p = _pad2(w2_1, h_pad, c_pad).astype(bf)
    b2p = _pad2(b2.reshape(1, -1).astype(jnp.float32), 1, c_pad)
    # Additive class-column mask (0 valid / -1e30 padded), hoisted out of kernel.
    col = jnp.arange(c_pad)
    cmask_c = jnp.where(col < num_classes, 0.0, -1e30).astype(jnp.float32).reshape(1, c_pad)
    cmask_h0 = jnp.zeros((1, h_pad), jnp.float32)  # layer-1 (relu) has no mask

    n_pad128 = _round_up(n, LANE)

    # --- fused-path eligibility: padded L_hat + working set fits ~40% of VMEM ---
    fused_need = (n_pad128 * n_pad128 * 2                                  # L_hat bf16
                  + n_pad128 * (f_pad * 2 + c_pad * 4)                     # X in, out
                  + n_pad128 * (2 * h_pad * 4 + 2 * h_pad * 2
                                + 2 * c_pad * 4 + c_pad * 2)               # intermediates
                  + (2 * f_pad * h_pad + 2 * h_pad * c_pad) * 2
                  + (h_pad + 2 * c_pad) * 4)
    use_fused = (not force_tiled) and fused_need <= int(0.4 * cap)

    if use_fused:
        n_pad = n_pad128
        lhat_p = jnp.zeros((n_pad, n_pad), bf).at[:n, :n].set(lhat.astype(bf))
        x_p = jnp.zeros((n_pad, f_pad), bf).at[:n, :f].set(x.astype(bf))
        vmem_limit = min(int(0.85 * cap), max(2 * fused_need, 32 * 2**20))
        logp = _chebnet_fused(lhat_p, x_p, w10p, w11p, b1p, w20p, w21p, b2p,
                              cmask_c, vmem_limit)
        return logp[:n, :num_classes]

    # --- scalable tiled path: VMEM-budget-aware tm, K-tiled contraction ---
    budget = int(0.6 * cap)
    hc = max(h_pad, c_pad)
    if tm is None:
        tk_probe = 512
        tm = 128
        for cand in (2048, 1024, 512, 256, 128):
            if cand > max(LANE, n_pad128):
                continue
            streamed = 2 * (cand * tk_probe * 2 + cand * f_pad * 2
                            + tk_probe * hc * 2 + cand * hc * 4)
            resident = f_pad * hc * 2 + hc * 4 * 2 + cand * hc * 4
            if streamed + resident <= budget:
                tm = cand
                break
    n_pad = _round_up(n, tm)
    if tk is None:
        tk = LANE
        for cand in (512, 384, 256, 128):
            if n_pad % cand == 0:
                tk = cand
                break
    assert n_pad % tm == 0 and n_pad % tk == 0

    lhat_p = jnp.zeros((n_pad, n_pad), bf).at[:n, :n].set(lhat.astype(bf))
    x_p = jnp.zeros((n_pad, f_pad), bf).at[:n, :f].set(x.astype(bf))

    def _limit(f_in, h_out, out_bytes):
        streamed = 2 * (tm * tk * 2 + tm * f_in * 2 + tk * h_out * 2
                        + tm * h_out * out_bytes)
        resident = f_in * h_out * 2 + h_out * 4 * 2 + tm * h_out * 4
        need = streamed + resident
        return min(int(0.8 * cap), max(2 * need, 32 * 2**20))

    # --- layer 1: ChebConv(F -> H) + ReLU ---
    # Tiny [N,F]@[F,H] T1 pre-projection done once; the kernel streams it in
    # (tk, H) chunks so nothing VMEM-resident scales with N.
    tproj1 = jnp.dot(x_p, w11p, preferred_element_type=jnp.float32).astype(bf)
    h = _cheb_layer_tiled(lhat_p, x_p, tproj1, w10p, b1p, cmask_h0,
                          activation="relu", out_dtype=bf, tm=tm, tk=tk,
                          vmem_limit=_limit(f_pad, h_pad, 2))

    # TODO(synk): training-mode dropout omitted (eval semantics: identity).

    # --- layer 2: ChebConv(H -> C) + log_softmax ---
    tproj2 = jnp.dot(h, w21p, preferred_element_type=jnp.float32).astype(bf)
    logp = _cheb_layer_tiled(lhat_p, h, tproj2, w20p, b2p, cmask_c,
                             activation="log_softmax", out_dtype=jnp.float32,
                             tm=tm, tk=tk, vmem_limit=_limit(h_pad, c_pad, 4))

    return logp[:n, :num_classes]


def build_cheb_laplacian(edge_index, num_nodes):
    """Dense scaled Chebyshev Laplacian, matching PyG ChebConv defaults
    (normalization='sym', lambda_max=2.0):  L_hat = -D^-1/2 A D^-1/2.
    Self-loops removed, duplicate edges summed.  NOTE: assumes an undirected,
    uniformly-weighted edge list (Planetoid-style); both directions are
    scattered, which the sym-normalization cancels exactly for uniform weights."""
    src, dst = edge_index[0], edge_index[1]
    w = (src != dst).astype(jnp.float32)                 # remove self-loops
    a = jnp.zeros((num_nodes, num_nodes), jnp.float32)
    a = a.at[dst, src].add(w)
    a = a.at[src, dst].add(w)
    deg = jnp.sum(a, axis=1)
    dinv = jnp.where(deg > 0, jax.lax.rsqrt(deg), 0.0)
    return -(dinv[:, None] * a * dinv[None, :])


if __name__ == "__main__":
    key = jax.random.PRNGKey(0)
    k_x, k_e, k10, k11, k20, k21, kb1, kb2 = jax.random.split(key, 8)

    # Small synthetic "Cora-like" graph.
    num_nodes = 500
    num_node_features = 128
    hidden_dim = 16
    num_classes = 7
    num_edges = 2000

    x = jax.random.normal(k_x, (num_nodes, num_node_features), jnp.float32)
    edge_index = jax.random.randint(k_e, (2, num_edges), 0, num_nodes, dtype=jnp.int32)
    lhat = build_cheb_laplacian(edge_index, num_nodes)

    def glorot(k, shape):
        s = jnp.sqrt(6.0 / (shape[0] + shape[1]))
        return jax.random.uniform(k, shape, jnp.float32, -s, s)

    w1_0 = glorot(k10, (num_node_features, hidden_dim))
    w1_1 = glorot(k11, (num_node_features, hidden_dim))
    b1 = 0.05 * jax.random.normal(kb1, (hidden_dim,), jnp.float32)
    w2_0 = glorot(k20, (hidden_dim, num_classes))
    w2_1 = glorot(k21, (hidden_dim, num_classes))
    b2 = 0.05 * jax.random.normal(kb2, (num_classes,), jnp.float32)

    # Fused single-kernel path (chosen automatically at this size: L_hat fits VMEM).
    out = chebnet_forward(lhat, x, w1_0, w1_1, b1, w2_0, w2_1, b2)
    jax.block_until_ready(out)

    # Also exercise the scalable row/K-tiled path (what large graphs would use),
    # forcing a multi-step (4 x 4) grid to cover the accumulator logic.
    out_tiled = chebnet_forward(lhat, x, w1_0, w1_1, b1, w2_0, w2_1, b2,
                                force_tiled=True, tm=128, tk=128)
    jax.block_until_ready(out_tiled)
    assert jnp.allclose(out, out_tiled, atol=5e-3, rtol=5e-3), \
        "fused vs tiled path mismatch"

    # Reference 1: pure-JAX ChebConv(K=2) with the SAME bf16 matmul inputs and
    # f32 accumulation -> tight tolerance.
    bf = jnp.bfloat16
    def bdot(a, b):
        return jnp.dot(a.astype(bf), b.astype(bf), preferred_element_type=jnp.float32)
    t1 = bdot(lhat, bdot(x, w1_1).astype(bf))
    h_ref = jnp.maximum(bdot(x, w1_0) + t1 + b1[None, :], 0.0).astype(bf)
    t2 = bdot(lhat, bdot(h_ref, w2_1).astype(bf))
    logits_ref = bdot(h_ref, w2_0) + t2 + b2[None, :]
    ref_bf16 = jax.nn.log_softmax(logits_ref, axis=1)
    assert jnp.allclose(out, ref_bf16, atol=5e-3, rtol=5e-3), \
        "mismatch vs bf16-matched JAX reference"

    # Reference 2: full-f32 semantics check (loose tolerance for bf16 inputs).
    h32 = jnp.maximum(x @ w1_0 + (lhat @ x) @ w1_1 + b1[None, :], 0.0)
    ref_f32 = jax.nn.log_softmax(h32 @ w2_0 + (lhat @ h32) @ w2_1 + b2[None, :], axis=1)
    assert jnp.allclose(out, ref_f32, atol=0.15, rtol=0.1), \
        "mismatch vs f32 JAX reference"

    print("KERNEL_OK")
</pallas_src>

<mosaic_0001>
module attributes {stable_mosaic.version = 11 : i64} {
  func.func @_chebnet_fused_kernel(%arg0: i32, %arg1: memref<512x512xbf16, #tpu.memory_space<vmem>>, %arg2: memref<512x128xbf16, #tpu.memory_space<vmem>>, %arg3: memref<128x128xbf16, #tpu.memory_space<vmem>>, %arg4: memref<128x128xbf16, #tpu.memory_space<vmem>>, %arg5: memref<1x128xf32, #tpu.memory_space<vmem>>, %arg6: memref<128x128xbf16, #tpu.memory_space<vmem>>, %arg7: memref<128x128xbf16, #tpu.memory_space<vmem>>, %arg8: memref<1x128xf32, #tpu.memory_space<vmem>>, %arg9: memref<1x128xf32, #tpu.memory_space<vmem>>, %arg10: memref<512x128xf32, #tpu.memory_space<vmem>>) attributes {dimension_semantics = [#tpu.dimension_semantics<arbitrary>], iteration_bounds = array<i64: 1>, scalar_prefetch = 0 : i64, scratch_operands = 0 : i64, tpu.core_type = #tpu.core_type<tc>, window_params = [{pipeline_mode = #tpu.pipeline_mode<synchronous>, transform_indices = @transform_0, window_bounds = array<i64: 512, 512>}, {pipeline_mode = #tpu.pipeline_mode<synchronous>, transform_indices = @transform_1, window_bounds = array<i64: 512, 128>}, {pipeline_mode = #tpu.pipeline_mode<synchronous>, transform_indices = @transform_2, window_bounds = array<i64: 128, 128>}, {pipeline_mode = #tpu.pipeline_mode<synchronous>, transform_indices = @transform_3, window_bounds = array<i64: 128, 128>}, {pipeline_mode = #tpu.pipeline_mode<synchronous>, transform_indices = @transform_4, window_bounds = array<i64: 1, 128>}, {pipeline_mode = #tpu.pipeline_mode<synchronous>, transform_indices = @transform_5, window_bounds = array<i64: 128, 128>}, {pipeline_mode = #tpu.pipeline_mode<synchronous>, transform_indices = @transform_6, window_bounds = array<i64: 128, 128>}, {pipeline_mode = #tpu.pipeline_mode<synchronous>, transform_indices = @transform_7, window_bounds = array<i64: 1, 128>}, {pipeline_mode = #tpu.pipeline_mode<synchronous>, transform_indices = @transform_8, window_bounds = array<i64: 1, 128>}, {pipeline_mode = #tpu.pipeline_mode<synchronous>, transform_indices = @transform_9, window_bounds = array<i64: 512, 128>}]} {
    %c0 = arith.constant 0 : index
    %c0_0 = arith.constant 0 : index
    %0 = vector.load %arg2[%c0, %c0_0] : memref<512x128xbf16, #tpu.memory_space<vmem>>, vector<512x128xbf16>
    %c0_1 = arith.constant 0 : index
    %c0_2 = arith.constant 0 : index
    %1 = vector.load %arg1[%c0_1, %c0_2] : memref<512x512xbf16, #tpu.memory_space<vmem>>, vector<512x512xbf16>
    %c0_3 = arith.constant 0 : index
    %c0_4 = arith.constant 0 : index
    %2 = vector.load %arg4[%c0_3, %c0_4] : memref<128x128xbf16, #tpu.memory_space<vmem>>, vector<128x128xbf16>
    %cst = arith.constant dense<0.000000e+00> : vector<512x128xf32>
    %3 = tpu.matmul %0, %2, %cst {dimension_numbers = #tpu.dot_dimension_numbers<[1], [0], [0], [1], [0, 0, 1, 1], [], []>} : vector<512x128xbf16>, vector<128x128xbf16>, vector<512x128xf32> -> vector<512x128xf32>
    %4 = arith.truncf %3 : vector<512x128xf32> to vector<512x128xbf16>
    %c0_5 = arith.constant 0 : index
    %c0_6 = arith.constant 0 : index
    %5 = vector.load %arg3[%c0_5, %c0_6] : memref<128x128xbf16, #tpu.memory_space<vmem>>, vector<128x128xbf16>
    %cst_7 = arith.constant dense<0.000000e+00> : vector<512x128xf32>
    %6 = tpu.matmul %0, %5, %cst_7 {dimension_numbers = #tpu.dot_dimension_numbers<[1], [0], [0], [1], [0, 0, 1, 1], [], []>} : vector<512x128xbf16>, vector<128x128xbf16>, vector<512x128xf32> -> vector<512x128xf32>
    %cst_8 = arith.constant dense<0.000000e+00> : vector<512x128xf32>
    %7 = tpu.matmul %1, %4, %cst_8 {dimension_numbers = #tpu.dot_dimension_numbers<[1], [0], [0], [1], [0, 0, 1, 1], [], []>} : vector<512x512xbf16>, vector<512x128xbf16>, vector<512x128xf32> -> vector<512x128xf32>
    %8 = arith.addf %6, %7 : vector<512x128xf32>
    %c0_9 = arith.constant 0 : index
    %c0_10 = arith.constant 0 : index
    %9 = vector.load %arg5[%c0_9, %c0_10] : memref<1x128xf32, #tpu.memory_space<vmem>>, vector<1x128xf32>
    %10 = vector.broadcast %9 : vector<1x128xf32> to vector<512x128xf32>
    %11 = arith.addf %8, %10 : vector<512x128xf32>
    %cst_11 = arith.constant 0.000000e+00 : f32
    %12 = vector.broadcast %cst_11 : f32 to vector<512x128xf32>
    %13 = arith.maximumf %11, %12 : vector<512x128xf32>
    %14 = arith.truncf %13 : vector<512x128xf32> to vector<512x128xbf16>
    %c0_12 = arith.constant 0 : index
    %c0_13 = arith.constant 0 : index
    %15 = vector.load %arg7[%c0_12, %c0_13] : memref<128x128xbf16, #tpu.memory_space<vmem>>, vector<128x128xbf16>
    %cst_14 = arith.constant dense<0.000000e+00> : vector<512x128xf32>
    %16 = tpu.matmul %14, %15, %cst_14 {dimension_numbers = #tpu.dot_dimension_numbers<[1], [0], [0], [1], [0, 0, 1, 1], [], []>} : vector<512x128xbf16>, vector<128x128xbf16>, vector<512x128xf32> -> vector<512x128xf32>
    %17 = arith.truncf %16 : vector<512x128xf32> to vector<512x128xbf16>
    %c0_15 = arith.constant 0 : index
    %c0_16 = arith.constant 0 : index
    %18 = vector.load %arg6[%c0_15, %c0_16] : memref<128x128xbf16, #tpu.memory_space<vmem>>, vector<128x128xbf16>
    %cst_17 = arith.constant dense<0.000000e+00> : vector<512x128xf32>
    %19 = tpu.matmul %14, %18, %cst_17 {dimension_numbers = #tpu.dot_dimension_numbers<[1], [0], [0], [1], [0, 0, 1, 1], [], []>} : vector<512x128xbf16>, vector<128x128xbf16>, vector<512x128xf32> -> vector<512x128xf32>
    %cst_18 = arith.constant dense<0.000000e+00> : vector<512x128xf32>
    %20 = tpu.matmul %1, %17, %cst_18 {dimension_numbers = #tpu.dot_dimension_numbers<[1], [0], [0], [1], [0, 0, 1, 1], [], []>} : vector<512x512xbf16>, vector<512x128xbf16>, vector<512x128xf32> -> vector<512x128xf32>
    %21 = arith.addf %19, %20 : vector<512x128xf32>
    %c0_19 = arith.constant 0 : index
    %c0_20 = arith.constant 0 : index
    %22 = vector.load %arg8[%c0_19, %c0_20] : memref<1x128xf32, #tpu.memory_space<vmem>>, vector<1x128xf32>
    %23 = vector.broadcast %22 : vector<1x128xf32> to vector<512x128xf32>
    %24 = arith.addf %21, %23 : vector<512x128xf32>
    %c0_21 = arith.constant 0 : index
    %c0_22 = arith.constant 0 : index
    %25 = vector.load %arg9[%c0_21, %c0_22] : memref<1x128xf32, #tpu.memory_space<vmem>>, vector<1x128xf32>
    %26 = vector.broadcast %25 : vector<1x128xf32> to vector<512x128xf32>
    %27 = arith.addf %24, %26 : vector<512x128xf32>
    %cst_23 = arith.constant dense<0xFF800000> : vector<512xf32>
    %28 = vector.multi_reduction <maximumf>, %27, %cst_23 [1] : vector<512x128xf32> to vector<512xf32>
    %29 = vector.shape_cast %28 : vector<512xf32> to vector<512x1xf32>
    %30 = vector.broadcast %29 : vector<512x1xf32> to vector<512x128xf32>
    %31 = arith.subf %27, %30 : vector<512x128xf32>
    %32 = math.exp %31 : vector<512x128xf32>
    %cst_24 = arith.constant dense<0.000000e+00> : vector<512xf32>
    %33 = vector.multi_reduction <add>, %32, %cst_24 [1] : vector<512x128xf32> to vector<512xf32>
    %34 = vector.shape_cast %33 : vector<512xf32> to vector<512x1xf32>
    %35 = math.log %34 : vector<512x1xf32>
    %36 = vector.broadcast %35 : vector<512x1xf32> to vector<512x128xf32>
    %37 = arith.subf %31, %36 : vector<512x128xf32>
    %c0_25 = arith.constant 0 : index
    %c0_26 = arith.constant 0 : index
    %38 = vector.load %arg10[%c0_25, %c0_26] : memref<512x128xf32, #tpu.memory_space<vmem>>, vector<512x128xf32>
    tpu.vector_store %arg10[%c0_25, %c0_26], %37 {strides = array<i32>} : memref<512x128xf32, #tpu.memory_space<vmem>>, vector<512x128xf32>,
    return
  }
  func.func @transform_0(%arg0: i32) -> (i32, i32) {
    %c0_i32 = arith.constant 0 : i32
    %c0_i32_0 = arith.constant 0 : i32
    %c0_i32_1 = arith.constant 0 : i32
    return %c0_i32, %c0_i32_0 : i32, i32
  }
  func.func @transform_1(%arg0: i32) -> (i32, i32) {
    %c0_i32 = arith.constant 0 : i32
    %c0_i32_0 = arith.constant 0 : i32
    %c0_i32_1 = arith.constant 0 : i32
    return %c0_i32, %c0_i32_0 : i32, i32
  }
  func.func @transform_2(%arg0: i32) -> (i32, i32) {
    %c0_i32 = arith.constant 0 : i32
    %c0_i32_0 = arith.constant 0 : i32
    %c0_i32_1 = arith.constant 0 : i32
    return %c0_i32, %c0_i32_0 : i32, i32
  }
  func.func @transform_3(%arg0: i32) -> (i32, i32) {
    %c0_i32 = arith.constant 0 : i32
    %c0_i32_0 = arith.constant 0 : i32
    %c0_i32_1 = arith.constant 0 : i32
    return %c0_i32, %c0_i32_0 : i32, i32
  }
  func.func @transform_4(%arg0: i32) -> (i32, i32) {
    %c0_i32 = arith.constant 0 : i32
    %c0_i32_0 = arith.constant 0 : i32
    %c0_i32_1 = arith.constant 0 : i32
    return %c0_i32, %c0_i32_0 : i32, i32
  }
  func.func @transform_5(%arg0: i32) -> (i32, i32) {
    %c0_i32 = arith.constant 0 : i32
    %c0_i32_0 = arith.constant 0 : i32
    %c0_i32_1 = arith.constant 0 : i32
    return %c0_i32, %c0_i32_0 : i32, i32
  }
  func.func @transform_6(%arg0: i32) -> (i32, i32) {
    %c0_i32 = arith.constant 0 : i32
    %c0_i32_0 = arith.constant 0 : i32
    %c0_i32_1 = arith.constant 0 : i32
    return %c0_i32, %c0_i32_0 : i32, i32
  }
  func.func @transform_7(%arg0: i32) -> (i32, i32) {
    %c0_i32 = arith.constant 0 : i32
    %c0_i32_0 = arith.constant 0 : i32
    %c0_i32_1 = arith.constant 0 : i32
    return %c0_i32, %c0_i32_0 : i32, i32
  }
  func.func @transform_8(%arg0: i32) -> (i32, i32) {
    %c0_i32 = arith.constant 0 : i32
    %c0_i32_0 = arith.constant 0 : i32
    %c0_i32_1 = arith.constant 0 : i32
    return %c0_i32, %c0_i32_0 : i32, i32
  }
  func.func @transform_9(%arg0: i32) -> (i32, i32) {
    %c0_i32 = arith.constant 0 : i32
    %c0_i32_0 = arith.constant 0 : i32
    %c0_i32_1 = arith.constant 0 : i32
    return %c0_i32, %c0_i32_0 : i32, i32
  }
}

</mosaic_0001>

<llo_original>
// kernel: tpu_custom_call.1
$region0: #{tpu_custom_call.1}
  #allocation0 [shape = 'u32[]', space=smem, size = 0x4, offset = 0x4, fixed_abs, tag = 'smem constant byte address 0x4 - core index']
  #allocation1 [shape = 'u32[144,128]{1,0:T(1,128)}', space=vmem, size = 0x12000, scoped, tag = 'internal scratch']
  %s0 = inlined_call_operand.hbm [shape: bf16[512,512], index: 0, kind: input, shape index: {}]
  %s1 = inlined_call_operand.hbm [shape: bf16[512,128], index: 1, kind: input, shape index: {}]
  %s2 = inlined_call_operand.hbm [shape: bf16[128,128], index: 2, kind: input, shape index: {}]
  %s3 = inlined_call_operand.hbm [shape: bf16[128,128], index: 3, kind: input, shape index: {}]
  %s4 = inlined_call_operand.vmem [shape: f32[1,128], index: 4, kind: input, shape index: {}]
  %s5 = inlined_call_operand.hbm [shape: bf16[128,128], index: 5, kind: input, shape index: {}]
  %s6 = inlined_call_operand.hbm [shape: bf16[128,128], index: 6, kind: input, shape index: {}]
  %s7 = inlined_call_operand.vmem [shape: f32[1,128], index: 7, kind: input, shape index: {}]
  %s8 = inlined_call_operand.vmem [shape: f32[1,128], index: 8, kind: input, shape index: {}]
  %s9 = inlined_call_operand.hbm [shape: f32[512,128], index: 9, kind: output, shape index: {}]
  %s10 = sld [smem:[#allocation0]]
  $region70: #{tpu_custom_call.1} parent=0
    _
  %s12 = ssub.s32 1, %s10
  %s13 = scalar_select 0, %s12, %s10
  $region1: #{tpu_custom_call.1} parent=0
    #allocation2 [shape = 'u8[524288]{0}', space=vmem, size = 0x80000, scoped, tag = 'input window, operand 0, single buffered']
    #allocation3 [shape = 's32[1]{0}', space=sflag, size = 0x4, scoped, tag = 'scoped memory for tpu_custom_call.1']
    #allocation4 [shape = 's32[1]{0}', space=sflag, size = 0x4, scoped, tag = 'scoped memory for tpu_custom_call.1']
    #allocation5 [shape = 'u8[131072]{0}', space=vmem, size = 0x20000, scoped, tag = 'input window, operand 1, single buffered']
    #allocation6 [shape = 's32[1]{0}', space=sflag, size = 0x4, scoped, tag = 'scoped memory for tpu_custom_call.1']
    #allocation7 [shape = 'u8[32768]{0}', space=vmem, size = 0x8000, scoped, tag = 'input window, operand 2, single buffered']
    #allocation8 [shape = 'u8[32768]{0}', space=vmem, size = 0x8000, scoped, tag = 'input window, operand 3, single buffered']
    #allocation9 [shape = 's32[1]{0}', space=sflag, size = 0x4, scoped, tag = 'scoped memory for tpu_custom_call.1']
    #allocation10 [shape = 'u8[32768]{0}', space=vmem, size = 0x8000, scoped, tag = 'input window, operand 5, single buffered']
    #allocation11 [shape = 'u8[32768]{0}', space=vmem, size = 0x8000, scoped, tag = 'input window, operand 6, single buffered']
    #allocation12 [shape = 's32[1]{0}', space=sflag, size = 0x4, scoped, tag = 'scoped memory for tpu_custom_call.1']
    #allocation13 [shape = 'u8[262144]{0}', space=vmem, size = 0x40000, scoped, tag = 'output window, operand 0, single buffered']
    %14 = vsyncpa [#allocation3], 0
    %15 = vsyncpa [#allocation6], 0
    %16 = vsyncpa [#allocation9], 0
    %17 = vsyncpa [#allocation12], 0
    %18 = vsyncpa [#allocation4], 0
    // Predicated region
    $region2: #{tpu_custom_call.1} parent=1 // pred_check
      _
    $region3: #{tpu_custom_call.1} parent=1 // pred_check_branch
      %20 = sbr.rel (0) target = $region5
    $region4: #{tpu_custom_call.1} parent=1 // pred_region
      %s22 = ssub.s32 16384, 16384
      %23 = vsyncadd [#allocation3], %s22
      %s24 = sshll.u32 [#allocation2], 4
      %s25 = int_to_ptr.vmem [resolvable:$true] %s24
      %30 = dma.hbm_to_vmem [thread:$0]  %s0, 16384, %s25, [#allocation3], 256, 256, 16
    $region5: #{tpu_custom_call.1} parent=1 // pred_fallthru
      _
    // Predicated region
    $region6: #{tpu_custom_call.1} parent=1 // pred_check
      _
    $region7: #{tpu_custom_call.1} parent=1 // pred_check_branch
      %32 = sbr.rel (0) target = $region9
    $region8: #{tpu_custom_call.1} parent=1 // pred_region
      %s34 = ssub.s32 4096, 4096
      %35 = vsyncadd [#allocation6], %s34
      %s36 = sshll.u32 [#allocation5], 4
      %s37 = int_to_ptr.vmem [resolvable:$true] %s36
      %42 = dma.hbm_to_vmem [thread:$0]  %s1, 4096, %s37, [#allocation6], 64, 64, 4
    $region9: #{tpu_custom_call.1} parent=1 // pred_fallthru
      _
    // Predicated region
    $region10: #{tpu_custom_call.1} parent=1 // pred_check
      _
    $region11: #{tpu_custom_call.1} parent=1 // pred_check_branch
      %44 = sbr.rel (0) target = $region13
    $region12: #{tpu_custom_call.1} parent=1 // pred_region
      %s46 = ssub.s32 1024, 1024
      %47 = vsyncadd [#allocation6], %s46
      %s48 = sshll.u32 [#allocation7], 4
      %s49 = int_to_ptr.vmem [resolvable:$true] %s48
      %54 = dma.hbm_to_vmem [thread:$0]  %s2, 1024, %s49, [#allocation6], 64, 64, 4
    $region13: #{tpu_custom_call.1} parent=1 // pred_fallthru
      _
    // Predicated region
    $region14: #{tpu_custom_call.1} parent=1 // pred_check
      _
    $region15: #{tpu_custom_call.1} parent=1 // pred_check_branch
      %56 = sbr.rel (0) target = $region17
    $region16: #{tpu_custom_call.1} parent=1 // pred_region
      %s58 = ssub.s32 1024, 1024
      %59 = vsyncadd [#allocation9], %s58
      %s60 = sshll.u32 [#allocation8], 4
      %s61 = int_to_ptr.vmem [resolvable:$true] %s60
      %66 = dma.hbm_to_vmem [thread:$0]  %s3, 1024, %s61, [#allocation9], 64, 64, 4
    $region17: #{tpu_custom_call.1} parent=1 // pred_fallthru
      _
    // Predicated region
    $region18: #{tpu_custom_call.1} parent=1 // pred_check
      _
    $region19: #{tpu_custom_call.1} parent=1 // pred_check_branch
      %68 = sbr.rel (0) target = $region21
    $region20: #{tpu_custom_call.1} parent=1 // pred_region
      _
    $region21: #{tpu_custom_call.1} parent=1 // pred_fallthru
      _
    // Predicated region
    $region22: #{tpu_custom_call.1} parent=1 // pred_check
      _
    $region23: #{tpu_custom_call.1} parent=1 // pred_check_branch
      %70 = sbr.rel (0) target = $region25
    $region24: #{tpu_custom_call.1} parent=1 // pred_region
      %s72 = ssub.s32 1024, 1024
      %73 = vsyncadd [#allocation9], %s72
      %s74 = sshll.u32 [#allocation10], 4
      %s75 = int_to_ptr.vmem [resolvable:$true] %s74
      %80 = dma.hbm_to_vmem [thread:$0]  %s5, 1024, %s75, [#allocation9], 64, 64, 4
    $region25: #{tpu_custom_call.1} parent=1 // pred_fallthru
      _
    // Predicated region
    $region26: #{tpu_custom_call.1} parent=1 // pred_check
      _
    $region27: #{tpu_custom_call.1} parent=1 // pred_check_branch
      %82 = sbr.rel (0) target = $region29
    $region28: #{tpu_custom_call.1} parent=1 // pred_region
      %s84 = ssub.s32 1024, 1024
      %85 = vsyncadd [#allocation12], %s84
      %s86 = sshll.u32 [#allocation11], 4
      %s87 = int_to_ptr.vmem [resolvable:$true] %s86
      %92 = dma.hbm_to_vmem [thread:$0]  %s6, 1024, %s87, [#allocation12], 64, 64, 4
    $region29: #{tpu_custom_call.1} parent=1 // pred_fallthru
      _
    // Predicated region
    $region30: #{tpu_custom_call.1} parent=1 // pred_check
      _
    $region31: #{tpu_custom_call.1} parent=1 // pred_check_branch
      %94 = sbr.rel (0) target = $region33
    $region32: #{tpu_custom_call.1} parent=1 // pred_region
      _
    $region33: #{tpu_custom_call.1} parent=1 // pred_fallthru
      _
    // Predicated region
    $region34: #{tpu_custom_call.1} parent=1 // pred_check
      _
    $region35: #{tpu_custom_call.1} parent=1 // pred_check_branch
      %96 = sbr.rel (0) target = $region37
    $region36: #{tpu_custom_call.1} parent=1 // pred_region
      _
    $region37: #{tpu_custom_call.1} parent=1 // pred_fallthru
      _
    // Predicated region
    $region38: #{tpu_custom_call.1} parent=1 // pred_check
      _
    $region39: #{tpu_custom_call.1} parent=1 // pred_check_branch
      %98 = sbr.rel (0) target = $region41
    $region40: #{tpu_custom_call.1} parent=1 // pred_region
      %99 = dma.done [#allocation3], 16384
    $region41: #{tpu_custom_call.1} parent=1 // pred_fallthru
      _
    // Predicated region
    $region42: #{tpu_custom_call.1} parent=1 // pred_check
      _
    $region43: #{tpu_custom_call.1} parent=1 // pred_check_branch
      %101 = sbr.rel (0) target = $region45
    $region44: #{tpu_custom_call.1} parent=1 // pred_region
      %102 = dma.done [#allocation6], 4096
    $region45: #{tpu_custom_call.1} parent=1 // pred_fallthru
      _
    // Predicated region
    $region46: #{tpu_custom_call.1} parent=1 // pred_check
      _
    $region47: #{tpu_custom_call.1} parent=1 // pred_check_branch
      %104 = sbr.rel (0) target = $region49
    $region48: #{tpu_custom_call.1} parent=1 // pred_region
      %105 = dma.done [#allocation6], 1024
    $region49: #{tpu_custom_call.1} parent=1 // pred_fallthru
      _
    // Predicated region
    $region50: #{tpu_custom_call.1} parent=1 // pred_check
      _
    $region51: #{tpu_custom_call.1} parent=1 // pred_check_branch
      %107 = sbr.rel (0) target = $region53
    $region52: #{tpu_custom_call.1} parent=1 // pred_region
      %108 = dma.done [#allocation9], 1024
    $region53: #{tpu_custom_call.1} parent=1 // pred_fallthru
      _
    // Predicated region
    $region54: #{tpu_custom_call.1} parent=1 // pred_check
      _
    $region55: #{tpu_custom_call.1} parent=1 // pred_check_branch
      %110 = sbr.rel (0) target = $region57
    $region56: #{tpu_custom_call.1} parent=1 // pred_region
      %111 = dma.done [#allocation9], 1024
    $region57: #{tpu_custom_call.1} parent=1 // pred_fallthru
      _
    // Predicated region
    $region58: #{tpu_custom_call.1} parent=1 // pred_check
      _
    $region59: #{tpu_custom_call.1} parent=1 // pred_check_branch
      %113 = sbr.rel (0) target = $region61
    $region60: #{tpu_custom_call.1} parent=1 // pred_region
      %114 = dma.done [#allocation12], 1024
    $region61: #{tpu_custom_call.1} parent=1 // pred_fallthru
      _
    %v116 = vld [vmem:[#allocation5] sm:$0xf]
    %v117 = vld [vmem:[#allocation5 + $0x4] sm:$0xf]
    %v118 = vld [vmem:[#allocation5 + $0x8] sm:$0xf]
    %v119 = vld [vmem:[#allocation5 + $0xc] sm:$0xf]
    %v120 = vld [vmem:[#allocation5 + $0x10] sm:$0xf]
    %v121 = vld [vmem:[#allocation5 + $0x14] sm:$0xf]
    %v122 = vld [vmem:[#allocation5 + $0x18] sm:$0xf]
    %v123 = vld [vmem:[#allocation5 + $0x1c] sm:$0xf]
    %v124 = vld [vmem:[#allocation5 + $0x20] sm:$0xf]
    %v125 = vld [vmem:[#allocation5 + $0x24] sm:$0xf]
    %v126 = vld [vmem:[#allocation5 + $0x28] sm:$0xf]
    %v127 = vld [vmem:[#allocation5 + $0x2c] sm:$0xf]
    %v128 = vld [vmem:[#allocation5 + $0x30] sm:$0xf]
    %v129 = vld [vmem:[#allocation5 + $0x34] sm:$0xf]
    %v130 = vld [vmem:[#allocation5 + $0x38] sm:$0xf]
    %v131 = vld [vmem:[#allocation5 + $0x3c] sm:$0xf]
    %v132 = vld [vmem:[#allocation5 + $0x40] sm:$0xf]
    %v133 = vld [vmem:[#allocation5 + $0x44] sm:$0xf]
    %v134 = vld [vmem:[#allocation5 + $0x48] sm:$0xf]
    %v135 = vld [vmem:[#allocation5 + $0x4c] sm:$0xf]
    %v136 = vld [vmem:[#allocation5 + $0x50] sm:$0xf]
    %v137 = vld [vmem:[#allocation5 + $0x54] sm:$0xf]
    %v138 = vld [vmem:[#allocation5 + $0x58] sm:$0xf]
    %v139 = vld [vmem:[#allocation5 + $0x5c] sm:$0xf]
    %v140 = vld [vmem:[#allocation5 + $0x60] sm:$0xf]
    %v141 = vld [vmem:[#allocation5 + $0x64] sm:$0xf]
    %v142 = vld [vmem:[#allocation5 + $0x68] sm:$0xf]
    %v143 = vld [vmem:[#allocation5 + $0x6c] sm:$0xf]
    %v144 = vld [vmem:[#allocation5 + $0x70] sm:$0xf]
    %v145 = vld [vmem:[#allocation5 + $0x74] sm:$0xf]
    %v146 = vld [vmem:[#allocation5 + $0x78] sm:$0xf]
    %v147 = vld [vmem:[#allocation5 + $0x7c] sm:$0xf]
    %v148 = vld [vmem:[#allocation5 + $0x80] sm:$0xf]
    %v149 = vld [vmem:[#allocation5 + $0x84] sm:$0xf]
    %v150 = vld [vmem:[#allocation5 + $0x88] sm:$0xf]
    %v151 = vld [vmem:[#allocation5 + $0x8c] sm:$0xf]
    %v152 = vld [vmem:[#allocation5 + $0x90] sm:$0xf]
    %v153 = vld [vmem:[#allocation5 + $0x94] sm:$0xf]
    %v154 = vld [vmem:[#allocation5 + $0x98] sm:$0xf]
    %v155 = vld [vmem:[#allocation5 + $0x9c] sm:$0xf]
    %v156 = vld [vmem:[#allocation5 + $0xa0] sm:$0xf]
    %v157 = vld [vmem:[#allocation5 + $0xa4] sm:$0xf]
    %v158 = vld [vmem:[#allocation5 + $0xa8] sm:$0xf]
    %v159 = vld [vmem:[#allocation5 + $0xac] sm:$0xf]
    %v160 = vld [vmem:[#allocation5 + $0xb0] sm:$0xf]
    %v161 = vld [vmem:[#allocation5 + $0xb4] sm:$0xf]
    %v162 = vld [vmem:[#allocation5 + $0xb8] sm:$0xf]
    %v163 = vld [vmem:[#allocation5 + $0xbc] sm:$0xf]
    %v164 = vld [vmem:[#allocation5 + $0xc0] sm:$0xf]
    %v165 = vld [vmem:[#allocation5 + $0xc4] sm:$0xf]
    %v166 = vld [vmem:[#allocation5 + $0xc8] sm:$0xf]
    %v167 = vld [vmem:[#allocation5 + $0xcc] sm:$0xf]
    %v168 = vld [vmem:[#allocation5 + $0xd0] sm:$0xf]
    %v169 = vld [vmem:[#allocation5 + $0xd4] sm:$0xf]
    %v170 = vld [vmem:[#allocation5 + $0xd8] sm:$0xf]
    %v171 = vld [vmem:[#allocation5 + $0xdc] sm:$0xf]
    %v172 = vld [vmem:[#allocation5 + $0xe0] sm:$0xf]
    %v173 = vld [vmem:[#allocation5 + $0xe4] sm:$0xf]
    %v174 = vld [vmem:[#allocation5 + $0xe8] sm:$0xf]
    %v175 = vld [vmem:[#allocation5 + $0xec] sm:$0xf]
    %v176 = vld [vmem:[#allocation5 + $0xf0] sm:$0xf]
    %v177 = vld [vmem:[#allocation5 + $0xf4] sm:$0xf]
    %v178 = vld [vmem:[#allocation5 + $0xf8] sm:$0xf]
    %v179 = vld [vmem:[#allocation5 + $0xfc] sm:$0xf]
    %v180 = vld [vmem:[#allocation2] sm:$0xff]
    %v181 = vld [vmem:[#allocation2 + $0x8] sm:$0xff]
    %v182 = vld [vmem:[#allocation2 + $0x10] sm:$0xff]
    %v183 = vld [vmem:[#allocation2 + $0x18] sm:$0xff]
    %v184 = vld [vmem:[#allocation2 + $0x20] sm:$0xff]
    %v185 = vld [vmem:[#allocation2 + $0x28] sm:$0xff]
    %v186 = vld [vmem:[#allocation2 + $0x30] sm:$0xff]
    %v187 = vld [vmem:[#allocation2 + $0x38] sm:$0xff]
    %v188 = vld [vmem:[#allocation2 + $0x40] sm:$0xff]
    %v189 = vld [vmem:[#allocation2 + $0x48] sm:$0xff]
    %v190 = vld [vmem:[#allocation2 + $0x50] sm:$0xff]
    %v191 = vld [vmem:[#allocation2 + $0x58] sm:$0xff]
    %v192 = vld [vmem:[#allocation2 + $0x60] sm:$0xff]
    %v193 = vld [vmem:[#allocation2 + $0x68] sm:$0xff]
    %v194 = vld [vmem:[#allocation2 + $0x70] sm:$0xff]
    %v195 = vld [vmem:[#allocation2 + $0x78] sm:$0xff]
    %v196 = vld [vmem:[#allocation2 + $0x80] sm:$0xff]
    %v197 = vld [vmem:[#allocation2 + $0x88] sm:$0xff]
    %v198 = vld [vmem:[#allocation2 + $0x90] sm:$0xff]
    %v199 = vld [vmem:[#allocation2 + $0x98] sm:$0xff]
    %v200 = vld [vmem:[#allocation2 + $0xa0] sm:$0xff]
    %v201 = vld [vmem:[#allocation2 + $0xa8] sm:$0xff]
    %v202 = vld [vmem:[#allocation2 + $0xb0] sm:$0xff]
    %v203 = vld [vmem:[#allocation2 + $0xb8] sm:$0xff]
    %v204 = vld [vmem:[#allocation2 + $0xc0] sm:$0xff]
    %v205 = vld [vmem:[#allocation2 + $0xc8] sm:$0xff]
    %v206 = vld [vmem:[#allocation2 + $0xd0] sm:$0xff]
    %v207 = vld [vmem:[#allocation2 + $0xd8] sm:$0xff]
    %v208 = vld [vmem:[#allocation2 + $0xe0] sm:$0xff]
    %v209 = vld [vmem:[#allocation2 + $0xe8] sm:$0xff]
    %v210 = vld [vmem:[#allocation2 + $0xf0] sm:$0xff]
    %v211 = vld [vmem:[#allocation2 + $0xf8] sm:$0xff]
    %v212 = vld [vmem:[#allocation2 + $0x100] sm:$0xff]
    %v213 = vld [vmem:[#allocation2 + $0x108] sm:$0xff]
    %v214 = vld [vmem:[#allocation2 + $0x110] sm:$0xff]
    %v215 = vld [vmem:[#allocation2 + $0x118] sm:$0xff]
    %v216 = vld [vmem:[#allocation2 + $0x120] sm:$0xff]
    %v217 = vld [vmem:[#allocation2 + $0x128] sm:$0xff]
    %v218 = vld [vmem:[#allocation2 + $0x130] sm:$0xff]
    %v219 = vld [vmem:[#allocation2 + $0x138] sm:$0xff]
    %v220 = vld [vmem:[#allocation2 + $0x140] sm:$0xff]
    %v221 = vld [vmem:[#allocation2 + $0x148] sm:$0xff]
    %v222 = vld [vmem:[#allocation2 + $0x150] sm:$0xff]
    %v223 = vld [vmem:[#allocation2 + $0x158] sm:$0xff]
    %v224 = vld [vmem:[#allocation2 + $0x160] sm:$0xff]
    %v225 = vld [vmem:[#allocation2 + $0x168] sm:$0xff]
    %v226 = vld [vmem:[#allocation2 + $0x170] sm:$0xff]
    %v227 = vld [vmem:[#allocation2 + $0x178] sm:$0xff]
    %v228 = vld [vmem:[#allocation2 + $0x180] sm:$0xff]
    %v229 = vld [vmem:[#allocation2 + $0x188] sm:$0xff]
    %v230 = vld [vmem:[#allocation2 + $0x190] sm:$0xff]
    %v231 = vld [vmem:[#allocation2 + $0x198] sm:$0xff]
    %v232 = vld [vmem:[#allocation2 + $0x1a0] sm:$0xff]
    %v233 = vld [vmem:[#allocation2 + $0x1a8] sm:$0xff]
    %v234 = vld [vmem:[#allocation2 + $0x1b0] sm:$0xff]
    %v235 = vld [vmem:[#allocation2 + $0x1b8] sm:$0xff]
    %v236 = vld [vmem:[#allocation2 + $0x1c0] sm:$0xff]
    %v237 = vld [vmem:[#allocation2 + $0x1c8] sm:$0xff]
    %v238 = vld [vmem:[#allocation2 + $0x1d0] sm:$0xff]
    %v239 = vld [vmem:[#allocation2 + $0x1d8] sm:$0xff]
    %v240 = vld [vmem:[#allocation2 + $0x1e0] sm:$0xff]
    %v241 = vld [vmem:[#allocation2 + $0x1e8] sm:$0xff]
    %v242 = vld [vmem:[#allocation2 + $0x1f0] sm:$0xff]
    %v243 = vld [vmem:[#allocation2 + $0x1f8] sm:$0xff]
    %v244 = vld [vmem:[#allocation2 + $0x200] sm:$0xff]
    %v245 = vld [vmem:[#allocation2 + $0x208] sm:$0xff]
    %v246 = vld [vmem:[#allocation2 + $0x210] sm:$0xff]
    %v247 = vld [vmem:[#allocation2 + $0x218] sm:$0xff]
    %v248 = vld [vmem:[#allocation2 + $0x220] sm:$0xff]
    %v249 = vld [vmem:[#allocation2 + $0x228] sm:$0xff]
    %v250 = vld [vmem:[#allocation2 + $0x230] sm:$0xff]
    %v251 = vld [vmem:[#allocation2 + $0x238] sm:$0xff]
    %v252 = vld [vmem:[#allocation2 + $0x240] sm:$0xff]
    %v253 = vld [vmem:[#allocation2 + $0x248] sm:$0xff]
    %v254 = vld [vmem:[#allocation2 + $0x250] sm:$0xff]
    %v255 = vld [vmem:[#allocation2 + $0x258] sm:$0xff]
    %v256 = vld [vmem:[#allocation2 + $0x260] sm:$0xff]
    %v257 = vld [vmem:[#allocation2 + $0x268] sm:$0xff]
    %v258 = vld [vmem:[#allocation2 + $0x270] sm:$0xff]
    %v259 = vld [vmem:[#allocation2 + $0x278] sm:$0xff]
    %v260 = vld [vmem:[#allocation2 + $0x280] sm:$0xff]
    %v261 = vld [vmem:[#allocation2 + $0x288] sm:$0xff]
    %v262 = vld [vmem:[#allocation2 + $0x290] sm:$0xff]
    %v263 = vld [vmem:[#allocation2 + $0x298] sm:$0xff]
    %v264 = vld [vmem:[#allocation2 + $0x2a0] sm:$0xff]
    %v265 = vld [vmem:[#allocation2 + $0x2a8] sm:$0xff]
    %v266 = vld [vmem:[#allocation2 + $0x2b0] sm:$0xff]
    %v267 = vld [vmem:[#allocation2 + $0x2b8] sm:$0xff]
    %v268 = vld [vmem:[#allocation2 + $0x2c0] sm:$0xff]
    %v269 = vld [vmem:[#allocation2 + $0x2c8] sm:$0xff]
    %v270 = vld [vmem:[#allocation2 + $0x2d0] sm:$0xff]
    %v271 = vld [vmem:[#allocation2 + $0x2d8] sm:$0xff]
    %v272 = vld [vmem:[#allocation2 + $0x2e0] sm:$0xff]
    %v273 = vld [vmem:[#allocation2 + $0x2e8] sm:$0xff]
    %v274 = vld [vmem:[#allocation2 + $0x2f0] sm:$0xff]
    %v275 = vld [vmem:[#allocation2 + $0x2f8] sm:$0xff]
    %v276 = vld [vmem:[#allocation2 + $0x300] sm:$0xff]
    %v277 = vld [vmem:[#allocation2 + $0x308] sm:$0xff]
    %v278 = vld [vmem:[#allocation2 + $0x310] sm:$0xff]
    %v279 = vld [vmem:[#allocation2 + $0x318] sm:$0xff]
    %v280 = vld [vmem:[#allocation2 + $0x320] sm:$0xff]
    %v281 = vld [vmem:[#allocation2 + $0x328] sm:$0xff]
    %v282 = vld [vmem:[#allocation2 + $0x330] sm:$0xff]
    %v283 = vld [vmem:[#allocation2 + $0x338] sm:$0xff]
    %v284 = vld [vmem:[#allocation2 + $0x340] sm:$0xff]
    %v285 = vld [vmem:[#allocation2 + $0x348] sm:$0xff]
    %v286 = vld [vmem:[#allocation2 + $0x350] sm:$0xff]
    %v287 = vld [vmem:[#allocation2 + $0x358] sm:$0xff]
    %v288 = vld [vmem:[#allocation2 + $0x360] sm:$0xff]
    %v289 = vld [vmem:[#allocation2 + $0x368] sm:$0xff]
    %v290 = vld [vmem:[#allocation2 + $0x370] sm:$0xff]
    %v291 = vld [vmem:[#allocation2 + $0x378] sm:$0xff]
    %v292 = vld [vmem:[#allocation2 + $0x380] sm:$0xff]
    %v293 = vld [vmem:[#allocation2 + $0x388] sm:$0xff]
    %v294 = vld [vmem:[#allocation2 + $0x390] sm:$0xff]
    %v295 = vld [vmem:[#allocation2 + $0x398] sm:$0xff]
    %v296 = vld [vmem:[#allocation2 + $0x3a0] sm:$0xff]
    %v297 = vld [vmem:[#allocation2 + $0x3a8] sm:$0xff]
    %v298 = vld [vmem:[#allocation2 + $0x3b0] sm:$0xff]
    %v299 = vld [vmem:[#allocation2 + $0x3b8] sm:$0xff]
    %v300 = vld [vmem:[#allocation2 + $0x3c0] sm:$0xff]
    %v301 = vld [vmem:[#allocation2 + $0x3c8] sm:$0xff]
    %v302 = vld [vmem:[#allocation2 + $0x3d0] sm:$0xff]
    %v303 = vld [vmem:[#allocation2 + $0x3d8] sm:$0xff]
    %v304 = vld [vmem:[#allocation2 + $0x3e0] sm:$0xff]
    %v305 = vld [vmem:[#allocation2 + $0x3e8] sm:$0xff]
    %v306 = vld [vmem:[#allocation2 + $0x3f0] sm:$0xff]
    %v307 = vld [vmem:[#allocation2 + $0x3f8] sm:$0xff]
    %v308 = vld [vmem:[#allocation8] sm:$0xf]
    %v309 = vld [vmem:[#allocation8 + $0x4] sm:$0xf]
    %v310 = vld [vmem:[#allocation8 + $0x8] sm:$0xf]
    %v311 = vld [vmem:[#allocation8 + $0xc] sm:$0xf]
    %v312 = vld [vmem:[#allocation8 + $0x10] sm:$0xf]
    %v313 = vld [vmem:[#allocation8 + $0x14] sm:$0xf]
    %v314 = vld [vmem:[#allocation8 + $0x18] sm:$0xf]
    %v315 = vld [vmem:[#allocation8 + $0x1c] sm:$0xf]
    %v316 = vld [vmem:[#allocation8 + $0x20] sm:$0xf]
    %v317 = vld [vmem:[#allocation8 + $0x24] sm:$0xf]
    %v318 = vld [vmem:[#allocation8 + $0x28] sm:$0xf]
    %v319 = vld [vmem:[#allocation8 + $0x2c] sm:$0xf]
    %v320 = vld [vmem:[#allocation8 + $0x30] sm:$0xf]
    %v321 = vld [vmem:[#allocation8 + $0x34] sm:$0xf]
    %v322 = vld [vmem:[#allocation8 + $0x38] sm:$0xf]
    %v323 = vld [vmem:[#allocation8 + $0x3c] sm:$0xf]
    %v388 = vunpack.c.l.b16 %v116
    %v389 = vunpack.c.l.b16 %v117
    %v390 = vunpack.c.l.b16 %v118
    %v391 = vunpack.c.l.b16 %v119
    %v392 = vunpack.c.l.b16 %v120
    %v393 = vunpack.c.l.b16 %v121
    %v394 = vunpack.c.l.b16 %v122
    %v395 = vunpack.c.l.b16 %v123
    %v396 = vunpack.c.l.b16 %v124
    %v397 = vunpack.c.l.b16 %v125
    %v398 = vunpack.c.l.b16 %v126
    %v399 = vunpack.c.l.b16 %v127
    %v400 = vunpack.c.l.b16 %v128
    %v401 = vunpack.c.l.b16 %v129
    %v402 = vunpack.c.l.b16 %v130
    %v403 = vunpack.c.l.b16 %v131
    %v404 = vunpack.c.l.b16 %v132
    %v405 = vunpack.c.l.b16 %v133
    %v406 = vunpack.c.l.b16 %v134
    %v407 = vunpack.c.l.b16 %v135
    %v408 = vunpack.c.l.b16 %v136
    %v409 = vunpack.c.l.b16 %v137
    %v410 = vunpack.c.l.b16 %v138
    %v411 = vunpack.c.l.b16 %v139
    %v412 = vunpack.c.l.b16 %v140
    %v413 = vunpack.c.l.b16 %v141
    %v414 = vunpack.c.l.b16 %v142
    %v415 = vunpack.c.l.b16 %v143
    %v416 = vunpack.c.l.b16 %v144
    %v417 = vunpack.c.l.b16 %v145
    %v418 = vunpack.c.l.b16 %v146
    %v419 = vunpack.c.l.b16 %v147
    %v420 = vunpack.c.l.b16 %v148
    %v421 = vunpack.c.l.b16 %v149
    %v422 = vunpack.c.l.b16 %v150
    %v423 = vunpack.c.l.b16 %v151
    %v424 = vunpack.c.l.b16 %v152
    %v425 = vunpack.c.l.b16 %v153
    %v426 = vunpack.c.l.b16 %v154
    %v427 = vunpack.c.l.b16 %v155
    %v428 = vunpack.c.l.b16 %v156
    %v429 = vunpack.c.l.b16 %v157
    %v430 = vunpack.c.l.b16 %v158
    %v431 = vunpack.c.l.b16 %v159
    %v432 = vunpack.c.l.b16 %v160
    %v433 = vunpack.c.l.b16 %v161
    %v434 = vunpack.c.l.b16 %v162
    %v435 = vunpack.c.l.b16 %v163
    %v436 = vunpack.c.l.b16 %v164
    %v437 = vunpack.c.l.b16 %v165
    %v438 = vunpack.c.l.b16 %v166
    %v439 = vunpack.c.l.b16 %v167
    %v440 = vunpack.c.l.b16 %v168
    %v441 = vunpack.c.l.b16 %v169
    %v442 = vunpack.c.l.b16 %v170
    %v443 = vunpack.c.l.b16 %v171
    %v444 = vunpack.c.l.b16 %v172
    %v445 = vunpack.c.l.b16 %v173
    %v446 = vunpack.c.l.b16 %v174
    %v447 = vunpack.c.l.b16 %v175
    %v448 = vunpack.c.l.b16 %v176
    %v449 = vunpack.c.l.b16 %v177
    %v450 = vunpack.c.l.b16 %v178
    %v451 = vunpack.c.l.b16 %v179
    %v452 = vpack.c.b16 %v389, %v388
    %v453 = vpack.c.b16 %v391, %v390
    %v454 = vpack.c.b16 %v393, %v392
    %v455 = vpack.c.b16 %v395, %v394
    %v456 = vpack.c.b16 %v397, %v396
    %v457 = vpack.c.b16 %v399, %v398
    %v458 = vpack.c.b16 %v401, %v400
    %v459 = vpack.c.b16 %v403, %v402
    %v460 = vpack.c.b16 %v405, %v404
    %v461 = vpack.c.b16 %v407, %v406
    %v462 = vpack.c.b16 %v409, %v408
    %v463 = vpack.c.b16 %v411, %v410
    %v464 = vpack.c.b16 %v413, %v412
    %v465 = vpack.c.b16 %v415, %v414
    %v466 = vpack.c.b16 %v417, %v416
    %v467 = vpack.c.b16 %v419, %v418
    %v468 = vpack.c.b16 %v421, %v420
    %v469 = vpack.c.b16 %v423, %v422
    %v470 = vpack.c.b16 %v425, %v424
    %v471 = vpack.c.b16 %v427, %v426
    %v472 = vpack.c.b16 %v429, %v428
    %v473 = vpack.c.b16 %v431, %v430
    %v474 = vpack.c.b16 %v433, %v432
    %v475 = vpack.c.b16 %v435, %v434
    %v476 = vpack.c.b16 %v437, %v436
    %v477 = vpack.c.b16 %v439, %v438
    %v478 = vpack.c.b16 %v441, %v440
    %v479 = vpack.c.b16 %v443, %v442
    %v480 = vpack.c.b16 %v445, %v444
    %v481 = vpack.c.b16 %v447, %v446
    %v482 = vpack.c.b16 %v449, %v448
    %v483 = vpack.c.b16 %v451, %v450
    %v532 = vunpack.c.l.b16 %v308
    %v533 = vunpack.c.l.b16 %v309
    %v534 = vunpack.c.l.b16 %v310
    %v535 = vunpack.c.l.b16 %v311
    %v536 = vunpack.c.l.b16 %v312
    %v537 = vunpack.c.l.b16 %v313
    %v538 = vunpack.c.l.b16 %v314
    %v539 = vunpack.c.l.b16 %v315
    %v540 = vunpack.c.l.b16 %v316
    %v541 = vunpack.c.l.b16 %v317
    %v542 = vunpack.c.l.b16 %v318
    %v543 = vunpack.c.l.b16 %v319
    %v544 = vunpack.c.l.b16 %v320
    %v545 = vunpack.c.l.b16 %v321
    %v546 = vunpack.c.l.b16 %v322
    %v547 = vunpack.c.l.b16 %v323
    %v548 = vpack.c.b16 %v533, %v532
    %v549 = vpack.c.b16 %v535, %v534
    %v550 = vpack.c.b16 %v537, %v536
    %v551 = vpack.c.b16 %v539, %v538
    %v552 = vpack.c.b16 %v541, %v540
    %v553 = vpack.c.b16 %v543, %v542
    %v554 = vpack.c.b16 %v545, %v544
    %v555 = vpack.c.b16 %v547, %v546
    %564 = vmatprep.subr.bf16.mxu0 0
    %565 = vmatpush1.bf16.msra.mxu0 %v555
    %566 = vmatprep.subr.bf16.mxu0 0
    %567 = vmatpush1.bf16.msra.mxu0 %v554
    %568 = vmatprep.subr.bf16.mxu0 0
    %569 = vmatpush1.bf16.msra.mxu0 %v553
    %570 = vmatprep.subr.bf16.mxu0 0
    %571 = vmatpush1.bf16.msra.mxu0 %v552
    %572 = vmatprep.subr.bf16.mxu0 0
    %573 = vmatpush1.bf16.msra.mxu0 %v551
    %574 = vmatprep.subr.bf16.mxu0 0
    %575 = vmatpush1.bf16.msra.mxu0 %v550
    %576 = vmatprep.subr.bf16.mxu0 0
    %577 = vmatpush1.bf16.msra.mxu0 %v549
    %578 = vmatprep.subr.bf16.mxu0 0
    %579 = vmatpush1.bf16.msra.mxu0 %v548
    %580 = vmatprep.subr.bf16.mxu0 0
    %581 = vmatpush2.bf16.msra.mxu0 0
    %582 = vmatprep.subr.bf16.mxu0 0
    %583 = vmatpush2.bf16.msra.mxu0 0
    %584 = vmatprep.subr.bf16.mxu0 0
    %585 = vmatpush2.bf16.msra.mxu0 0
    %586 = vmatprep.subr.bf16.mxu0 0
    %587 = vmatpush2.bf16.msra.mxu0 0
    %588 = vmatprep.subr.bf16.mxu0 0
    %589 = vmatpush2.bf16.msra.mxu0 0
    %590 = vmatprep.subr.bf16.mxu0 0
    %591 = vmatpush2.bf16.msra.mxu0 0
    %592 = vmatprep.subr.bf16.mxu0 0
    %593 = vmatpush2.bf16.msra.mxu0 0
    %594 = vmatprep.subr.bf16.mxu0 0
    %595 = vmatpush2.bf16.msra.mxu0 0
    %596 = vmatprep.mubr.bf16.mxu0 0
    %597 = vmatmul.mubr.bf16.gmra.mxu0 %v452
    %v598 = vpop.f32.mrf.mxu0
    %v599 = vadd.f32 0.0, %v598
    %v600 = vpop.f32.mrf.mxu0
    %v601 = vpop.f32.mrf.mxu0
    %v602 = vadd.f32 0.0, %v601
    %v603 = vpop.f32.mrf.mxu0
    %604 = vmatprep.mubr.bf16.mxu0 0
    %605 = vmatmul.mubr.bf16.gmra.mxu0 %v453
    %v606 = vpop.f32.mrf.mxu0
    %v607 = vadd.f32 0.0, %v606
    %v608 = vpop.f32.mrf.mxu0
    %v609 = vpop.f32.mrf.mxu0
    %v610 = vadd.f32 0.0, %v609
    %v611 = vpop.f32.mrf.mxu0
    %612 = vmatprep.mubr.bf16.mxu0 0
    %613 = vmatmul.mubr.bf16.gmra.mxu0 %v454
    %v614 = vpop.f32.mrf.mxu0
    %v615 = vadd.f32 0.0, %v614
    %v616 = vpop.f32.mrf.mxu0
    %v617 = vpop.f32.mrf.mxu0
    %v618 = vadd.f32 0.0, %v617
    %v619 = vpop.f32.mrf.mxu0
    %620 = vmatprep.mubr.bf16.mxu0 0
    %621 = vmatmul.mubr.bf16.gmra.mxu0 %v455
    %v622 = vpop.f32.mrf.mxu0
    %v623 = vadd.f32 0.0, %v622
    %v624 = vpop.f32.mrf.mxu0
    %v625 = vpop.f32.mrf.mxu0
    %v626 = vadd.f32 0.0, %v625
    %v627 = vpop.f32.mrf.mxu0
    %628 = vmatprep.mubr.bf16.mxu0 0
    %629 = vmatmul.mubr.bf16.gmra.mxu0 %v456
    %v630 = vpop.f32.mrf.mxu0
    %v631 = vadd.f32 0.0, %v630
    %v632 = vpop.f32.mrf.mxu0
    %v633 = vpop.f32.mrf.mxu0
    %v634 = vadd.f32 0.0, %v633
    %v635 = vpop.f32.mrf.mxu0
    %636 = vmatprep.mubr.bf16.mxu0 0
    %637 = vmatmul.mubr.bf16.gmra.mxu0 %v457
    %v638 = vpop.f32.mrf.mxu0
    %v639 = vadd.f32 0.0, %v638
    %v640 = vpop.f32.mrf.mxu0
    %v641 = vpop.f32.mrf.mxu0
    %v642 = vadd.f32 0.0, %v641
    %v643 = vpop.f32.mrf.mxu0
    %644 = vmatprep.mubr.bf16.mxu0 0
    %645 = vmatmul.mubr.bf16.gmra.mxu0 %v458
    %v646 = vpop.f32.mrf.mxu0
    %v647 = vadd.f32 0.0, %v646
    %v648 = vpop.f32.mrf.mxu0
    %v649 = vpop.f32.mrf.mxu0
    %v650 = vadd.f32 0.0, %v649
    %v651 = vpop.f32.mrf.mxu0
    %652 = vmatprep.mubr.bf16.mxu0 0
    %653 = vmatmul.mubr.bf16.gmra.mxu0 %v459
    %v654 = vpop.f32.mrf.mxu0
    %v655 = vadd.f32 0.0, %v654
    %v656 = vpop.f32.mrf.mxu0
    %v657 = vpop.f32.mrf.mxu0
    %v658 = vadd.f32 0.0, %v657
    %v659 = vpop.f32.mrf.mxu0
    %660 = vmatprep.mubr.bf16.mxu0 0
    %661 = vmatmul.mubr.bf16.gmra.mxu0 %v460
    %v662 = vpop.f32.mrf.mxu0
    %v663 = vadd.f32 0.0, %v662
    %v664 = vpop.f32.mrf.mxu0
    %v665 = vpop.f32.mrf.mxu0
    %v666 = vadd.f32 0.0, %v665
    %v667 = vpop.f32.mrf.mxu0
    %668 = vmatprep.mubr.bf16.mxu0 0
    %669 = vmatmul.mubr.bf16.gmra.mxu0 %v461
    %v670 = vpop.f32.mrf.mxu0
    %v671 = vadd.f32 0.0, %v670
    %v672 = vpop.f32.mrf.mxu0
    %v673 = vpop.f32.mrf.mxu0
    %v674 = vadd.f32 0.0, %v673
    %v675 = vpop.f32.mrf.mxu0
    %676 = vmatprep.mubr.bf16.mxu0 0
    %677 = vmatmul.mubr.bf16.gmra.mxu0 %v462
    %v678 = vpop.f32.mrf.mxu0
    %v679 = vadd.f32 0.0, %v678
    %v680 = vpop.f32.mrf.mxu0
    %v681 = vpop.f32.mrf.mxu0
    %v682 = vadd.f32 0.0, %v681
    %v683 = vpop.f32.mrf.mxu0
    %684 = vmatprep.mubr.bf16.mxu0 0
    %685 = vmatmul.mubr.bf16.gmra.mxu0 %v463
    %v686 = vpop.f32.mrf.mxu0
    %v687 = vadd.f32 0.0, %v686
    %v688 = vpop.f32.mrf.mxu0
    %v689 = vpop.f32.mrf.mxu0
    %v690 = vadd.f32 0.0, %v689
    %v691 = vpop.f32.mrf.mxu0
    %692 = vmatprep.mubr.bf16.mxu0 0
    %693 = vmatmul.mubr.bf16.gmra.mxu0 %v464
    %v694 = vpop.f32.mrf.mxu0
    %v695 = vadd.f32 0.0, %v694
    %v696 = vpop.f32.mrf.mxu0
    %v697 = vpop.f32.mrf.mxu0
    %v698 = vadd.f32 0.0, %v697
    %v699 = vpop.f32.mrf.mxu0
    %700 = vmatprep.mubr.bf16.mxu0 0
    %701 = vmatmul.mubr.bf16.gmra.mxu0 %v465
    %v702 = vpop.f32.mrf.mxu0
    %v703 = vadd.f32 0.0, %v702
    %v704 = vpop.f32.mrf.mxu0
    %v705 = vpop.f32.mrf.mxu0
    %v706 = vadd.f32 0.0, %v705
    %v707 = vpop.f32.mrf.mxu0
    %708 = vmatprep.mubr.bf16.mxu0 0
    %709 = vmatmul.mubr.bf16.gmra.mxu0 %v466
    %v710 = vpop.f32.mrf.mxu0
    %v711 = vadd.f32 0.0, %v710
    %v712 = vpop.f32.mrf.mxu0
    %v713 = vpop.f32.mrf.mxu0
    %v714 = vadd.f32 0.0, %v713
    %v715 = vpop.f32.mrf.mxu0
    %716 = vmatprep.mubr.bf16.mxu0 0
    %717 = vmatmul.mubr.bf16.gmra.mxu0 %v467
    %v718 = vpop.f32.mrf.mxu0
    %v719 = vadd.f32 0.0, %v718
    %v720 = vpop.f32.mrf.mxu0
    %v721 = vpop.f32.mrf.mxu0
    %v722 = vadd.f32 0.0, %v721
    %v723 = vpop.f32.mrf.mxu0
    %724 = vmatprep.mubr.bf16.mxu0 0
    %725 = vmatmul.mubr.bf16.gmra.mxu0 %v468
    %v726 = vpop.f32.mrf.mxu0
    %v727 = vadd.f32 0.0, %v726
    %v728 = vpop.f32.mrf.mxu0
    %v729 = vpop.f32.mrf.mxu0
    %v730 = vadd.f32 0.0, %v729
    %v731 = vpop.f32.mrf.mxu0
    %732 = vmatprep.mubr.bf16.mxu0 0
    %733 = vmatmul.mubr.bf16.gmra.mxu0 %v469
    %v734 = vpop.f32.mrf.mxu0
    %v735 = vadd.f32 0.0, %v734
    %v736 = vpop.f32.mrf.mxu0
    %v737 = vpop.f32.mrf.mxu0
    %v738 = vadd.f32 0.0, %v737
    %v739 = vpop.f32.mrf.mxu0
    %740 = vmatprep.mubr.bf16.mxu0 0
    %741 = vmatmul.mubr.bf16.gmra.mxu0 %v470
    %v742 = vpop.f32.mrf.mxu0
    %v743 = vadd.f32 0.0, %v742
    %v744 = vpop.f32.mrf.mxu0
    %v745 = vpop.f32.mrf.mxu0
    %v746 = vadd.f32 0.0, %v745
    %v747 = vpop.f32.mrf.mxu0
    %748 = vmatprep.mubr.bf16.mxu0 0
    %749 = vmatmul.mubr.bf16.gmra.mxu0 %v471
    %v750 = vpop.f32.mrf.mxu0
    %v751 = vadd.f32 0.0, %v750
    %v752 = vpop.f32.mrf.mxu0
    %v753 = vpop.f32.mrf.mxu0
    %v754 = vadd.f32 0.0, %v753
    %v755 = vpop.f32.mrf.mxu0
    %756 = vmatprep.mubr.bf16.mxu0 0
    %757 = vmatmul.mubr.bf16.gmra.mxu0 %v472
    %v758 = vpop.f32.mrf.mxu0
    %v759 = vadd.f32 0.0, %v758
    %v760 = vpop.f32.mrf.mxu0
    %v761 = vpop.f32.mrf.mxu0
    %v762 = vadd.f32 0.0, %v761
    %v763 = vpop.f32.mrf.mxu0
    %764 = vmatprep.mubr.bf16.mxu0 0
    %765 = vmatmul.mubr.bf16.gmra.mxu0 %v473
    %v766 = vpop.f32.mrf.mxu0
    %v767 = vadd.f32 0.0, %v766
    %v768 = vpop.f32.mrf.mxu0
    %v769 = vpop.f32.mrf.mxu0
    %v770 = vadd.f32 0.0, %v769
    %v771 = vpop.f32.mrf.mxu0
    %772 = vmatprep.mubr.bf16.mxu0 0
    %773 = vmatmul.mubr.bf16.gmra.mxu0 %v474
    %v774 = vpop.f32.mrf.mxu0
    %v775 = vadd.f32 0.0, %v774
    %v776 = vpop.f32.mrf.mxu0
    %v777 = vpop.f32.mrf.mxu0
    %v778 = vadd.f32 0.0, %v777
    %v779 = vpop.f32.mrf.mxu0
    %780 = vmatprep.mubr.bf16.mxu0 0
    %781 = vmatmul.mubr.bf16.gmra.mxu0 %v475
    %v782 = vpop.f32.mrf.mxu0
    %v783 = vadd.f32 0.0, %v782
    %v784 = vpop.f32.mrf.mxu0
    %v785 = vpop.f32.mrf.mxu0
    %v786 = vadd.f32 0.0, %v785
    %v787 = vpop.f32.mrf.mxu0
    %788 = vmatprep.mubr.bf16.mxu0 0
    %789 = vmatmul.mubr.bf16.gmra.mxu0 %v476
    %v790 = vpop.f32.mrf.mxu0
    %v791 = vadd.f32 0.0, %v790
    %v792 = vpop.f32.mrf.mxu0
    %v793 = vpop.f32.mrf.mxu0
    %v794 = vadd.f32 0.0, %v793
    %v795 = vpop.f32.mrf.mxu0
    %796 = vmatprep.mubr.bf16.mxu0 0
    %797 = vmatmul.mubr.bf16.gmra.mxu0 %v477
    %v798 = vpop.f32.mrf.mxu0
    %v799 = vadd.f32 0.0, %v798
    %v800 = vpop.f32.mrf.mxu0
    %v801 = vpop.f32.mrf.mxu0
    %v802 = vadd.f32 0.0, %v801
    %v803 = vpop.f32.mrf.mxu0
    %804 = vmatprep.mubr.bf16.mxu0 0
    %805 = vmatmul.mubr.bf16.gmra.mxu0 %v478
    %v806 = vpop.f32.mrf.mxu0
    %v807 = vadd.f32 0.0, %v806
    %v808 = vpop.f32.mrf.mxu0
    %v809 = vpop.f32.mrf.mxu0
    %v810 = vadd.f32 0.0, %v809
    %v811 = vpop.f32.mrf.mxu0
    %812 = vmatprep.mubr.bf16.mxu0 0
    %813 = vmatmul.mubr.bf16.gmra.mxu0 %v479
    %v814 = vpop.f32.mrf.mxu0
    %v815 = vadd.f32 0.0, %v814
    %v816 = vpop.f32.mrf.mxu0
    %v817 = vpop.f32.mrf.mxu0
    %v818 = vadd.f32 0.0, %v817
    %v819 = vpop.f32.mrf.mxu0
    %820 = vmatprep.mubr.bf16.mxu0 0
    %821 = vmatmul.mubr.bf16.gmra.mxu0 %v480
    %v822 = vpop.f32.mrf.mxu0
    %v823 = vadd.f32 0.0, %v822
    %v824 = vpop.f32.mrf.mxu0
    %v825 = vpop.f32.mrf.mxu0
    %v826 = vadd.f32 0.0, %v825
    %v827 = vpop.f32.mrf.mxu0
    %828 = vmatprep.mubr.bf16.mxu0 0
    %829 = vmatmul.mubr.bf16.gmra.mxu0 %v481
    %v830 = vpop.f32.mrf.mxu0
    %v831 = vadd.f32 0.0, %v830
    %v832 = vpop.f32.mrf.mxu0
    %v833 = vpop.f32.mrf.mxu0
    %v834 = vadd.f32 0.0, %v833
    %v835 = vpop.f32.mrf.mxu0
    %836 = vmatprep.mubr.bf16.mxu0 0
    %837 = vmatmul.mubr.bf16.gmra.mxu0 %v482
    %v838 = vpop.f32.mrf.mxu0
    %v839 = vadd.f32 0.0, %v838
    %v840 = vpop.f32.mrf.mxu0
    %v841 = vpop.f32.mrf.mxu0
    %v842 = vadd.f32 0.0, %v841
    %v843 = vpop.f32.mrf.mxu0
    %844 = vmatprep.mubr.bf16.mxu0 0
    %845 = vmatmul.mubr.bf16.gmra.mxu0 %v483
    %v846 = vpop.f32.mrf.mxu0
    %v847 = vadd.f32 0.0, %v846
    %v848 = vpop.f32.mrf.mxu0
    %v849 = vpop.f32.mrf.mxu0
    %v850 = vadd.f32 0.0, %v849
    %v851 = vpop.f32.mrf.mxu0
    %852 = vdwg.mxu0
    %v853 = vpack.c.bf16 %v602, %v599
    %v854 = vpack.c.bf16 %v610, %v607
    %v855 = vpack.c.bf16 %v618, %v615
    %v856 = vpack.c.bf16 %v626, %v623
    %v857 = vpack.c.bf16 %v634, %v631
    %v858 = vpack.c.bf16 %v642, %v639
    %v859 = vpack.c.bf16 %v650, %v647
    %v860 = vpack.c.bf16 %v658, %v655
    %v861 = vpack.c.bf16 %v666, %v663
    %v862 = vpack.c.bf16 %v674, %v671
    %v863 = vpack.c.bf16 %v682, %v679
    %v864 = vpack.c.bf16 %v690, %v687
    %v865 = vpack.c.bf16 %v698, %v695
    %v866 = vpack.c.bf16 %v706, %v703
    %v867 = vpack.c.bf16 %v714, %v711
    %v868 = vpack.c.bf16 %v722, %v719
    %v869 = vpack.c.bf16 %v730, %v727
    %v870 = vpack.c.bf16 %v738, %v735
    %v871 = vpack.c.bf16 %v746, %v743
    %v872 = vpack.c.bf16 %v754, %v751
    %v873 = vpack.c.bf16 %v762, %v759
    %v874 = vpack.c.bf16 %v770, %v767
    %v875 = vpack.c.bf16 %v778, %v775
    %v876 = vpack.c.bf16 %v786, %v783
    %v877 = vpack.c.bf16 %v794, %v791
    %v878 = vpack.c.bf16 %v802, %v799
    %v879 = vpack.c.bf16 %v810, %v807
    %v880 = vpack.c.bf16 %v818, %v815
    %v881 = vpack.c.bf16 %v826, %v823
    %v882 = vpack.c.bf16 %v834, %v831
    %v883 = vpack.c.bf16 %v842, %v839
    %v884 = vpack.c.bf16 %v850, %v847
    %v885 = vld [vmem:[#allocation7] sm:$0xf]
    %v886 = vld [vmem:[#allocation7 + $0x4] sm:$0xf]
    %v887 = vld [vmem:[#allocation7 + $0x8] sm:$0xf]
    %v888 = vld [vmem:[#allocation7 + $0xc] sm:$0xf]
    %v889 = vld [vmem:[#allocation7 + $0x10] sm:$0xf]
    %v890 = vld [vmem:[#allocation7 + $0x14] sm:$0xf]
    %v891 = vld [vmem:[#allocation7 + $0x18] sm:$0xf]
    %v892 = vld [vmem:[#allocation7 + $0x1c] sm:$0xf]
    %v893 = vld [vmem:[#allocation7 + $0x20] sm:$0xf]
    %v894 = vld [vmem:[#allocation7 + $0x24] sm:$0xf]
    %v895 = vld [vmem:[#allocation7 + $0x28] sm:$0xf]
    %v896 = vld [vmem:[#allocation7 + $0x2c] sm:$0xf]
    %v897 = vld [vmem:[#allocation7 + $0x30] sm:$0xf]
    %v898 = vld [vmem:[#allocation7 + $0x34] sm:$0xf]
    %v899 = vld [vmem:[#allocation7 + $0x38] sm:$0xf]
    %v900 = vld [vmem:[#allocation7 + $0x3c] sm:$0xf]
    %v1029 = vunpack.c.l.b16 %v180
    %v1030 = vunpack.c.h.b16 %v180
    %v1031 = vunpack.c.l.b16 %v181
    %v1032 = vunpack.c.h.b16 %v181
    %v1033 = vunpack.c.l.b16 %v182
    %v1034 = vunpack.c.h.b16 %v182
    %v1035 = vunpack.c.l.b16 %v183
    %v1036 = vunpack.c.h.b16 %v183
    %v1037 = vunpack.c.l.b16 %v184
    %v1038 = vunpack.c.h.b16 %v184
    %v1039 = vunpack.c.l.b16 %v185
    %v1040 = vunpack.c.h.b16 %v185
    %v1041 = vunpack.c.l.b16 %v186
    %v1042 = vunpack.c.h.b16 %v186
    %v1043 = vunpack.c.l.b16 %v187
    %v1044 = vunpack.c.h.b16 %v187
    %v1045 = vunpack.c.l.b16 %v188
    %v1046 = vunpack.c.h.b16 %v188
    %v1047 = vunpack.c.l.b16 %v189
    %v1048 = vunpack.c.h.b16 %v189
    %v1049 = vunpack.c.l.b16 %v190
    %v1050 = vunpack.c.h.b16 %v190
    %v1051 = vunpack.c.l.b16 %v191
    %v1052 = vunpack.c.h.b16 %v191
    %v1053 = vunpack.c.l.b16 %v192
    %v1054 = vunpack.c.h.b16 %v192
    %v1055 = vunpack.c.l.b16 %v193
    %v1056 = vunpack.c.h.b16 %v193
    %v1057 = vunpack.c.l.b16 %v194
    %v1058 = vunpack.c.h.b16 %v194
    %v1059 = vunpack.c.l.b16 %v195
    %v1060 = vunpack.c.h.b16 %v195
    %v1061 = vunpack.c.l.b16 %v196
    %v1062 = vunpack.c.h.b16 %v196
    %v1063 = vunpack.c.l.b16 %v197
    %v1064 = vunpack.c.h.b16 %v197
    %v1065 = vunpack.c.l.b16 %v198
    %v1066 = vunpack.c.h.b16 %v198
    %v1067 = vunpack.c.l.b16 %v199
    %v1068 = vunpack.c.h.b16 %v199
    %v1069 = vunpack.c.l.b16 %v200
    %v1070 = vunpack.c.h.b16 %v200
    %v1071 = vunpack.c.l.b16 %v201
    %v1072 = vunpack.c.h.b16 %v201
    %v1073 = vunpack.c.l.b16 %v202
    %v1074 = vunpack.c.h.b16 %v202
    %v1075 = vunpack.c.l.b16 %v203
    %v1076 = vunpack.c.h.b16 %v203
    %v1077 = vunpack.c.l.b16 %v204
    %v1078 = vunpack.c.h.b16 %v204
    %v1079 = vunpack.c.l.b16 %v205
    %v1080 = vunpack.c.h.b16 %v205
    %v1081 = vunpack.c.l.b16 %v206
    %v1082 = vunpack.c.h.b16 %v206
    %v1083 = vunpack.c.l.b16 %v207
    %v1084 = vunpack.c.h.b16 %v207
    %v1085 = vunpack.c.l.b16 %v208
    %v1086 = vunpack.c.h.b16 %v208
    %v1087 = vunpack.c.l.b16 %v209
    %v1088 = vunpack.c.h.b16 %v209
    %v1089 = vunpack.c.l.b16 %v210
    %v1090 = vunpack.c.h.b16 %v210
    %v1091 = vunpack.c.l.b16 %v211
    %v1092 = vunpack.c.h.b16 %v211
    %v1093 = vunpack.c.l.b16 %v212
    %v1094 = vunpack.c.h.b16 %v212
    %v1095 = vunpack.c.l.b16 %v213
    %v1096 = vunpack.c.h.b16 %v213
    %v1097 = vunpack.c.l.b16 %v214
    %v1098 = vunpack.c.h.b16 %v214
    %v1099 = vunpack.c.l.b16 %v215
    %v1100 = vunpack.c.h.b16 %v215
    %v1101 = vunpack.c.l.b16 %v216
    %v1102 = vunpack.c.h.b16 %v216
    %v1103 = vunpack.c.l.b16 %v217
    %v1104 = vunpack.c.h.b16 %v217
    %v1105 = vunpack.c.l.b16 %v218
    %v1106 = vunpack.c.h.b16 %v218
    %v1107 = vunpack.c.l.b16 %v219
    %v1108 = vunpack.c.h.b16 %v219
    %v1109 = vunpack.c.l.b16 %v220
    %v1110 = vunpack.c.h.b16 %v220
    %v1111 = vunpack.c.l.b16 %v221
    %v1112 = vunpack.c.h.b16 %v221
    %v1113 = vunpack.c.l.b16 %v222
    %v1114 = vunpack.c.h.b16 %v222
    %v1115 = vunpack.c.l.b16 %v223
    %v1116 = vunpack.c.h.b16 %v223
    %v1117 = vunpack.c.l.b16 %v224
    %v1118 = vunpack.c.h.b16 %v224
    %v1119 = vunpack.c.l.b16 %v225
    %v1120 = vunpack.c.h.b16 %v225
    %v1121 = vunpack.c.l.b16 %v226
    %v1122 = vunpack.c.h.b16 %v226
    %v1123 = vunpack.c.l.b16 %v227
    %v1124 = vunpack.c.h.b16 %v227
    %v1125 = vunpack.c.l.b16 %v228
    %v1126 = vunpack.c.h.b16 %v228
    %v1127 = vunpack.c.l.b16 %v229
    %v1128 = vunpack.c.h.b16 %v229
    %v1129 = vunpack.c.l.b16 %v230
    %v1130 = vunpack.c.h.b16 %v230
    %v1131 = vunpack.c.l.b16 %v231
    %v1132 = vunpack.c.h.b16 %v231
    %v1133 = vunpack.c.l.b16 %v232
    %v1134 = vunpack.c.h.b16 %v232
    %v1135 = vunpack.c.l.b16 %v233
    %v1136 = vunpack.c.h.b16 %v233
    %v1137 = vunpack.c.l.b16 %v234
    %v1138 = vunpack.c.h.b16 %v234
    %v1139 = vunpack.c.l.b16 %v235
    %v1140 = vunpack.c.h.b16 %v235
    %v1141 = vunpack.c.l.b16 %v236
    %v1142 = vunpack.c.h.b16 %v236
    %v1143 = vunpack.c.l.b16 %v237
    %v1144 = vunpack.c.h.b16 %v237
    %v1145 = vunpack.c.l.b16 %v238
    %v1146 = vunpack.c.h.b16 %v238
    %v1147 = vunpack.c.l.b16 %v239
    %v1148 = vunpack.c.h.b16 %v239
    %v1149 = vunpack.c.l.b16 %v240
    %v1150 = vunpack.c.h.b16 %v240
    %v1151 = vunpack.c.l.b16 %v241
    %v1152 = vunpack.c.h.b16 %v241
    %v1153 = vunpack.c.l.b16 %v242
    %v1154 = vunpack.c.h.b16 %v242
    %v1155 = vunpack.c.l.b16 %v243
    %v1156 = vunpack.c.h.b16 %v243
    %v1157 = vunpack.c.l.b16 %v244
    %v1158 = vunpack.c.h.b16 %v244
    %v1159 = vunpack.c.l.b16 %v245
    %v1160 = vunpack.c.h.b16 %v245
    %v1161 = vunpack.c.l.b16 %v246
    %v1162 = vunpack.c.h.b16 %v246
    %v1163 = vunpack.c.l.b16 %v247
    %v1164 = vunpack.c.h.b16 %v247
    %v1165 = vunpack.c.l.b16 %v248
    %v1166 = vunpack.c.h.b16 %v248
    %v1167 = vunpack.c.l.b16 %v249
    %v1168 = vunpack.c.h.b16 %v249
    %v1169 = vunpack.c.l.b16 %v250
    %v1170 = vunpack.c.h.b16 %v250
    %v1171 = vunpack.c.l.b16 %v251
    %v1172 = vunpack.c.h.b16 %v251
    %v1173 = vunpack.c.l.b16 %v252
    %v1174 = vunpack.c.h.b16 %v252
    %v1175 = vunpack.c.l.b16 %v253
    %v1176 = vunpack.c.h.b16 %v253
    %v1177 = vunpack.c.l.b16 %v254
    %v1178 = vunpack.c.h.b16 %v254
    %v1179 = vunpack.c.l.b16 %v255
    %v1180 = vunpack.c.h.b16 %v255
    %v1181 = vunpack.c.l.b16 %v256
    %v1182 = vunpack.c.h.b16 %v256
    %v1183 = vunpack.c.l.b16 %v257
    %v1184 = vunpack.c.h.b16 %v257
    %v1185 = vunpack.c.l.b16 %v258
    %v1186 = vunpack.c.h.b16 %v258
    %v1187 = vunpack.c.l.b16 %v259
    %v1188 = vunpack.c.h.b16 %v259
    %v1189 = vunpack.c.l.b16 %v260
    %v1190 = vunpack.c.h.b16 %v260
    %v1191 = vunpack.c.l.b16 %v261
    %v1192 = vunpack.c.h.b16 %v261
    %v1193 = vunpack.c.l.b16 %v262
    %v1194 = vunpack.c.h.b16 %v262
    %v1195 = vunpack.c.l.b16 %v263
    %v1196 = vunpack.c.h.b16 %v263
    %v1197 = vunpack.c.l.b16 %v264
    %v1198 = vunpack.c.h.b16 %v264
    %v1199 = vunpack.c.l.b16 %v265
    %v1200 = vunpack.c.h.b16 %v265
    %v1201 = vunpack.c.l.b16 %v266
    %v1202 = vunpack.c.h.b16 %v266
    %v1203 = vunpack.c.l.b16 %v267
    %v1204 = vunpack.c.h.b16 %v267
    %v1205 = vunpack.c.l.b16 %v268
    %v1206 = vunpack.c.h.b16 %v268
    %v1207 = vunpack.c.l.b16 %v269
    %v1208 = vunpack.c.h.b16 %v269
    %v1209 = vunpack.c.l.b16 %v270
    %v1210 = vunpack.c.h.b16 %v270
    %v1211 = vunpack.c.l.b16 %v271
    %v1212 = vunpack.c.h.b16 %v271
    %v1213 = vunpack.c.l.b16 %v272
    %v1214 = vunpack.c.h.b16 %v272
    %v1215 = vunpack.c.l.b16 %v273
    %v1216 = vunpack.c.h.b16 %v273
    %v1217 = vunpack.c.l.b16 %v274
    %v1218 = vunpack.c.h.b16 %v274
    %v1219 = vunpack.c.l.b16 %v275
    %v1220 = vunpack.c.h.b16 %v275
    %v1221 = vunpack.c.l.b16 %v276
    %v1222 = vunpack.c.h.b16 %v276
    %v1223 = vunpack.c.l.b16 %v277
    %v1224 = vunpack.c.h.b16 %v277
    %v1225 = vunpack.c.l.b16 %v278
    %v1226 = vunpack.c.h.b16 %v278
    %v1227 = vunpack.c.l.b16 %v279
    %v1228 = vunpack.c.h.b16 %v279
    %v1229 = vunpack.c.l.b16 %v280
    %v1230 = vunpack.c.h.b16 %v280
    %v1231 = vunpack.c.l.b16 %v281
    %v1232 = vunpack.c.h.b16 %v281
    %v1233 = vunpack.c.l.b16 %v282
    %v1234 = vunpack.c.h.b16 %v282
    %v1235 = vunpack.c.l.b16 %v283
    %v1236 = vunpack.c.h.b16 %v283
    %v1237 = vunpack.c.l.b16 %v284
    %v1238 = vunpack.c.h.b16 %v284
    %v1239 = vunpack.c.l.b16 %v285
    %v1240 = vunpack.c.h.b16 %v285
    %v1241 = vunpack.c.l.b16 %v286
    %v1242 = vunpack.c.h.b16 %v286
    %v1243 = vunpack.c.l.b16 %v287
    %v1244 = vunpack.c.h.b16 %v287
    %v1245 = vunpack.c.l.b16 %v288
    %v1246 = vunpack.c.h.b16 %v288
    %v1247 = vunpack.c.l.b16 %v289
    %v1248 = vunpack.c.h.b16 %v289
    %v1249 = vunpack.c.l.b16 %v290
    %v1250 = vunpack.c.h.b16 %v290
    %v1251 = vunpack.c.l.b16 %v291
    %v1252 = vunpack.c.h.b16 %v291
    %v1253 = vunpack.c.l.b16 %v292
    %v1254 = vunpack.c.h.b16 %v292
    %v1255 = vunpack.c.l.b16 %v293
    %v1256 = vunpack.c.h.b16 %v293
    %v1257 = vunpack.c.l.b16 %v294
    %v1258 = vunpack.c.h.b16 %v294
    %v1259 = vunpack.c.l.b16 %v295
    %v1260 = vunpack.c.h.b16 %v295
    %v1261 = vunpack.c.l.b16 %v296
    %v1262 = vunpack.c.h.b16 %v296
    %v1263 = vunpack.c.l.b16 %v297
    %v1264 = vunpack.c.h.b16 %v297
    %v1265 = vunpack.c.l.b16 %v298
    %v1266 = vunpack.c.h.b16 %v298
    %v1267 = vunpack.c.l.b16 %v299
    %v1268 = vunpack.c.h.b16 %v299
    %v1269 = vunpack.c.l.b16 %v300
    %v1270 = vunpack.c.h.b16 %v300
    %v1271 = vunpack.c.l.b16 %v301
    %v1272 = vunpack.c.h.b16 %v301
    %v1273 = vunpack.c.l.b16 %v302
    %v1274 = vunpack.c.h.b16 %v302
    %v1275 = vunpack.c.l.b16 %v303
    %v1276 = vunpack.c.h.b16 %v303
    %v1277 = vunpack.c.l.b16 %v304
    %v1278 = vunpack.c.h.b16 %v304
    %v1279 = vunpack.c.l.b16 %v305
    %v1280 = vunpack.c.h.b16 %v305
    %v1281 = vunpack.c.l.b16 %v306
    %v1282 = vunpack.c.h.b16 %v306
    %v1283 = vunpack.c.l.b16 %v307
    %v1284 = vunpack.c.h.b16 %v307
    %v1285 = vpack.c.b16 %v1033, %v1029
    %v1286 = vpack.c.b16 %v1034, %v1030
    %v1287 = vpack.c.b16 %v1035, %v1031
    %v1288 = vpack.c.b16 %v1036, %v1032
    %v1289 = vpack.c.b16 %v1041, %v1037
    %v1290 = vpack.c.b16 %v1042, %v1038
    %v1291 = vpack.c.b16 %v1043, %v1039
    %v1292 = vpack.c.b16 %v1044, %v1040
    %v1293 = vpack.c.b16 %v1049, %v1045
    %v1294 = vpack.c.b16 %v1050, %v1046
    %v1295 = vpack.c.b16 %v1051, %v1047
    %v1296 = vpack.c.b16 %v1052, %v1048
    %v1297 = vpack.c.b16 %v1057, %v1053
    %v1298 = vpack.c.b16 %v1058, %v1054
    %v1299 = vpack.c.b16 %v1059, %v1055
    %v1300 = vpack.c.b16 %v1060, %v1056
    %v1301 = vpack.c.b16 %v1065, %v1061
    %v1302 = vpack.c.b16 %v1066, %v1062
    %v1303 = vpack.c.b16 %v1067, %v1063
    %v1304 = vpack.c.b16 %v1068, %v1064
    %v1305 = vpack.c.b16 %v1073, %v1069
    %v1306 = vpack.c.b16 %v1074, %v1070
    %v1307 = vpack.c.b16 %v1075, %v1071
    %v1308 = vpack.c.b16 %v1076, %v1072
    %v1309 = vpack.c.b16 %v1081, %v1077
    %v1310 = vpack.c.b16 %v1082, %v1078
    %v1311 = vpack.c.b16 %v1083, %v1079
    %v1312 = vpack.c.b16 %v1084, %v1080
    %v1313 = vpack.c.b16 %v1089, %v1085
    %v1314 = vpack.c.b16 %v1090, %v1086
    %v1315 = vpack.c.b16 %v1091, %v1087
    %v1316 = vpack.c.b16 %v1092, %v1088
    %v1317 = vpack.c.b16 %v1097, %v1093
    %v1318 = vpack.c.b16 %v1098, %v1094
    %v1319 = vpack.c.b16 %v1099, %v1095
    %v1320 = vpack.c.b16 %v1100, %v1096
    %v1321 = vpack.c.b16 %v1105, %v1101
    %v1322 = vpack.c.b16 %v1106, %v1102
    %v1323 = vpack.c.b16 %v1107, %v1103
    %v1324 = vpack.c.b16 %v1108, %v1104
    %v1325 = vpack.c.b16 %v1113, %v1109
    %v1326 = vpack.c.b16 %v1114, %v1110
    %v1327 = vpack.c.b16 %v1115, %v1111
    %v1328 = vpack.c.b16 %v1116, %v1112
    %v1329 = vpack.c.b16 %v1121, %v1117
    %v1330 = vpack.c.b16 %v1122, %v1118
    %v1331 = vpack.c.b16 %v1123, %v1119
    %v1332 = vpack.c.b16 %v1124, %v1120
    %v1333 = vpack.c.b16 %v1129, %v1125
    %v1334 = vpack.c.b16 %v1130, %v1126
    %v1335 = vpack.c.b16 %v1131, %v1127
    %v1336 = vpack.c.b16 %v1132, %v1128
    %v1337 = vpack.c.b16 %v1137, %v1133
    %v1338 = vpack.c.b16 %v1138, %v1134
    %v1339 = vpack.c.b16 %v1139, %v1135
    %v1340 = vpack.c.b16 %v1140, %v1136
    %v1341 = vpack.c.b16 %v1145, %v1141
    %v1342 = vpack.c.b16 %v1146, %v1142
    %v1343 = vpack.c.b16 %v1147, %v1143
    %v1344 = vpack.c.b16 %v1148, %v1144
    %v1345 = vpack.c.b16 %v1153, %v1149
    %v1346 = vpack.c.b16 %v1154, %v1150
    %v1347 = vpack.c.b16 %v1155, %v1151
    %v1348 = vpack.c.b16 %v1156, %v1152
    %v1349 = vpack.c.b16 %v1161, %v1157
    %v1350 = vpack.c.b16 %v1162, %v1158
    %v1351 = vpack.c.b16 %v1163, %v1159
    %v1352 = vpack.c.b16 %v1164, %v1160
    %v1353 = vpack.c.b16 %v1169, %v1165
    %v1354 = vpack.c.b16 %v1170, %v1166
    %v1355 = vpack.c.b16 %v1171, %v1167
    %v1356 = vpack.c.b16 %v1172, %v1168
    %v1357 = vpack.c.b16 %v1177, %v1173
    %v1358 = vpack.c.b16 %v1178, %v1174
    %v1359 = vpack.c.b16 %v1179, %v1175
    %v1360 = vpack.c.b16 %v1180, %v1176
    %v1361 = vpack.c.b16 %v1185, %v1181
    %v1362 = vpack.c.b16 %v1186, %v1182
    %v1363 = vpack.c.b16 %v1187, %v1183
    %v1364 = vpack.c.b16 %v1188, %v1184
    %v1365 = vpack.c.b16 %v1193, %v1189
    %v1366 = vpack.c.b16 %v1194, %v1190
    %v1367 = vpack.c.b16 %v1195, %v1191
    %v1368 = vpack.c.b16 %v1196, %v1192
    %v1369 = vpack.c.b16 %v1201, %v1197
    %v1370 = vpack.c.b16 %v1202, %v1198
    %v1371 = vpack.c.b16 %v1203, %v1199
    %v1372 = vpack.c.b16 %v1204, %v1200
    %v1373 = vpack.c.b16 %v1209, %v1205
    %v1374 = vpack.c.b16 %v1210, %v1206
    %v1375 = vpack.c.b16 %v1211, %v1207
    %v1376 = vpack.c.b16 %v1212, %v1208
    %v1377 = vpack.c.b16 %v1217, %v1213
    %v1378 = vpack.c.b16 %v1218, %v1214
    %v1379 = vpack.c.b16 %v1219, %v1215
    %v1380 = vpack.c.b16 %v1220, %v1216
    %v1381 = vpack.c.b16 %v1225, %v1221
    %v1382 = vpack.c.b16 %v1226, %v1222
    %v1383 = vpack.c.b16 %v1227, %v1223
    %v1384 = vpack.c.b16 %v1228, %v1224
    %v1385 = vpack.c.b16 %v1233, %v1229
    %v1386 = vpack.c.b16 %v1234, %v1230
    %v1387 = vpack.c.b16 %v1235, %v1231
    %v1388 = vpack.c.b16 %v1236, %v1232
    %v1389 = vpack.c.b16 %v1241, %v1237
    %v1390 = vpack.c.b16 %v1242, %v1238
    %v1391 = vpack.c.b16 %v1243, %v1239
    %v1392 = vpack.c.b16 %v1244, %v1240
    %v1393 = vpack.c.b16 %v1249, %v1245
    %v1394 = vpack.c.b16 %v1250, %v1246
    %v1395 = vpack.c.b16 %v1251, %v1247
    %v1396 = vpack.c.b16 %v1252, %v1248
    %v1397 = vpack.c.b16 %v1257, %v1253
    %v1398 = vpack.c.b16 %v1258, %v1254
    %v1399 = vpack.c.b16 %v1259, %v1255
    %v1400 = vpack.c.b16 %v1260, %v1256
    %v1401 = vpack.c.b16 %v1265, %v1261
    %v1402 = vpack.c.b16 %v1266, %v1262
    %v1403 = vpack.c.b16 %v1267, %v1263
    %v1404 = vpack.c.b16 %v1268, %v1264
    %v1405 = vpack.c.b16 %v1273, %v1269
    %v1406 = vpack.c.b16 %v1274, %v1270
    %v1407 = vpack.c.b16 %v1275, %v1271
    %v1408 = vpack.c.b16 %v1276, %v1272
    %v1409 = vpack.c.b16 %v1281, %v1277
    %v1410 = vpack.c.b16 %v1282, %v1278
    %v1411 = vpack.c.b16 %v1283, %v1279
    %v1412 = vpack.c.b16 %v1284, %v1280
    %1541 = vmatprep.subr.bf16.mxu0 0
    %1542 = vmatpush1.bf16.msra.mxu0 %v860
    %1543 = vmatprep.subr.bf16.mxu0 0
    %1544 = vmatpush1.bf16.msra.mxu0 %v859
    %1545 = vmatprep.subr.bf16.mxu0 0
    %1546 = vmatpush1.bf16.msra.mxu0 %v858
    %1547 = vmatprep.subr.bf16.mxu0 0
    %1548 = vmatpush1.bf16.msra.mxu0 %v857
    %1549 = vmatprep.subr.bf16.mxu0 0
    %1550 = vmatpush1.bf16.msra.mxu0 %v856
    %1551 = vmatprep.subr.bf16.mxu0 0
    %1552 = vmatpush1.bf16.msra.mxu0 %v855
    %1553 = vmatprep.subr.bf16.mxu0 0
    %1554 = vmatpush1.bf16.msra.mxu0 %v854
    %1555 = vmatprep.subr.bf16.mxu0 0
    %1556 = vmatpush1.bf16.msra.mxu0 %v853
    %1557 = vmatprep.subr.bf16.mxu0 0
    %1558 = vmatpush2.bf16.msra.mxu0 %v868
    %1559 = vmatprep.subr.bf16.mxu0 0
    %1560 = vmatpush2.bf16.msra.mxu0 %v867
    %1561 = vmatprep.subr.bf16.mxu0 0
    %1562 = vmatpush2.bf16.msra.mxu0 %v866
    %1563 = vmatprep.subr.bf16.mxu0 0
    %1564 = vmatpush2.bf16.msra.mxu0 %v865
    %1565 = vmatprep.subr.bf16.mxu0 0
    %1566 = vmatpush2.bf16.msra.mxu0 %v864
    %1567 = vmatprep.subr.bf16.mxu0 0
    %1568 = vmatpush2.bf16.msra.mxu0 %v863
    %1569 = vmatprep.subr.bf16.mxu0 0
    %1570 = vmatpush2.bf16.msra.mxu0 %v862
    %1571 = vmatprep.subr.bf16.mxu0 0
    %1572 = vmatpush2.bf16.msra.mxu0 %v861
    %1573 = vmatprep.mubr.bf16.mxu0 %v1286
    %1574 = vmatmul.mubr.bf16.gmra.mxu0 %v1285
    %v1575 = vpop.f32.mrf.mxu0
    %v1576 = vadd.f32 0.0, %v1575
    %v1577 = vpop.f32.mrf.mxu0
    %v1578 = vpop.f32.mrf.mxu0
    %v1579 = vadd.f32 0.0, %v1578
    %v1580 = vpop.f32.mrf.mxu0
    %1581 = vmatprep.mubr.bf16.mxu0 %v1290
    %1582 = vmatmul.mubr.bf16.gmra.mxu0 %v1289
    %v1583 = vpop.f32.mrf.mxu0
    %v1584 = vadd.f32 0.0, %v1583
    %v1585 = vpop.f32.mrf.mxu0
    %v1586 = vpop.f32.mrf.mxu0
    %v1587 = vadd.f32 0.0, %v1586
    %v1588 = vpop.f32.mrf.mxu0
    %1589 = vmatprep.mubr.bf16.mxu0 %v1294
    %1590 = vmatmul.mubr.bf16.gmra.mxu0 %v1293
    %v1591 = vpop.f32.mrf.mxu0
    %v1592 = vadd.f32 0.0, %v1591
    %v1593 = vpop.f32.mrf.mxu0
    %v1594 = vpop.f32.mrf.mxu0
    %v1595 = vadd.f32 0.0, %v1594
    %v1596 = vpop.f32.mrf.mxu0
    %1597 = vmatprep.mubr.bf16.mxu0 %v1298
    %1598 = vmatmul.mubr.bf16.gmra.mxu0 %v1297
    %v1599 = vpop.f32.mrf.mxu0
    %v1600 = vadd.f32 0.0, %v1599
    %v1601 = vpop.f32.mrf.mxu0
    %v1602 = vpop.f32.mrf.mxu0
    %v1603 = vadd.f32 0.0, %v1602
    %v1604 = vpop.f32.mrf.mxu0
    %1605 = vmatprep.mubr.bf16.mxu0 %v1302
    %1606 = vmatmul.mubr.bf16.gmra.mxu0 %v1301
    %v1607 = vpop.f32.mrf.mxu0
    %v1608 = vadd.f32 0.0, %v1607
    %v1609 = vpop.f32.mrf.mxu0
    %v1610 = vpop.f32.mrf.mxu0
    %v1611 = vadd.f32 0.0, %v1610
    %v1612 = vpop.f32.mrf.mxu0
    %1613 = vmatprep.mubr.bf16.mxu0 %v1306
    %1614 = vmatmul.mubr.bf16.gmra.mxu0 %v1305
    %v1615 = vpop.f32.mrf.mxu0
    %v1616 = vadd.f32 0.0, %v1615
    %v1617 = vpop.f32.mrf.mxu0
    %v1618 = vpop.f32.mrf.mxu0
    %v1619 = vadd.f32 0.0, %v1618
    %v1620 = vpop.f32.mrf.mxu0
    %1621 = vmatprep.mubr.bf16.mxu0 %v1310
    %1622 = vmatmul.mubr.bf16.gmra.mxu0 %v1309
    %v1623 = vpop.f32.mrf.mxu0
    %v1624 = vadd.f32 0.0, %v1623
    %v1625 = vpop.f32.mrf.mxu0
    %v1626 = vpop.f32.mrf.mxu0
    %v1627 = vadd.f32 0.0, %v1626
    %v1628 = vpop.f32.mrf.mxu0
    %1629 = vmatprep.mubr.bf16.mxu0 %v1314
    %1630 = vmatmul.mubr.bf16.gmra.mxu0 %v1313
    %v1631 = vpop.f32.mrf.mxu0
    %v1632 = vadd.f32 0.0, %v1631
    %v1633 = vpop.f32.mrf.mxu0
    %v1634 = vpop.f32.mrf.mxu0
    %v1635 = vadd.f32 0.0, %v1634
    %v1636 = vpop.f32.mrf.mxu0
    %1637 = vmatprep.mubr.bf16.mxu0 %v1318
    %1638 = vmatmul.mubr.bf16.gmra.mxu0 %v1317
    %v1639 = vpop.f32.mrf.mxu0
    %v1640 = vadd.f32 0.0, %v1639
    %v1641 = vpop.f32.mrf.mxu0
    %v1642 = vpop.f32.mrf.mxu0
    %v1643 = vadd.f32 0.0, %v1642
    %v1644 = vpop.f32.mrf.mxu0
    %1645 = vmatprep.mubr.bf16.mxu0 %v1322
    %1646 = vmatmul.mubr.bf16.gmra.mxu0 %v1321
    %v1647 = vpop.f32.mrf.mxu0
    %v1648 = vadd.f32 0.0, %v1647
    %v1649 = vpop.f32.mrf.mxu0
    %v1650 = vpop.f32.mrf.mxu0
    %v1651 = vadd.f32 0.0, %v1650
    %v1652 = vpop.f32.mrf.mxu0
    %1653 = vmatprep.mubr.bf16.mxu0 %v1326
    %1654 = vmatmul.mubr.bf16.gmra.mxu0 %v1325
    %v1655 = vpop.f32.mrf.mxu0
    %v1656 = vadd.f32 0.0, %v1655
    %v1657 = vpop.f32.mrf.mxu0
    %v1658 = vpop.f32.mrf.mxu0
    %v1659 = vadd.f32 0.0, %v1658
    %v1660 = vpop.f32.mrf.mxu0
    %1661 = vmatprep.mubr.bf16.mxu0 %v1330
    %1662 = vmatmul.mubr.bf16.gmra.mxu0 %v1329
    %v1663 = vpop.f32.mrf.mxu0
    %v1664 = vadd.f32 0.0, %v1663
    %v1665 = vpop.f32.mrf.mxu0
    %v1666 = vpop.f32.mrf.mxu0
    %v1667 = vadd.f32 0.0, %v1666
    %v1668 = vpop.f32.mrf.mxu0
    %1669 = vmatprep.mubr.bf16.mxu0 %v1334
    %1670 = vmatmul.mubr.bf16.gmra.mxu0 %v1333
    %v1671 = vpop.f32.mrf.mxu0
    %v1672 = vadd.f32 0.0, %v1671
    %v1673 = vpop.f32.mrf.mxu0
    %v1674 = vpop.f32.mrf.mxu0
    %v1675 = vadd.f32 0.0, %v1674
    %v1676 = vpop.f32.mrf.mxu0
    %1677 = vmatprep.mubr.bf16.mxu0 %v1338
    %1678 = vmatmul.mubr.bf16.gmra.mxu0 %v1337
    %v1679 = vpop.f32.mrf.mxu0
    %v1680 = vadd.f32 0.0, %v1679
    %v1681 = vpop.f32.mrf.mxu0
    %v1682 = vpop.f32.mrf.mxu0
    %v1683 = vadd.f32 0.0, %v1682
    %v1684 = vpop.f32.mrf.mxu0
    %1685 = vmatprep.mubr.bf16.mxu0 %v1342
    %1686 = vmatmul.mubr.bf16.gmra.mxu0 %v1341
    %v1687 = vpop.f32.mrf.mxu0
    %v1688 = vadd.f32 0.0, %v1687
    %v1689 = vpop.f32.mrf.mxu0
    %v1690 = vpop.f32.mrf.mxu0
    %v1691 = vadd.f32 0.0, %v1690
    %v1692 = vpop.f32.mrf.mxu0
    %1693 = vmatprep.mubr.bf16.mxu0 %v1346
    %1694 = vmatmul.mubr.bf16.gmra.mxu0 %v1345
    %v1695 = vpop.f32.mrf.mxu0
    %v1696 = vadd.f32 0.0, %v1695
    %v1697 = vpop.f32.mrf.mxu0
    %v1698 = vpop.f32.mrf.mxu0
    %v1699 = vadd.f32 0.0, %v1698
    %v1700 = vpop.f32.mrf.mxu0
    %1701 = vmatprep.mubr.bf16.mxu0 %v1350
    %1702 = vmatmul.mubr.bf16.gmra.mxu0 %v1349
    %v1703 = vpop.f32.mrf.mxu0
    %v1704 = vadd.f32 0.0, %v1703
    %v1705 = vpop.f32.mrf.mxu0
    %v1706 = vpop.f32.mrf.mxu0
    %v1707 = vadd.f32 0.0, %v1706
    %v1708 = vpop.f32.mrf.mxu0
    %1709 = vmatprep.mubr.bf16.mxu0 %v1354
    %1710 = vmatmul.mubr.bf16.gmra.mxu0 %v1353
    %v1711 = vpop.f32.mrf.mxu0
    %v1712 = vadd.f32 0.0, %v1711
    %v1713 = vpop.f32.mrf.mxu0
    %v1714 = vpop.f32.mrf.mxu0
    %v1715 = vadd.f32 0.0, %v1714
    %v1716 = vpop.f32.mrf.mxu0
    %1717 = vmatprep.mubr.bf16.mxu0 %v1358
    %1718 = vmatmul.mubr.bf16.gmra.mxu0 %v1357
    %v1719 = vpop.f32.mrf.mxu0
    %v1720 = vadd.f32 0.0, %v1719
    %v1721 = vpop.f32.mrf.mxu0
    %v1722 = vpop.f32.mrf.mxu0
    %v1723 = vadd.f32 0.0, %v1722
    %v1724 = vpop.f32.mrf.mxu0
    %1725 = vmatprep.mubr.bf16.mxu0 %v1362
    %1726 = vmatmul.mubr.bf16.gmra.mxu0 %v1361
    %v1727 = vpop.f32.mrf.mxu0
    %v1728 = vadd.f32 0.0, %v1727
    %v1729 = vpop.f32.mrf.mxu0
    %v1730 = vpop.f32.mrf.mxu0
    %v1731 = vadd.f32 0.0, %v1730
    %v1732 = vpop.f32.mrf.mxu0
    %1733 = vmatprep.mubr.bf16.mxu0 %v1366
    %1734 = vmatmul.mubr.bf16.gmra.mxu0 %v1365
    %v1735 = vpop.f32.mrf.mxu0
    %v1736 = vadd.f32 0.0, %v1735
    %v1737 = vpop.f32.mrf.mxu0
    %v1738 = vpop.f32.mrf.mxu0
    %v1739 = vadd.f32 0.0, %v1738
    %v1740 = vpop.f32.mrf.mxu0
    %1741 = vmatprep.mubr.bf16.mxu0 %v1370
    %1742 = vmatmul.mubr.bf16.gmra.mxu0 %v1369
    %v1743 = vpop.f32.mrf.mxu0
    %v1744 = vadd.f32 0.0, %v1743
    %v1745 = vpop.f32.mrf.mxu0
    %v1746 = vpop.f32.mrf.mxu0
    %v1747 = vadd.f32 0.0, %v1746
    %v1748 = vpop.f32.mrf.mxu0
    %1749 = vmatprep.mubr.bf16.mxu0 %v1374
    %1750 = vmatmul.mubr.bf16.gmra.mxu0 %v1373
    %v1751 = vpop.f32.mrf.mxu0
    %v1752 = vadd.f32 0.0, %v1751
    %v1753 = vpop.f32.mrf.mxu0
    %v1754 = vpop.f32.mrf.mxu0
    %v1755 = vadd.f32 0.0, %v1754
    %v1756 = vpop.f32.mrf.mxu0
    %1757 = vmatprep.mubr.bf16.mxu0 %v1378
    %1758 = vmatmul.mubr.bf16.gmra.mxu0 %v1377
    %v1759 = vpop.f32.mrf.mxu0
    %v1760 = vadd.f32 0.0, %v1759
    %v1761 = vpop.f32.mrf.mxu0
    %v1762 = vpop.f32.mrf.mxu0
    %v1763 = vadd.f32 0.0, %v1762
    %v1764 = vpop.f32.mrf.mxu0
    %1765 = vmatprep.mubr.bf16.mxu0 %v1382
    %1766 = vmatmul.mubr.bf16.gmra.mxu0 %v1381
    %v1767 = vpop.f32.mrf.mxu0
    %v1768 = vadd.f32 0.0, %v1767
    %v1769 = vpop.f32.mrf.mxu0
    %v1770 = vpop.f32.mrf.mxu0
    %v1771 = vadd.f32 0.0, %v1770
    %v1772 = vpop.f32.mrf.mxu0
    %1773 = vmatprep.mubr.bf16.mxu0 %v1386
    %1774 = vmatmul.mubr.bf16.gmra.mxu0 %v1385
    %v1775 = vpop.f32.mrf.mxu0
    %v1776 = vadd.f32 0.0, %v1775
    %v1777 = vpop.f32.mrf.mxu0
    %v1778 = vpop.f32.mrf.mxu0
    %v1779 = vadd.f32 0.0, %v1778
    %v1780 = vpop.f32.mrf.mxu0
    %1781 = vmatprep.mubr.bf16.mxu0 %v1390
    %1782 = vmatmul.mubr.bf16.gmra.mxu0 %v1389
    %v1783 = vpop.f32.mrf.mxu0
    %v1784 = vadd.f32 0.0, %v1783
    %v1785 = vpop.f32.mrf.mxu0
    %v1786 = vpop.f32.mrf.mxu0
    %v1787 = vadd.f32 0.0, %v1786
    %v1788 = vpop.f32.mrf.mxu0
    %1789 = vmatprep.mubr.bf16.mxu0 %v1394
    %1790 = vmatmul.mubr.bf16.gmra.mxu0 %v1393
    %v1791 = vpop.f32.mrf.mxu0
    %v1792 = vadd.f32 0.0, %v1791
    %v1793 = vpop.f32.mrf.mxu0
    %v1794 = vpop.f32.mrf.mxu0
    %v1795 = vadd.f32 0.0, %v1794
    %v1796 = vpop.f32.mrf.mxu0
    %1797 = vmatprep.mubr.bf16.mxu0 %v1398
    %1798 = vmatmul.mubr.bf16.gmra.mxu0 %v1397
    %v1799 = vpop.f32.mrf.mxu0
    %v1800 = vadd.f32 0.0, %v1799
    %v1801 = vpop.f32.mrf.mxu0
    %v1802 = vpop.f32.mrf.mxu0
    %v1803 = vadd.f32 0.0, %v1802
    %v1804 = vpop.f32.mrf.mxu0
    %1805 = vmatprep.mubr.bf16.mxu0 %v1402
    %1806 = vmatmul.mubr.bf16.gmra.mxu0 %v1401
    %v1807 = vpop.f32.mrf.mxu0
    %v1808 = vadd.f32 0.0, %v1807
    %v1809 = vpop.f32.mrf.mxu0
    %v1810 = vpop.f32.mrf.mxu0
    %v1811 = vadd.f32 0.0, %v1810
    %v1812 = vpop.f32.mrf.mxu0
    %1813 = vmatprep.mubr.bf16.mxu0 %v1406
    %1814 = vmatmul.mubr.bf16.gmra.mxu0 %v1405
    %v1815 = vpop.f32.mrf.mxu0
    %v1816 = vadd.f32 0.0, %v1815
    %v1817 = vpop.f32.mrf.mxu0
    %v1818 = vpop.f32.mrf.mxu0
    %v1819 = vadd.f32 0.0, %v1818
    %v1820 = vpop.f32.mrf.mxu0
    %1821 = vmatprep.mubr.bf16.mxu0 %v1410
    %1822 = vmatmul.mubr.bf16.gmra.mxu0 %v1409
    %v1823 = vpop.f32.mrf.mxu0
    %v1824 = vadd.f32 0.0, %v1823
    %v1825 = vpop.f32.mrf.mxu0
    %v1826 = vpop.f32.mrf.mxu0
    %v1827 = vadd.f32 0.0, %v1826
    %v1828 = vpop.f32.mrf.mxu0
    %1829 = vdwg.mxu0
    %1830 = vmatprep.subr.bf16.mxu0 0
    %1831 = vmatpush1.bf16.msra.mxu0 %v876
    %1832 = vmatprep.subr.bf16.mxu0 0
    %1833 = vmatpush1.bf16.msra.mxu0 %v875
    %1834 = vmatprep.subr.bf16.mxu0 0
    %1835 = vmatpush1.bf16.msra.mxu0 %v874
    %1836 = vmatprep.subr.bf16.mxu0 0
    %1837 = vmatpush1.bf16.msra.mxu0 %v873
    %1838 = vmatprep.subr.bf16.mxu0 0
    %1839 = vmatpush1.bf16.msra.mxu0 %v872
    %1840 = vmatprep.subr.bf16.mxu0 0
    %1841 = vmatpush1.bf16.msra.mxu0 %v871
    %1842 = vmatprep.subr.bf16.mxu0 0
    %1843 = vmatpush1.bf16.msra.mxu0 %v870
    %1844 = vmatprep.subr.bf16.mxu0 0
    %1845 = vmatpush1.bf16.msra.mxu0 %v869
    %1846 = vmatprep.subr.bf16.mxu0 0
    %1847 = vmatpush2.bf16.msra.mxu0 %v884
    %1848 = vmatprep.subr.bf16.mxu0 0
    %1849 = vmatpush2.bf16.msra.mxu0 %v883
    %1850 = vmatprep.subr.bf16.mxu0 0
    %1851 = vmatpush2.bf16.msra.mxu0 %v882
    %1852 = vmatprep.subr.bf16.mxu0 0
    %1853 = vmatpush2.bf16.msra.mxu0 %v881
    %1854 = vmatprep.subr.bf16.mxu0 0
    %1855 = vmatpush2.bf16.msra.mxu0 %v880
    %1856 = vmatprep.subr.bf16.mxu0 0
    %1857 = vmatpush2.bf16.msra.mxu0 %v879
    %1858 = vmatprep.subr.bf16.mxu0 0
    %1859 = vmatpush2.bf16.msra.mxu0 %v878
    %1860 = vmatprep.subr.bf16.mxu0 0
    %1861 = vmatpush2.bf16.msra.mxu0 %v877
    %1862 = vmatprep.mubr.bf16.mxu0 %v1288
    %1863 = vmatmul.mubr.bf16.gmra.mxu0 %v1287
    %v1864 = vpop.f32.mrf.mxu0
    %v1865 = vadd.f32 %v1576, %v1864
    %v1866 = vpop.f32.mrf.mxu0
    %v1867 = vpop.f32.mrf.mxu0
    %v1868 = vadd.f32 %v1579, %v1867
    %v1869 = vpop.f32.mrf.mxu0
    %1870 = vmatprep.mubr.bf16.mxu0 %v1292
    %1871 = vmatmul.mubr.bf16.gmra.mxu0 %v1291
    %v1872 = vpop.f32.mrf.mxu0
    %v1873 = vadd.f32 %v1584, %v1872
    %v1874 = vpop.f32.mrf.mxu0
    %v1875 = vpop.f32.mrf.mxu0
    %v1876 = vadd.f32 %v1587, %v1875
    %v1877 = vpop.f32.mrf.mxu0
    %1878 = vmatprep.mubr.bf16.mxu0 %v1296
    %1879 = vmatmul.mubr.bf16.gmra.mxu0 %v1295
    %v1880 = vpop.f32.mrf.mxu0
    %v1881 = vadd.f32 %v1592, %v1880
    %v1882 = vpop.f32.mrf.mxu0
    %v1883 = vpop.f32.mrf.mxu0
    %v1884 = vadd.f32 %v1595, %v1883
    %v1885 = vpop.f32.mrf.mxu0
    %1886 = vmatprep.mubr.bf16.mxu0 %v1300
    %1887 = vmatmul.mubr.bf16.gmra.mxu0 %v1299
    %v1888 = vpop.f32.mrf.mxu0
    %v1889 = vadd.f32 %v1600, %v1888
    %v1890 = vpop.f32.mrf.mxu0
    %v1891 = vpop.f32.mrf.mxu0
    %v1892 = vadd.f32 %v1603, %v1891
    %v1893 = vpop.f32.mrf.mxu0
    %1894 = vmatprep.mubr.bf16.mxu0 %v1304
    %1895 = vmatmul.mubr.bf16.gmra.mxu0 %v1303
    %v1896 = vpop.f32.mrf.mxu0
    %v1897 = vadd.f32 %v1608, %v1896
    %v1898 = vpop.f32.mrf.mxu0
    %v1899 = vpop.f32.mrf.mxu0
    %v1900 = vadd.f32 %v1611, %v1899
    %v1901 = vpop.f32.mrf.mxu0
    %1902 = vmatprep.mubr.bf16.mxu0 %v1308
    %1903 = vmatmul.mubr.bf16.gmra.mxu0 %v1307
    %v1904 = vpop.f32.mrf.mxu0
    %v1905 = vadd.f32 %v1616, %v1904
    %v1906 = vpop.f32.mrf.mxu0
    %v1907 = vpop.f32.mrf.mxu0
    %v1908 = vadd.f32 %v1619, %v1907
    %v1909 = vpop.f32.mrf.mxu0
    %1910 = vmatprep.mubr.bf16.mxu0 %v1312
    %1911 = vmatmul.mubr.bf16.gmra.mxu0 %v1311
    %v1912 = vpop.f32.mrf.mxu0
    %v1913 = vadd.f32 %v1624, %v1912
    %v1914 = vpop.f32.mrf.mxu0
    %v1915 = vpop.f32.mrf.mxu0
    %v1916 = vadd.f32 %v1627, %v1915
    %v1917 = vpop.f32.mrf.mxu0
    %1918 = vmatprep.mubr.bf16.mxu0 %v1316
    %1919 = vmatmul.mubr.bf16.gmra.mxu0 %v1315
    %v1920 = vpop.f32.mrf.mxu0
    %v1921 = vadd.f32 %v1632, %v1920
    %v1922 = vpop.f32.mrf.mxu0
    %v1923 = vpop.f32.mrf.mxu0
    %v1924 = vadd.f32 %v1635, %v1923
    %v1925 = vpop.f32.mrf.mxu0
    %1926 = vmatprep.mubr.bf16.mxu0 %v1320
    %1927 = vmatmul.mubr.bf16.gmra.mxu0 %v1319
    %v1928 = vpop.f32.mrf.mxu0
    %v1929 = vadd.f32 %v1640, %v1928
    %v1930 = vpop.f32.mrf.mxu0
    %v1931 = vpop.f32.mrf.mxu0
    %v1932 = vadd.f32 %v1643, %v1931
    %v1933 = vpop.f32.mrf.mxu0
    %1934 = vmatprep.mubr.bf16.mxu0 %v1324
    %1935 = vmatmul.mubr.bf16.gmra.mxu0 %v1323
    %v1936 = vpop.f32.mrf.mxu0
    %v1937 = vadd.f32 %v1648, %v1936
    %v1938 = vpop.f32.mrf.mxu0
    %v1939 = vpop.f32.mrf.mxu0
    %v1940 = vadd.f32 %v1651, %v1939
    %v1941 = vpop.f32.mrf.mxu0
    %1942 = vmatprep.mubr.bf16.mxu0 %v1328
    %1943 = vmatmul.mubr.bf16.gmra.mxu0 %v1327
    %v1944 = vpop.f32.mrf.mxu0
    %v1945 = vadd.f32 %v1656, %v1944
    %v1946 = vpop.f32.mrf.mxu0
    %v1947 = vpop.f32.mrf.mxu0
    %v1948 = vadd.f32 %v1659, %v1947
    %v1949 = vpop.f32.mrf.mxu0
    %1950 = vmatprep.mubr.bf16.mxu0 %v1332
    %1951 = vmatmul.mubr.bf16.gmra.mxu0 %v1331
    %v1952 = vpop.f32.mrf.mxu0
    %v1953 = vadd.f32 %v1664, %v1952
    %v1954 = vpop.f32.mrf.mxu0
    %v1955 = vpop.f32.mrf.mxu0
    %v1956 = vadd.f32 %v1667, %v1955
    %v1957 = vpop.f32.mrf.mxu0
    %1958 = vmatprep.mubr.bf16.mxu0 %v1336
    %1959 = vmatmul.mubr.bf16.gmra.mxu0 %v1335
    %v1960 = vpop.f32.mrf.mxu0
    %v1961 = vadd.f32 %v1672, %v1960
    %v1962 = vpop.f32.mrf.mxu0
    %v1963 = vpop.f32.mrf.mxu0
    %v1964 = vadd.f32 %v1675, %v1963
    %v1965 = vpop.f32.mrf.mxu0
    %1966 = vmatprep.mubr.bf16.mxu0 %v1340
    %1967 = vmatmul.mubr.bf16.gmra.mxu0 %v1339
    %v1968 = vpop.f32.mrf.mxu0
    %v1969 = vadd.f32 %v1680, %v1968
    %v1970 = vpop.f32.mrf.mxu0
    %v1971 = vpop.f32.mrf.mxu0
    %v1972 = vadd.f32 %v1683, %v1971
    %v1973 = vpop.f32.mrf.mxu0
    %1974 = vmatprep.mubr.bf16.mxu0 %v1344
    %1975 = vmatmul.mubr.bf16.gmra.mxu0 %v1343
    %v1976 = vpop.f32.mrf.mxu0
    %v1977 = vadd.f32 %v1688, %v1976
    %v1978 = vpop.f32.mrf.mxu0
    %v1979 = vpop.f32.mrf.mxu0
    %v1980 = vadd.f32 %v1691, %v1979
    %v1981 = vpop.f32.mrf.mxu0
    %1982 = vmatprep.mubr.bf16.mxu0 %v1348
    %1983 = vmatmul.mubr.bf16.gmra.mxu0 %v1347
    %v1984 = vpop.f32.mrf.mxu0
    %v1985 = vadd.f32 %v1696, %v1984
    %v1986 = vpop.f32.mrf.mxu0
    %v1987 = vpop.f32.mrf.mxu0
    %v1988 = vadd.f32 %v1699, %v1987
    %v1989 = vpop.f32.mrf.mxu0
    %1990 = vmatprep.mubr.bf16.mxu0 %v1352
    %1991 = vmatmul.mubr.bf16.gmra.mxu0 %v1351
    %v1992 = vpop.f32.mrf.mxu0
    %v1993 = vadd.f32 %v1704, %v1992
    %v1994 = vpop.f32.mrf.mxu0
    %v1995 = vpop.f32.mrf.mxu0
    %v1996 = vadd.f32 %v1707, %v1995
    %v1997 = vpop.f32.mrf.mxu0
    %1998 = vmatprep.mubr.bf16.mxu0 %v1356
    %1999 = vmatmul.mubr.bf16.gmra.mxu0 %v1355
    %v2000 = vpop.f32.mrf.mxu0
    %v2001 = vadd.f32 %v1712, %v2000
    %v2002 = vpop.f32.mrf.mxu0
    %v2003 = vpop.f32.mrf.mxu0
    %v2004 = vadd.f32 %v1715, %v2003
    %v2005 = vpop.f32.mrf.mxu0
    %2006 = vmatprep.mubr.bf16.mxu0 %v1360
    %2007 = vmatmul.mubr.bf16.gmra.mxu0 %v1359
    %v2008 = vpop.f32.mrf.mxu0
    %v2009 = vadd.f32 %v1720, %v2008
    %v2010 = vpop.f32.mrf.mxu0
    %v2011 = vpop.f32.mrf.mxu0
    %v2012 = vadd.f32 %v1723, %v2011
    %v2013 = vpop.f32.mrf.mxu0
    %2014 = vmatprep.mubr.bf16.mxu0 %v1364
    %2015 = vmatmul.mubr.bf16.gmra.mxu0 %v1363
    %v2016 = vpop.f32.mrf.mxu0
    %v2017 = vadd.f32 %v1728, %v2016
    %v2018 = vpop.f32.mrf.mxu0
    %v2019 = vpop.f32.mrf.mxu0
    %v2020 = vadd.f32 %v1731, %v2019
    %v2021 = vpop.f32.mrf.mxu0
    %2022 = vmatprep.mubr.bf16.mxu0 %v1368
    %2023 = vmatmul.mubr.bf16.gmra.mxu0 %v1367
    %v2024 = vpop.f32.mrf.mxu0
    %v2025 = vadd.f32 %v1736, %v2024
    %v2026 = vpop.f32.mrf.mxu0
    %v2027 = vpop.f32.mrf.mxu0
    %v2028 = vadd.f32 %v1739, %v2027
    %v2029 = vpop.f32.mrf.mxu0
    %2030 = vmatprep.mubr.bf16.mxu0 %v1372
    %2031 = vmatmul.mubr.bf16.gmra.mxu0 %v1371
    %v2032 = vpop.f32.mrf.mxu0
    %v2033 = vadd.f32 %v1744, %v2032
    %v2034 = vpop.f32.mrf.mxu0
    %v2035 = vpop.f32.mrf.mxu0
    %v2036 = vadd.f32 %v1747, %v2035
    %v2037 = vpop.f32.mrf.mxu0
    %2038 = vmatprep.mubr.bf16.mxu0 %v1376
    %2039 = vmatmul.mubr.bf16.gmra.mxu0 %v1375
    %v2040 = vpop.f32.mrf.mxu0
    %v2041 = vadd.f32 %v1752, %v2040
    %v2042 = vpop.f32.mrf.mxu0
    %v2043 = vpop.f32.mrf.mxu0
    %v2044 = vadd.f32 %v1755, %v2043
    %v2045 = vpop.f32.mrf.mxu0
    %2046 = vmatprep.mubr.bf16.mxu0 %v1380
    %2047 = vmatmul.mubr.bf16.gmra.mxu0 %v1379
    %v2048 = vpop.f32.mrf.mxu0
    %v2049 = vadd.f32 %v1760, %v2048
    %v2050 = vpop.f32.mrf.mxu0
    %v2051 = vpop.f32.mrf.mxu0
    %v2052 = vadd.f32 %v1763, %v2051
    %v2053 = vpop.f32.mrf.mxu0
    %2054 = vmatprep.mubr.bf16.mxu0 %v1384
    %2055 = vmatmul.mubr.bf16.gmra.mxu0 %v1383
    %v2056 = vpop.f32.mrf.mxu0
    %v2057 = vadd.f32 %v1768, %v2056
    %v2058 = vpop.f32.mrf.mxu0
    %v2059 = vpop.f32.mrf.mxu0
    %v2060 = vadd.f32 %v1771, %v2059
    %v2061 = vpop.f32.mrf.mxu0
    %2062 = vmatprep.mubr.bf16.mxu0 %v1388
    %2063 = vmatmul.mubr.bf16.gmra.mxu0 %v1387
    %v2064 = vpop.f32.mrf.mxu0
    %v2065 = vadd.f32 %v1776, %v2064
    %v2066 = vpop.f32.mrf.mxu0
    %v2067 = vpop.f32.mrf.mxu0
    %v2068 = vadd.f32 %v1779, %v2067
    %v2069 = vpop.f32.mrf.mxu0
    %2070 = vmatprep.mubr.bf16.mxu0 %v1392
    %2071 = vmatmul.mubr.bf16.gmra.mxu0 %v1391
    %v2072 = vpop.f32.mrf.mxu0
    %v2073 = vadd.f32 %v1784, %v2072
    %v2074 = vpop.f32.mrf.mxu0
    %v2075 = vpop.f32.mrf.mxu0
    %v2076 = vadd.f32 %v1787, %v2075
    %v2077 = vpop.f32.mrf.mxu0
    %2078 = vmatprep.mubr.bf16.mxu0 %v1396
    %2079 = vmatmul.mubr.bf16.gmra.mxu0 %v1395
    %v2080 = vpop.f32.mrf.mxu0
    %v2081 = vadd.f32 %v1792, %v2080
    %v2082 = vpop.f32.mrf.mxu0
    %v2083 = vpop.f32.mrf.mxu0
    %v2084 = vadd.f32 %v1795, %v2083
    %v2085 = vpop.f32.mrf.mxu0
    %2086 = vmatprep.mubr.bf16.mxu0 %v1400
    %2087 = vmatmul.mubr.bf16.gmra.mxu0 %v1399
    %v2088 = vpop.f32.mrf.mxu0
    %v2089 = vadd.f32 %v1800, %v2088
    %v2090 = vpop.f32.mrf.mxu0
    %v2091 = vpop.f32.mrf.mxu0
    %v2092 = vadd.f32 %v1803, %v2091
    %v2093 = vpop.f32.mrf.mxu0
    %2094 = vmatprep.mubr.bf16.mxu0 %v1404
    %2095 = vmatmul.mubr.bf16.gmra.mxu0 %v1403
    %v2096 = vpop.f32.mrf.mxu0
    %v2097 = vadd.f32 %v1808, %v2096
    %v2098 = vpop.f32.mrf.mxu0
    %v2099 = vpop.f32.mrf.mxu0
    %v2100 = vadd.f32 %v1811, %v2099
    %v2101 = vpop.f32.mrf.mxu0
    %2102 = vmatprep.mubr.bf16.mxu0 %v1408
    %2103 = vmatmul.mubr.bf16.gmra.mxu0 %v1407
    %v2104 = vpop.f32.mrf.mxu0
    %v2105 = vadd.f32 %v1816, %v2104
    %v2106 = vpop.f32.mrf.mxu0
    %v2107 = vpop.f32.mrf.mxu0
    %v2108 = vadd.f32 %v1819, %v2107
    %v2109 = vpop.f32.mrf.mxu0
    %2110 = vmatprep.mubr.bf16.mxu0 %v1412
    %2111 = vmatmul.mubr.bf16.gmra.mxu0 %v1411
    %v2112 = vpop.f32.mrf.mxu0
    %v2113 = vadd.f32 %v1824, %v2112
    %v2114 = vpop.f32.mrf.mxu0
    %v2115 = vpop.f32.mrf.mxu0
    %v2116 = vadd.f32 %v1827, %v2115
    %v2117 = vpop.f32.mrf.mxu0
    %2118 = vdwg.mxu0
    %v2135 = vunpack.c.l.b16 %v885
    %v2136 = vunpack.c.l.b16 %v886
    %v2137 = vunpack.c.l.b16 %v887
    %v2138 = vunpack.c.l.b16 %v888
    %v2139 = vunpack.c.l.b16 %v889
    %v2140 = vunpack.c.l.b16 %v890
    %v2141 = vunpack.c.l.b16 %v891
    %v2142 = vunpack.c.l.b16 %v892
    %v2143 = vunpack.c.l.b16 %v893
    %v2144 = vunpack.c.l.b16 %v894
    %v2145 = vunpack.c.l.b16 %v895
    %v2146 = vunpack.c.l.b16 %v896
    %v2147 = vunpack.c.l.b16 %v897
    %v2148 = vunpack.c.l.b16 %v898
    %v2149 = vunpack.c.l.b16 %v899
    %v2150 = vunpack.c.l.b16 %v900
    %v2151 = vpack.c.b16 %v2136, %v2135
    %v2152 = vpack.c.b16 %v2138, %v2137
    %v2153 = vpack.c.b16 %v2140, %v2139
    %v2154 = vpack.c.b16 %v2142, %v2141
    %v2155 = vpack.c.b16 %v2144, %v2143
    %v2156 = vpack.c.b16 %v2146, %v2145
    %v2157 = vpack.c.b16 %v2148, %v2147
    %v2158 = vpack.c.b16 %v2150, %v2149
    %2167 = vmatprep.subr.bf16.mxu0 0
    %2168 = vmatpush1.bf16.msra.mxu0 %v2158
    %2169 = vmatprep.subr.bf16.mxu0 0
    %2170 = vmatpush1.bf16.msra.mxu0 %v2157
    %2171 = vmatprep.subr.bf16.mxu0 0
    %2172 = vmatpush1.bf16.msra.mxu0 %v2156
    %2173 = vmatprep.subr.bf16.mxu0 0
    %2174 = vmatpush1.bf16.msra.mxu0 %v2155
    %2175 = vmatprep.subr.bf16.mxu0 0
    %2176 = vmatpush1.bf16.msra.mxu0 %v2154
    %2177 = vmatprep.subr.bf16.mxu0 0
    %2178 = vmatpush1.bf16.msra.mxu0 %v2153
    %2179 = vmatprep.subr.bf16.mxu0 0
    %2180 = vmatpush1.bf16.msra.mxu0 %v2152
    %2181 = vmatprep.subr.bf16.mxu0 0
    %2182 = vmatpush1.bf16.msra.mxu0 %v2151
    %2183 = vmatprep.subr.bf16.mxu0 0
    %2184 = vmatpush2.bf16.msra.mxu0 0
    %2185 = vmatprep.subr.bf16.mxu0 0
    %2186 = vmatpush2.bf16.msra.mxu0 0
    %2187 = vmatprep.subr.bf16.mxu0 0
    %2188 = vmatpush2.bf16.msra.mxu0 0
    %2189 = vmatprep.subr.bf16.mxu0 0
    %2190 = vmatpush2.bf16.msra.mxu0 0
    %2191 = vmatprep.subr.bf16.mxu0 0
    %2192 = vmatpush2.bf16.msra.mxu0 0
    %2193 = vmatprep.subr.bf16.mxu0 0
    %2194 = vmatpush2.bf16.msra.mxu0 0
    %2195 = vmatprep.subr.bf16.mxu0 0
    %2196 = vmatpush2.bf16.msra.mxu0 0
    %2197 = vmatprep.subr.bf16.mxu0 0
    %2198 = vmatpush2.bf16.msra.mxu0 0
    %2199 = vmatprep.mubr.bf16.mxu0 0
    %2200 = vmatmul.mubr.bf16.gmra.mxu0 %v452
    %v2201 = vpop.f32.mrf.mxu0
    %v2202 = vadd.f32 %v1865, %v2201
    %v2203 = vpop.f32.mrf.mxu0
    %v2204 = vpop.f32.mrf.mxu0
    %v2205 = vadd.f32 %v1868, %v2204
    %v2206 = vpop.f32.mrf.mxu0
    %2207 = vmatprep.mubr.bf16.mxu0 0
    %2208 = vmatmul.mubr.bf16.gmra.mxu0 %v453
    %v2209 = vpop.f32.mrf.mxu0
    %v2210 = vadd.f32 %v1873, %v2209
    %v2211 = vpop.f32.mrf.mxu0
    %v2212 = vpop.f32.mrf.mxu0
    %v2213 = vadd.f32 %v1876, %v2212
    %v2214 = vpop.f32.mrf.mxu0
    %2215 = vmatprep.mubr.bf16.mxu0 0
    %2216 = vmatmul.mubr.bf16.gmra.mxu0 %v454
    %v2217 = vpop.f32.mrf.mxu0
    %v2218 = vadd.f32 %v1881, %v2217
    %v2219 = vpop.f32.mrf.mxu0
    %v2220 = vpop.f32.mrf.mxu0
    %v2221 = vadd.f32 %v1884, %v2220
    %v2222 = vpop.f32.mrf.mxu0
    %2223 = vmatprep.mubr.bf16.mxu0 0
    %2224 = vmatmul.mubr.bf16.gmra.mxu0 %v455
    %v2225 = vpop.f32.mrf.mxu0
    %v2226 = vadd.f32 %v1889, %v2225
    %v2227 = vpop.f32.mrf.mxu0
    %v2228 = vpop.f32.mrf.mxu0
    %v2229 = vadd.f32 %v1892, %v2228
    %v2230 = vpop.f32.mrf.mxu0
    %2231 = vmatprep.mubr.bf16.mxu0 0
    %2232 = vmatmul.mubr.bf16.gmra.mxu0 %v456
    %v2233 = vpop.f32.mrf.mxu0
    %v2234 = vadd.f32 %v1897, %v2233
    %v2235 = vpop.f32.mrf.mxu0
    %v2236 = vpop.f32.mrf.mxu0
    %v2237 = vadd.f32 %v1900, %v2236
    %v2238 = vpop.f32.mrf.mxu0
    %2239 = vmatprep.mubr.bf16.mxu0 0
    %2240 = vmatmul.mubr.bf16.gmra.mxu0 %v457
    %v2241 = vpop.f32.mrf.mxu0
    %v2242 = vadd.f32 %v1905, %v2241
    %v2243 = vpop.f32.mrf.mxu0
    %v2244 = vpop.f32.mrf.mxu0
    %v2245 = vadd.f32 %v1908, %v2244
    %v2246 = vpop.f32.mrf.mxu0
    %2247 = vmatprep.mubr.bf16.mxu0 0
    %2248 = vmatmul.mubr.bf16.gmra.mxu0 %v458
    %v2249 = vpop.f32.mrf.mxu0
    %v2250 = vadd.f32 %v1913, %v2249
    %v2251 = vpop.f32.mrf.mxu0
    %v2252 = vpop.f32.mrf.mxu0
    %v2253 = vadd.f32 %v1916, %v2252
    %v2254 = vpop.f32.mrf.mxu0
    %2255 = vmatprep.mubr.bf16.mxu0 0
    %2256 = vmatmul.mubr.bf16.gmra.mxu0 %v459
    %v2257 = vpop.f32.mrf.mxu0
    %v2258 = vadd.f32 %v1921, %v2257
    %v2259 = vpop.f32.mrf.mxu0
    %v2260 = vpop.f32.mrf.mxu0
    %v2261 = vadd.f32 %v1924, %v2260
    %v2262 = vpop.f32.mrf.mxu0
    %2263 = vmatprep.mubr.bf16.mxu0 0
    %2264 = vmatmul.mubr.bf16.gmra.mxu0 %v460
    %v2265 = vpop.f32.mrf.mxu0
    %v2266 = vadd.f32 %v1929, %v2265
    %v2267 = vpop.f32.mrf.mxu0
    %v2268 = vpop.f32.mrf.mxu0
    %v2269 = vadd.f32 %v1932, %v2268
    %v2270 = vpop.f32.mrf.mxu0
    %2271 = vmatprep.mubr.bf16.mxu0 0
    %2272 = vmatmul.mubr.bf16.gmra.mxu0 %v461
    %v2273 = vpop.f32.mrf.mxu0
    %v2274 = vadd.f32 %v1937, %v2273
    %v2275 = vpop.f32.mrf.mxu0
    %v2276 = vpop.f32.mrf.mxu0
    %v2277 = vadd.f32 %v1940, %v2276
    %v2278 = vpop.f32.mrf.mxu0
    %2279 = vmatprep.mubr.bf16.mxu0 0
    %2280 = vmatmul.mubr.bf16.gmra.mxu0 %v462
    %v2281 = vpop.f32.mrf.mxu0
    %v2282 = vadd.f32 %v1945, %v2281
    %v2283 = vpop.f32.mrf.mxu0
    %v2284 = vpop.f32.mrf.mxu0
    %v2285 = vadd.f32 %v1948, %v2284
    %v2286 = vpop.f32.mrf.mxu0
    %2287 = vmatprep.mubr.bf16.mxu0 0
    %2288 = vmatmul.mubr.bf16.gmra.mxu0 %v463
    %v2289 = vpop.f32.mrf.mxu0
    %v2290 = vadd.f32 %v1953, %v2289
    %v2291 = vpop.f32.mrf.mxu0
    %v2292 = vpop.f32.mrf.mxu0
    %v2293 = vadd.f32 %v1956, %v2292
    %v2294 = vpop.f32.mrf.mxu0
    %2295 = vmatprep.mubr.bf16.mxu0 0
    %2296 = vmatmul.mubr.bf16.gmra.mxu0 %v464
    %v2297 = vpop.f32.mrf.mxu0
    %v2298 = vadd.f32 %v1961, %v2297
    %v2299 = vpop.f32.mrf.mxu0
    %v2300 = vpop.f32.mrf.mxu0
    %v2301 = vadd.f32 %v1964, %v2300
    %v2302 = vpop.f32.mrf.mxu0
    %2303 = vmatprep.mubr.bf16.mxu0 0
    %2304 = vmatmul.mubr.bf16.gmra.mxu0 %v465
    %v2305 = vpop.f32.mrf.mxu0
    %v2306 = vadd.f32 %v1969, %v2305
    %v2307 = vpop.f32.mrf.mxu0
    %v2308 = vpop.f32.mrf.mxu0
    %v2309 = vadd.f32 %v1972, %v2308
    %v2310 = vpop.f32.mrf.mxu0
    %2311 = vmatprep.mubr.bf16.mxu0 0
    %2312 = vmatmul.mubr.bf16.gmra.mxu0 %v466
    %v2313 = vpop.f32.mrf.mxu0
    %v2314 = vadd.f32 %v1977, %v2313
    %v2315 = vpop.f32.mrf.mxu0
    %v2316 = vpop.f32.mrf.mxu0
    %v2317 = vadd.f32 %v1980, %v2316
    %v2318 = vpop.f32.mrf.mxu0
    %2319 = vmatprep.mubr.bf16.mxu0 0
    %2320 = vmatmul.mubr.bf16.gmra.mxu0 %v467
    %v2321 = vpop.f32.mrf.mxu0
    %v2322 = vadd.f32 %v1985, %v2321
    %v2323 = vpop.f32.mrf.mxu0
    %v2324 = vpop.f32.mrf.mxu0
    %v2325 = vadd.f32 %v1988, %v2324
    %v2326 = vpop.f32.mrf.mxu0
    %2327 = vmatprep.mubr.bf16.mxu0 0
    %2328 = vmatmul.mubr.bf16.gmra.mxu0 %v468
    %v2329 = vpop.f32.mrf.mxu0
    %v2330 = vadd.f32 %v1993, %v2329
    %v2331 = vpop.f32.mrf.mxu0
    %v2332 = vpop.f32.mrf.mxu0
    %v2333 = vadd.f32 %v1996, %v2332
    %v2334 = vpop.f32.mrf.mxu0
    %2335 = vmatprep.mubr.bf16.mxu0 0
    %2336 = vmatmul.mubr.bf16.gmra.mxu0 %v469
    %v2337 = vpop.f32.mrf.mxu0
    %v2338 = vadd.f32 %v2001, %v2337
    %v2339 = vpop.f32.mrf.mxu0
    %v2340 = vpop.f32.mrf.mxu0
    %v2341 = vadd.f32 %v2004, %v2340
    %v2342 = vpop.f32.mrf.mxu0
    %2343 = vmatprep.mubr.bf16.mxu0 0
    %2344 = vmatmul.mubr.bf16.gmra.mxu0 %v470
    %v2345 = vpop.f32.mrf.mxu0
    %v2346 = vadd.f32 %v2009, %v2345
    %v2347 = vpop.f32.mrf.mxu0
    %v2348 = vpop.f32.mrf.mxu0
    %v2349 = vadd.f32 %v2012, %v2348
    %v2350 = vpop.f32.mrf.mxu0
    %2351 = vmatprep.mubr.bf16.mxu0 0
    %2352 = vmatmul.mubr.bf16.gmra.mxu0 %v471
    %v2353 = vpop.f32.mrf.mxu0
    %v2354 = vadd.f32 %v2017, %v2353
    %v2355 = vpop.f32.mrf.mxu0
    %v2356 = vpop.f32.mrf.mxu0
    %v2357 = vadd.f32 %v2020, %v2356
    %v2358 = vpop.f32.mrf.mxu0
    %2359 = vmatprep.mubr.bf16.mxu0 0
    %2360 = vmatmul.mubr.bf16.gmra.mxu0 %v472
    %v2361 = vpop.f32.mrf.mxu0
    %v2362 = vadd.f32 %v2025, %v2361
    %v2363 = vpop.f32.mrf.mxu0
    %v2364 = vpop.f32.mrf.mxu0
    %v2365 = vadd.f32 %v2028, %v2364
    %v2366 = vpop.f32.mrf.mxu0
    %2367 = vmatprep.mubr.bf16.mxu0 0
    %2368 = vmatmul.mubr.bf16.gmra.mxu0 %v473
    %v2369 = vpop.f32.mrf.mxu0
    %v2370 = vadd.f32 %v2033, %v2369
    %v2371 = vpop.f32.mrf.mxu0
    %v2372 = vpop.f32.mrf.mxu0
    %v2373 = vadd.f32 %v2036, %v2372
    %v2374 = vpop.f32.mrf.mxu0
    %2375 = vmatprep.mubr.bf16.mxu0 0
    %2376 = vmatmul.mubr.bf16.gmra.mxu0 %v474
    %v2377 = vpop.f32.mrf.mxu0
    %v2378 = vadd.f32 %v2041, %v2377
    %v2379 = vpop.f32.mrf.mxu0
    %v2380 = vpop.f32.mrf.mxu0
    %v2381 = vadd.f32 %v2044, %v2380
    %v2382 = vpop.f32.mrf.mxu0
    %2383 = vmatprep.mubr.bf16.mxu0 0
    %2384 = vmatmul.mubr.bf16.gmra.mxu0 %v475
    %v2385 = vpop.f32.mrf.mxu0
    %v2386 = vadd.f32 %v2049, %v2385
    %v2387 = vpop.f32.mrf.mxu0
    %v2388 = vpop.f32.mrf.mxu0
    %v2389 = vadd.f32 %v2052, %v2388
    %v2390 = vpop.f32.mrf.mxu0
    %2391 = vmatprep.mubr.bf16.mxu0 0
    %2392 = vmatmul.mubr.bf16.gmra.mxu0 %v476
    %v2393 = vpop.f32.mrf.mxu0
    %v2394 = vadd.f32 %v2057, %v2393
    %v2395 = vpop.f32.mrf.mxu0
    %v2396 = vpop.f32.mrf.mxu0
    %v2397 = vadd.f32 %v2060, %v2396
    %v2398 = vpop.f32.mrf.mxu0
    %2399 = vmatprep.mubr.bf16.mxu0 0
    %2400 = vmatmul.mubr.bf16.gmra.mxu0 %v477
    %v2401 = vpop.f32.mrf.mxu0
    %v2402 = vadd.f32 %v2065, %v2401
    %v2403 = vpop.f32.mrf.mxu0
    %v2404 = vpop.f32.mrf.mxu0
    %v2405 = vadd.f32 %v2068, %v2404
    %v2406 = vpop.f32.mrf.mxu0
    %2407 = vmatprep.mubr.bf16.mxu0 0
    %2408 = vmatmul.mubr.bf16.gmra.mxu0 %v478
    %v2409 = vpop.f32.mrf.mxu0
    %v2410 = vadd.f32 %v2073, %v2409
    %v2411 = vpop.f32.mrf.mxu0
    %v2412 = vpop.f32.mrf.mxu0
    %v2413 = vadd.f32 %v2076, %v2412
    %v2414 = vpop.f32.mrf.mxu0
    %2415 = vmatprep.mubr.bf16.mxu0 0
    %2416 = vmatmul.mubr.bf16.gmra.mxu0 %v479
    %v2417 = vpop.f32.mrf.mxu0
    %v2418 = vadd.f32 %v2081, %v2417
    %v2419 = vpop.f32.mrf.mxu0
    %v2420 = vpop.f32.mrf.mxu0
    %v2421 = vadd.f32 %v2084, %v2420
    %v2422 = vpop.f32.mrf.mxu0
    %2423 = vmatprep.mubr.bf16.mxu0 0
    %2424 = vmatmul.mubr.bf16.gmra.mxu0 %v480
    %v2425 = vpop.f32.mrf.mxu0
    %v2426 = vadd.f32 %v2089, %v2425
    %v2427 = vpop.f32.mrf.mxu0
    %v2428 = vpop.f32.mrf.mxu0
    %v2429 = vadd.f32 %v2092, %v2428
    %v2430 = vpop.f32.mrf.mxu0
    %2431 = vmatprep.mubr.bf16.mxu0 0
    %2432 = vmatmul.mubr.bf16.gmra.mxu0 %v481
    %v2433 = vpop.f32.mrf.mxu0
    %v2434 = vadd.f32 %v2097, %v2433
    %v2435 = vpop.f32.mrf.mxu0
    %v2436 = vpop.f32.mrf.mxu0
    %v2437 = vadd.f32 %v2100, %v2436
    %v2438 = vpop.f32.mrf.mxu0
    %2439 = vmatprep.mubr.bf16.mxu0 0
    %2440 = vmatmul.mubr.bf16.gmra.mxu0 %v482
    %v2441 = vpop.f32.mrf.mxu0
    %v2442 = vadd.f32 %v2105, %v2441
    %v2443 = vpop.f32.mrf.mxu0
    %v2444 = vpop.f32.mrf.mxu0
    %v2445 = vadd.f32 %v2108, %v2444
    %v2446 = vpop.f32.mrf.mxu0
    %2447 = vmatprep.mubr.bf16.mxu0 0
    %2448 = vmatmul.mubr.bf16.gmra.mxu0 %v483
    %v2449 = vpop.f32.mrf.mxu0
    %v2450 = vadd.f32 %v2113, %v2449
    %v2451 = vpop.f32.mrf.mxu0
    %v2452 = vpop.f32.mrf.mxu0
    %v2453 = vadd.f32 %v2116, %v2452
    %v2454 = vpop.f32.mrf.mxu0
    %2455 = vdwg.mxu0
    %v2456 = vld [vmem:[%s4] sm:$0x1]
    %v2458 = vlaneseq
    %v2459 = vshrl.u32 %v2458, 7
    %v2460 = vsub.s32 0, %v2459
    %v2461 = vrot.slane %v2456, %v2460
    %v2463 = vadd.f32 %v2202, %v2461
    %v2464 = vadd.f32 %v2205, %v2461
    %v2465 = vadd.f32 %v2210, %v2461
    %v2466 = vadd.f32 %v2213, %v2461
    %v2467 = vadd.f32 %v2218, %v2461
    %v2468 = vadd.f32 %v2221, %v2461
    %v2469 = vadd.f32 %v2226, %v2461
    %v2470 = vadd.f32 %v2229, %v2461
    %v2471 = vadd.f32 %v2234, %v2461
    %v2472 = vadd.f32 %v2237, %v2461
    %v2473 = vadd.f32 %v2242, %v2461
    %v2474 = vadd.f32 %v2245, %v2461
    %v2475 = vadd.f32 %v2250, %v2461
    %v2476 = vadd.f32 %v2253, %v2461
    %v2477 = vadd.f32 %v2258, %v2461
    %v2478 = vadd.f32 %v2261, %v2461
    %v2479 = vadd.f32 %v2266, %v2461
    %v2480 = vadd.f32 %v2269, %v2461
    %v2481 = vadd.f32 %v2274, %v2461
    %v2482 = vadd.f32 %v2277, %v2461
    %v2483 = vadd.f32 %v2282, %v2461
    %v2484 = vadd.f32 %v2285, %v2461
    %v2485 = vadd.f32 %v2290, %v2461
    %v2486 = vadd.f32 %v2293, %v2461
    %v2487 = vadd.f32 %v2298, %v2461
    %v2488 = vadd.f32 %v2301, %v2461
    %v2489 = vadd.f32 %v2306, %v2461
    %v2490 = vadd.f32 %v2309, %v2461
    %v2491 = vadd.f32 %v2314, %v2461
    %v2492 = vadd.f32 %v2317, %v2461
    %v2493 = vadd.f32 %v2322, %v2461
    %v2494 = vadd.f32 %v2325, %v2461
    %v2495 = vadd.f32 %v2330, %v2461
    %v2496 = vadd.f32 %v2333, %v2461
    %v2497 = vadd.f32 %v2338, %v2461
    %v2498 = vadd.f32 %v2341, %v2461
    %v2499 = vadd.f32 %v2346, %v2461
    %v2500 = vadd.f32 %v2349, %v2461
    %v2501 = vadd.f32 %v2354, %v2461
    %v2502 = vadd.f32 %v2357, %v2461
    %v2503 = vadd.f32 %v2362, %v2461
    %v2504 = vadd.f32 %v2365, %v2461
    %v2505 = vadd.f32 %v2370, %v2461
    %v2506 = vadd.f32 %v2373, %v2461
    %v2507 = vadd.f32 %v2378, %v2461
    %v2508 = vadd.f32 %v2381, %v2461
    %v2509 = vadd.f32 %v2386, %v2461
    %v2510 = vadd.f32 %v2389, %v2461
    %v2511 = vadd.f32 %v2394, %v2461
    %v2512 = vadd.f32 %v2397, %v2461
    %v2513 = vadd.f32 %v2402, %v2461
    %v2514 = vadd.f32 %v2405, %v2461
    %v2515 = vadd.f32 %v2410, %v2461
    %v2516 = vadd.f32 %v2413, %v2461
    %v2517 = vadd.f32 %v2418, %v2461
    %v2518 = vadd.f32 %v2421, %v2461
    %v2519 = vadd.f32 %v2426, %v2461
    %v2520 = vadd.f32 %v2429, %v2461
    %v2521 = vadd.f32 %v2434, %v2461
    %v2522 = vadd.f32 %v2437, %v2461
    %v2523 = vadd.f32 %v2442, %v2461
    %v2524 = vadd.f32 %v2445, %v2461
    %v2525 = vadd.f32 %v2450, %v2461
    %v2526 = vadd.f32 %v2453, %v2461
    %v2527 = vmax.f32 %v2463, 0.0
    %v2528 = vmax.f32 %v2464, 0.0
    %v2529 = vmax.f32 %v2465, 0.0
    %v2530 = vmax.f32 %v2466, 0.0
    %v2531 = vmax.f32 %v2467, 0.0
    %v2532 = vmax.f32 %v2468, 0.0
    %v2533 = vmax.f32 %v2469, 0.0
    %v2534 = vmax.f32 %v2470, 0.0
    %v2535 = vmax.f32 %v2471, 0.0
    %v2536 = vmax.f32 %v2472, 0.0
    %v2537 = vmax.f32 %v2473, 0.0
    %v2538 = vmax.f32 %v2474, 0.0
    %v2539 = vmax.f32 %v2475, 0.0
    %v2540 = vmax.f32 %v2476, 0.0
    %v2541 = vmax.f32 %v2477, 0.0
    %v2542 = vmax.f32 %v2478, 0.0
    %v2543 = vmax.f32 %v2479, 0.0
    %v2544 = vmax.f32 %v2480, 0.0
    %v2545 = vmax.f32 %v2481, 0.0
    %v2546 = vmax.f32 %v2482, 0.0
    %v2547 = vmax.f32 %v2483, 0.0
    %v2548 = vmax.f32 %v2484, 0.0
    %v2549 = vmax.f32 %v2485, 0.0
    %v2550 = vmax.f32 %v2486, 0.0
    %v2551 = vmax.f32 %v2487, 0.0
    %v2552 = vmax.f32 %v2488, 0.0
    %v2553 = vmax.f32 %v2489, 0.0
    %v2554 = vmax.f32 %v2490, 0.0
    %v2555 = vmax.f32 %v2491, 0.0
    %v2556 = vmax.f32 %v2492, 0.0
    %v2557 = vmax.f32 %v2493, 0.0
    %v2558 = vmax.f32 %v2494, 0.0
    %v2559 = vmax.f32 %v2495, 0.0
    %v2560 = vmax.f32 %v2496, 0.0
    %v2561 = vmax.f32 %v2497, 0.0
    %v2562 = vmax.f32 %v2498, 0.0
    %v2563 = vmax.f32 %v2499, 0.0
    %v2564 = vmax.f32 %v2500, 0.0
    %v2565 = vmax.f32 %v2501, 0.0
    %v2566 = vmax.f32 %v2502, 0.0
    %v2567 = vmax.f32 %v2503, 0.0
    %v2568 = vmax.f32 %v2504, 0.0
    %v2569 = vmax.f32 %v2505, 0.0
    %v2570 = vmax.f32 %v2506, 0.0
    %v2571 = vmax.f32 %v2507, 0.0
    %v2572 = vmax.f32 %v2508, 0.0
    %v2573 = vmax.f32 %v2509, 0.0
    %v2574 = vmax.f32 %v2510, 0.0
    %v2575 = vmax.f32 %v2511, 0.0
    %v2576 = vmax.f32 %v2512, 0.0
    %v2577 = vmax.f32 %v2513, 0.0
    %v2578 = vmax.f32 %v2514, 0.0
    %v2579 = vmax.f32 %v2515, 0.0
    %v2580 = vmax.f32 %v2516, 0.0
    %v2581 = vmax.f32 %v2517, 0.0
    %v2582 = vmax.f32 %v2518, 0.0
    %v2583 = vmax.f32 %v2519, 0.0
    %v2584 = vmax.f32 %v2520, 0.0
    %v2585 = vmax.f32 %v2521, 0.0
    %v2586 = vmax.f32 %v2522, 0.0
    %v2587 = vmax.f32 %v2523, 0.0
    %v2588 = vmax.f32 %v2524, 0.0
    %v2589 = vmax.f32 %v2525, 0.0
    %v2590 = vmax.f32 %v2526, 0.0
    %v2591 = vpack.c.bf16 %v2528, %v2527
    %v2592 = vpack.c.bf16 %v2530, %v2529
    %v2593 = vpack.c.bf16 %v2532, %v2531
    %v2594 = vpack.c.bf16 %v2534, %v2533
    %v2595 = vpack.c.bf16 %v2536, %v2535
    %v2596 = vpack.c.bf16 %v2538, %v2537
    %v2597 = vpack.c.bf16 %v2540, %v2539
    %v2598 = vpack.c.bf16 %v2542, %v2541
    %v2599 = vpack.c.bf16 %v2544, %v2543
    %v2600 = vpack.c.bf16 %v2546, %v2545
    %v2601 = vpack.c.bf16 %v2548, %v2547
    %v2602 = vpack.c.bf16 %v2550, %v2549
    %v2603 = vpack.c.bf16 %v2552, %v2551
    %v2604 = vpack.c.bf16 %v2554, %v2553
    %v2605 = vpack.c.bf16 %v2556, %v2555
    %v2606 = vpack.c.bf16 %v2558, %v2557
    %v2607 = vpack.c.bf16 %v2560, %v2559
    %v2608 = vpack.c.bf16 %v2562, %v2561
    %v2609 = vpack.c.bf16 %v2564, %v2563
    %v2610 = vpack.c.bf16 %v2566, %v2565
    %v2611 = vpack.c.bf16 %v2568, %v2567
    %v2612 = vpack.c.bf16 %v2570, %v2569
    %v2613 = vpack.c.bf16 %v2572, %v2571
    %v2614 = vpack.c.bf16 %v2574, %v2573
    %v2615 = vpack.c.bf16 %v2576, %v2575
    %v2616 = vpack.c.bf16 %v2578, %v2577
    %v2617 = vpack.c.bf16 %v2580, %v2579
    %v2618 = vpack.c.bf16 %v2582, %v2581
    %v2619 = vpack.c.bf16 %v2584, %v2583
    %v2620 = vpack.c.bf16 %v2586, %v2585
    %v2621 = vpack.c.bf16 %v2588, %v2587
    %v2622 = vpack.c.bf16 %v2590, %v2589
    %v2623 = vld [vmem:[#allocation11] sm:$0xf]
    %v2624 = vld [vmem:[#allocation11 + $0x4] sm:$0xf]
    %v2625 = vld [vmem:[#allocation11 + $0x8] sm:$0xf]
    %v2626 = vld [vmem:[#allocation11 + $0xc] sm:$0xf]
    %v2627 = vld [vmem:[#allocation11 + $0x10] sm:$0xf]
    %v2628 = vld [vmem:[#allocation11 + $0x14] sm:$0xf]
    %v2629 = vld [vmem:[#allocation11 + $0x18] sm:$0xf]
    %v2630 = vld [vmem:[#allocation11 + $0x1c] sm:$0xf]
    %v2631 = vld [vmem:[#allocation11 + $0x20] sm:$0xf]
    %v2632 = vld [vmem:[#allocation11 + $0x24] sm:$0xf]
    %v2633 = vld [vmem:[#allocation11 + $0x28] sm:$0xf]
    %v2634 = vld [vmem:[#allocation11 + $0x2c] sm:$0xf]
    %v2635 = vld [vmem:[#allocation11 + $0x30] sm:$0xf]
    %v2636 = vld [vmem:[#allocation11 + $0x34] sm:$0xf]
    %v2637 = vld [vmem:[#allocation11 + $0x38] sm:$0xf]
    %v2638 = vld [vmem:[#allocation11 + $0x3c] sm:$0xf]
    %v2655 = vunpack.c.l.b16 %v2623
    %v2656 = vunpack.c.l.b16 %v2624
    %v2657 = vunpack.c.l.b16 %v2625
    %v2658 = vunpack.c.l.b16 %v2626
    %v2659 = vunpack.c.l.b16 %v2627
    %v2660 = vunpack.c.l.b16 %v2628
    %v2661 = vunpack.c.l.b16 %v2629
    %v2662 = vunpack.c.l.b16 %v2630
    %v2663 = vunpack.c.l.b16 %v2631
    %v2664 = vunpack.c.l.b16 %v2632
    %v2665 = vunpack.c.l.b16 %v2633
    %v2666 = vunpack.c.l.b16 %v2634
    %v2667 = vunpack.c.l.b16 %v2635
    %v2668 = vunpack.c.l.b16 %v2636
    %v2669 = vunpack.c.l.b16 %v2637
    %v2670 = vunpack.c.l.b16 %v2638
    %v2671 = vpack.c.b16 %v2656, %v2655
    %v2672 = vpack.c.b16 %v2658, %v2657
    %v2673 = vpack.c.b16 %v2660, %v2659
    %v2674 = vpack.c.b16 %v2662, %v2661
    %v2675 = vpack.c.b16 %v2664, %v2663
    %v2676 = vpack.c.b16 %v2666, %v2665
    %v2677 = vpack.c.b16 %v2668, %v2667
    %v2678 = vpack.c.b16 %v2670, %v2669
    %2687 = vmatprep.subr.bf16.mxu0 0
    %2688 = vmatpush1.bf16.msra.mxu0 %v2678
    %2689 = vmatprep.subr.bf16.mxu0 0
    %2690 = vmatpush1.bf16.msra.mxu0 %v2677
    %2691 = vmatprep.subr.bf16.mxu0 0
    %2692 = vmatpush1.bf16.msra.mxu0 %v2676
    %2693 = vmatprep.subr.bf16.mxu0 0
    %2694 = vmatpush1.bf16.msra.mxu0 %v2675
    %2695 = vmatprep.subr.bf16.mxu0 0
    %2696 = vmatpush1.bf16.msra.mxu0 %v2674
    %2697 = vmatprep.subr.bf16.mxu0 0
    %2698 = vmatpush1.bf16.msra.mxu0 %v2673
    %2699 = vmatprep.subr.bf16.mxu0 0
    %2700 = vmatpush1.bf16.msra.mxu0 %v2672
    %2701 = vmatprep.subr.bf16.mxu0 0
    %2702 = vmatpush1.bf16.msra.mxu0 %v2671
    %2703 = vmatprep.subr.bf16.mxu0 0
    %2704 = vmatpush2.bf16.msra.mxu0 0
    %2705 = vmatprep.subr.bf16.mxu0 0
    %2706 = vmatpush2.bf16.msra.mxu0 0
    %2707 = vmatprep.subr.bf16.mxu0 0
    %2708 = vmatpush2.bf16.msra.mxu0 0
    %2709 = vmatprep.subr.bf16.mxu0 0
    %2710 = vmatpush2.bf16.msra.mxu0 0
    %2711 = vmatprep.subr.bf16.mxu0 0
    %2712 = vmatpush2.bf16.msra.mxu0 0
    %2713 = vmatprep.subr.bf16.mxu0 0
    %2714 = vmatpush2.bf16.msra.mxu0 0
    %2715 = vmatprep.subr.bf16.mxu0 0
    %2716 = vmatpush2.bf16.msra.mxu0 0
    %2717 = vmatprep.subr.bf16.mxu0 0
    %2718 = vmatpush2.bf16.msra.mxu0 0
    %2719 = vmatprep.mubr.bf16.mxu0 0
    %2720 = vmatmul.mubr.bf16.gmra.mxu0 %v2591
    %v2721 = vpop.f32.mrf.mxu0
    %v2722 = vadd.f32 0.0, %v2721
    %v2723 = vpop.f32.mrf.mxu0
    %v2724 = vpop.f32.mrf.mxu0
    %v2725 = vadd.f32 0.0, %v2724
    %v2726 = vpop.f32.mrf.mxu0
    %2727 = vmatprep.mubr.bf16.mxu0 0
    %2728 = vmatmul.mubr.bf16.gmra.mxu0 %v2592
    %v2729 = vpop.f32.mrf.mxu0
    %v2730 = vadd.f32 0.0, %v2729
    %v2731 = vpop.f32.mrf.mxu0
    %v2732 = vpop.f32.mrf.mxu0
    %v2733 = vadd.f32 0.0, %v2732
    %v2734 = vpop.f32.mrf.mxu0
    %2735 = vmatprep.mubr.bf16.mxu0 0
    %2736 = vmatmul.mubr.bf16.gmra.mxu0 %v2593
    %v2737 = vpop.f32.mrf.mxu0
    %v2738 = vadd.f32 0.0, %v2737
    %v2739 = vpop.f32.mrf.mxu0
    %v2740 = vpop.f32.mrf.mxu0
    %v2741 = vadd.f32 0.0, %v2740
    %v2742 = vpop.f32.mrf.mxu0
    %2743 = vmatprep.mubr.bf16.mxu0 0
    %2744 = vmatmul.mubr.bf16.gmra.mxu0 %v2594
    %v2745 = vpop.f32.mrf.mxu0
    %v2746 = vadd.f32 0.0, %v2745
    %v2747 = vpop.f32.mrf.mxu0
    %v2748 = vpop.f32.mrf.mxu0
    %v2749 = vadd.f32 0.0, %v2748
    %v2750 = vpop.f32.mrf.mxu0
    %2751 = vmatprep.mubr.bf16.mxu0 0
    %2752 = vmatmul.mubr.bf16.gmra.mxu0 %v2595
    %v2753 = vpop.f32.mrf.mxu0
    %v2754 = vadd.f32 0.0, %v2753
    %v2755 = vpop.f32.mrf.mxu0
    %v2756 = vpop.f32.mrf.mxu0
    %v2757 = vadd.f32 0.0, %v2756
    %v2758 = vpop.f32.mrf.mxu0
    %2759 = vmatprep.mubr.bf16.mxu0 0
    %2760 = vmatmul.mubr.bf16.gmra.mxu0 %v2596
    %v2761 = vpop.f32.mrf.mxu0
    %v2762 = vadd.f32 0.0, %v2761
    %v2763 = vpop.f32.mrf.mxu0
    %v2764 = vpop.f32.mrf.mxu0
    %v2765 = vadd.f32 0.0, %v2764
    %v2766 = vpop.f32.mrf.mxu0
    %2767 = vmatprep.mubr.bf16.mxu0 0
    %2768 = vmatmul.mubr.bf16.gmra.mxu0 %v2597
    %v2769 = vpop.f32.mrf.mxu0
    %v2770 = vadd.f32 0.0, %v2769
    %v2771 = vpop.f32.mrf.mxu0
    %v2772 = vpop.f32.mrf.mxu0
    %v2773 = vadd.f32 0.0, %v2772
    %v2774 = vpop.f32.mrf.mxu0
    %2775 = vmatprep.mubr.bf16.mxu0 0
    %2776 = vmatmul.mubr.bf16.gmra.mxu0 %v2598
    %v2777 = vpop.f32.mrf.mxu0
    %v2778 = vadd.f32 0.0, %v2777
    %v2779 = vpop.f32.mrf.mxu0
    %v2780 = vpop.f32.mrf.mxu0
    %v2781 = vadd.f32 0.0, %v2780
    %v2782 = vpop.f32.mrf.mxu0
    %2783 = vmatprep.mubr.bf16.mxu0 0
    %2784 = vmatmul.mubr.bf16.gmra.mxu0 %v2599
    %v2785 = vpop.f32.mrf.mxu0
    %v2786 = vadd.f32 0.0, %v2785
    %v2787 = vpop.f32.mrf.mxu0
    %v2788 = vpop.f32.mrf.mxu0
    %v2789 = vadd.f32 0.0, %v2788
    %v2790 = vpop.f32.mrf.mxu0
    %2791 = vmatprep.mubr.bf16.mxu0 0
    %2792 = vmatmul.mubr.bf16.gmra.mxu0 %v2600
    %v2793 = vpop.f32.mrf.mxu0
    %v2794 = vadd.f32 0.0, %v2793
    %v2795 = vpop.f32.mrf.mxu0
    %v2796 = vpop.f32.mrf.mxu0
    %v2797 = vadd.f32 0.0, %v2796
    %v2798 = vpop.f32.mrf.mxu0
    %2799 = vmatprep.mubr.bf16.mxu0 0
    %2800 = vmatmul.mubr.bf16.gmra.mxu0 %v2601
    %v2801 = vpop.f32.mrf.mxu0
    %v2802 = vadd.f32 0.0, %v2801
    %v2803 = vpop.f32.mrf.mxu0
    %v2804 = vpop.f32.mrf.mxu0
    %v2805 = vadd.f32 0.0, %v2804
    %v2806 = vpop.f32.mrf.mxu0
    %2807 = vmatprep.mubr.bf16.mxu0 0
    %2808 = vmatmul.mubr.bf16.gmra.mxu0 %v2602
    %v2809 = vpop.f32.mrf.mxu0
    %v2810 = vadd.f32 0.0, %v2809
    %v2811 = vpop.f32.mrf.mxu0
    %v2812 = vpop.f32.mrf.mxu0
    %v2813 = vadd.f32 0.0, %v2812
    %v2814 = vpop.f32.mrf.mxu0
    %2815 = vmatprep.mubr.bf16.mxu0 0
    %2816 = vmatmul.mubr.bf16.gmra.mxu0 %v2603
    %v2817 = vpop.f32.mrf.mxu0
    %v2818 = vadd.f32 0.0, %v2817
    %v2819 = vpop.f32.mrf.mxu0
    %v2820 = vpop.f32.mrf.mxu0
    %v2821 = vadd.f32 0.0, %v2820
    %v2822 = vpop.f32.mrf.mxu0
    %2823 = vmatprep.mubr.bf16.mxu0 0
    %2824 = vmatmul.mubr.bf16.gmra.mxu0 %v2604
    %v2825 = vpop.f32.mrf.mxu0
    %v2826 = vadd.f32 0.0, %v2825
    %v2827 = vpop.f32.mrf.mxu0
    %v2828 = vpop.f32.mrf.mxu0
    %v2829 = vadd.f32 0.0, %v2828
    %v2830 = vpop.f32.mrf.mxu0
    %2831 = vmatprep.mubr.bf16.mxu0 0
    %2832 = vmatmul.mubr.bf16.gmra.mxu0 %v2605
    %v2833 = vpop.f32.mrf.mxu0
    %v2834 = vadd.f32 0.0, %v2833
    %v2835 = vpop.f32.mrf.mxu0
    %v2836 = vpop.f32.mrf.mxu0
    %v2837 = vadd.f32 0.0, %v2836
    %v2838 = vpop.f32.mrf.mxu0
    %2839 = vmatprep.mubr.bf16.mxu0 0
    %2840 = vmatmul.mubr.bf16.gmra.mxu0 %v2606
    %v2841 = vpop.f32.mrf.mxu0
    %v2842 = vadd.f32 0.0, %v2841
    %v2843 = vpop.f32.mrf.mxu0
    %v2844 = vpop.f32.mrf.mxu0
    %v2845 = vadd.f32 0.0, %v2844
    %v2846 = vpop.f32.mrf.mxu0
    %2847 = vmatprep.mubr.bf16.mxu0 0
    %2848 = vmatmul.mubr.bf16.gmra.mxu0 %v2607
    %v2849 = vpop.f32.mrf.mxu0
    %v2850 = vadd.f32 0.0, %v2849
    %v2851 = vpop.f32.mrf.mxu0
    %v2852 = vpop.f32.mrf.mxu0
    %v2853 = vadd.f32 0.0, %v2852
    %v2854 = vpop.f32.mrf.mxu0
    %2855 = vmatprep.mubr.bf16.mxu0 0
    %2856 = vmatmul.mubr.bf16.gmra.mxu0 %v2608
    %v2857 = vpop.f32.mrf.mxu0
    %v2858 = vadd.f32 0.0, %v2857
    %v2859 = vpop.f32.mrf.mxu0
    %v2860 = vpop.f32.mrf.mxu0
    %v2861 = vadd.f32 0.0, %v2860
    %v2862 = vpop.f32.mrf.mxu0
    %2863 = vmatprep.mubr.bf16.mxu0 0
    %2864 = vmatmul.mubr.bf16.gmra.mxu0 %v2609
    %v2865 = vpop.f32.mrf.mxu0
    %v2866 = vadd.f32 0.0, %v2865
    %v2867 = vpop.f32.mrf.mxu0
    %v2868 = vpop.f32.mrf.mxu0
    %v2869 = vadd.f32 0.0, %v2868
    %v2870 = vpop.f32.mrf.mxu0
    %2871 = vmatprep.mubr.bf16.mxu0 0
    %2872 = vmatmul.mubr.bf16.gmra.mxu0 %v2610
    %v2873 = vpop.f32.mrf.mxu0
    %v2874 = vadd.f32 0.0, %v2873
    %v2875 = vpop.f32.mrf.mxu0
    %v2876 = vpop.f32.mrf.mxu0
    %v2877 = vadd.f32 0.0, %v2876
    %v2878 = vpop.f32.mrf.mxu0
    %2879 = vmatprep.mubr.bf16.mxu0 0
    %2880 = vmatmul.mubr.bf16.gmra.mxu0 %v2611
    %v2881 = vpop.f32.mrf.mxu0
    %v2882 = vadd.f32 0.0, %v2881
    %v2883 = vpop.f32.mrf.mxu0
    %v2884 = vpop.f32.mrf.mxu0
    %v2885 = vadd.f32 0.0, %v2884
    %v2886 = vpop.f32.mrf.mxu0
    %2887 = vmatprep.mubr.bf16.mxu0 0
    %2888 = vmatmul.mubr.bf16.gmra.mxu0 %v2612
    %v2889 = vpop.f32.mrf.mxu0
    %v2890 = vadd.f32 0.0, %v2889
    %v2891 = vpop.f32.mrf.mxu0
    %v2892 = vpop.f32.mrf.mxu0
    %v2893 = vadd.f32 0.0, %v2892
    %v2894 = vpop.f32.mrf.mxu0
    %2895 = vmatprep.mubr.bf16.mxu0 0
    %2896 = vmatmul.mubr.bf16.gmra.mxu0 %v2613
    %v2897 = vpop.f32.mrf.mxu0
    %v2898 = vadd.f32 0.0, %v2897
    %v2899 = vpop.f32.mrf.mxu0
    %v2900 = vpop.f32.mrf.mxu0
    %v2901 = vadd.f32 0.0, %v2900
    %v2902 = vpop.f32.mrf.mxu0
    %2903 = vmatprep.mubr.bf16.mxu0 0
    %2904 = vmatmul.mubr.bf16.gmra.mxu0 %v2614
    %v2905 = vpop.f32.mrf.mxu0
    %v2906 = vadd.f32 0.0, %v2905
    %v2907 = vpop.f32.mrf.mxu0
    %v2908 = vpop.f32.mrf.mxu0
    %v2909 = vadd.f32 0.0, %v2908
    %v2910 = vpop.f32.mrf.mxu0
    %2911 = vmatprep.mubr.bf16.mxu0 0
    %2912 = vmatmul.mubr.bf16.gmra.mxu0 %v2615
    %v2913 = vpop.f32.mrf.mxu0
    %v2914 = vadd.f32 0.0, %v2913
    %v2915 = vpop.f32.mrf.mxu0
    %v2916 = vpop.f32.mrf.mxu0
    %v2917 = vadd.f32 0.0, %v2916
    %v2918 = vpop.f32.mrf.mxu0
    %2919 = vmatprep.mubr.bf16.mxu0 0
    %2920 = vmatmul.mubr.bf16.gmra.mxu0 %v2616
    %v2921 = vpop.f32.mrf.mxu0
    %v2922 = vadd.f32 0.0, %v2921
    %v2923 = vpop.f32.mrf.mxu0
    %v2924 = vpop.f32.mrf.mxu0
    %v2925 = vadd.f32 0.0, %v2924
    %v2926 = vpop.f32.mrf.mxu0
    %2927 = vmatprep.mubr.bf16.mxu0 0
    %2928 = vmatmul.mubr.bf16.gmra.mxu0 %v2617
    %v2929 = vpop.f32.mrf.mxu0
    %v2930 = vadd.f32 0.0, %v2929
    %v2931 = vpop.f32.mrf.mxu0
    %v2932 = vpop.f32.mrf.mxu0
    %v2933 = vadd.f32 0.0, %v2932
    %v2934 = vpop.f32.mrf.mxu0
    %2935 = vmatprep.mubr.bf16.mxu0 0
    %2936 = vmatmul.mubr.bf16.gmra.mxu0 %v2618
    %v2937 = vpop.f32.mrf.mxu0
    %v2938 = vadd.f32 0.0, %v2937
    %v2939 = vpop.f32.mrf.mxu0
    %v2940 = vpop.f32.mrf.mxu0
    %v2941 = vadd.f32 0.0, %v2940
    %v2942 = vpop.f32.mrf.mxu0
    %2943 = vmatprep.mubr.bf16.mxu0 0
    %2944 = vmatmul.mubr.bf16.gmra.mxu0 %v2619
    %v2945 = vpop.f32.mrf.mxu0
    %v2946 = vadd.f32 0.0, %v2945
    %v2947 = vpop.f32.mrf.mxu0
    %v2948 = vpop.f32.mrf.mxu0
    %v2949 = vadd.f32 0.0, %v2948
    %v2950 = vpop.f32.mrf.mxu0
    %2951 = vmatprep.mubr.bf16.mxu0 0
    %2952 = vmatmul.mubr.bf16.gmra.mxu0 %v2620
    %v2953 = vpop.f32.mrf.mxu0
    %v2954 = vadd.f32 0.0, %v2953
    %v2955 = vpop.f32.mrf.mxu0
    %v2956 = vpop.f32.mrf.mxu0
    %v2957 = vadd.f32 0.0, %v2956
    %v2958 = vpop.f32.mrf.mxu0
    %2959 = vmatprep.mubr.bf16.mxu0 0
    %2960 = vmatmul.mubr.bf16.gmra.mxu0 %v2621
    %v2961 = vpop.f32.mrf.mxu0
    %v2962 = vadd.f32 0.0, %v2961
    %v2963 = vpop.f32.mrf.mxu0
    %v2964 = vpop.f32.mrf.mxu0
    %v2965 = vadd.f32 0.0, %v2964
    %v2966 = vpop.f32.mrf.mxu0
    %2967 = vmatprep.mubr.bf16.mxu0 0
    %2968 = vmatmul.mubr.bf16.gmra.mxu0 %v2622
    %v2969 = vpop.f32.mrf.mxu0
    %v2970 = vadd.f32 0.0, %v2969
    %v2971 = vpop.f32.mrf.mxu0
    %v2972 = vpop.f32.mrf.mxu0
    %v2973 = vadd.f32 0.0, %v2972
    %v2974 = vpop.f32.mrf.mxu0
    %2975 = vdwg.mxu0
    %v2976 = vpack.c.bf16 %v2725, %v2722
    %v2977 = vpack.c.bf16 %v2733, %v2730
    %v2978 = vpack.c.bf16 %v2741, %v2738
    %v2979 = vpack.c.bf16 %v2749, %v2746
    %v2980 = vpack.c.bf16 %v2757, %v2754
    %v2981 = vpack.c.bf16 %v2765, %v2762
    %v2982 = vpack.c.bf16 %v2773, %v2770
    %v2983 = vpack.c.bf16 %v2781, %v2778
    %v2984 = vpack.c.bf16 %v2789, %v2786
    %v2985 = vpack.c.bf16 %v2797, %v2794
    %v2986 = vpack.c.bf16 %v2805, %v2802
    %v2987 = vpack.c.bf16 %v2813, %v2810
    %v2988 = vpack.c.bf16 %v2821, %v2818
    %v2989 = vpack.c.bf16 %v2829, %v2826
    %v2990 = vpack.c.bf16 %v2837, %v2834
    %v2991 = vpack.c.bf16 %v2845, %v2842
    %v2992 = vpack.c.bf16 %v2853, %v2850
    %v2993 = vpack.c.bf16 %v2861, %v2858
    %v2994 = vpack.c.bf16 %v2869, %v2866
    %v2995 = vpack.c.bf16 %v2877, %v2874
    %v2996 = vpack.c.bf16 %v2885, %v2882
    %v2997 = vpack.c.bf16 %v2893, %v2890
    %v2998 = vpack.c.bf16 %v2901, %v2898
    %v2999 = vpack.c.bf16 %v2909, %v2906
    %v3000 = vpack.c.bf16 %v2917, %v2914
    %v3001 = vpack.c.bf16 %v2925, %v2922
    %v3002 = vpack.c.bf16 %v2933, %v2930
    %v3003 = vpack.c.bf16 %v2941, %v2938
    %v3004 = vpack.c.bf16 %v2949, %v2946
    %v3005 = vpack.c.bf16 %v2957, %v2954
    %v3006 = vpack.c.bf16 %v2965, %v2962
    %v3007 = vpack.c.bf16 %v2973, %v2970
    %v3008 = vld [vmem:[#allocation10] sm:$0xf]
    %v3009 = vld [vmem:[#allocation10 + $0x4] sm:$0xf]
    %v3010 = vld [vmem:[#allocation10 + $0x8] sm:$0xf]
    %v3011 = vld [vmem:[#allocation10 + $0xc] sm:$0xf]
    %v3012 = vld [vmem:[#allocation10 + $0x10] sm:$0xf]
    %v3013 = vld [vmem:[#allocation10 + $0x14] sm:$0xf]
    %v3014 = vld [vmem:[#allocation10 + $0x18] sm:$0xf]
    %v3015 = vld [vmem:[#allocation10 + $0x1c] sm:$0xf]
    %v3016 = vld [vmem:[#allocation10 + $0x20] sm:$0xf]
    %v3017 = vld [vmem:[#allocation10 + $0x24] sm:$0xf]
    %v3018 = vld [vmem:[#allocation10 + $0x28] sm:$0xf]
    %v3019 = vld [vmem:[#allocation10 + $0x2c] sm:$0xf]
    %v3020 = vld [vmem:[#allocation10 + $0x30] sm:$0xf]
    %v3021 = vld [vmem:[#allocation10 + $0x34] sm:$0xf]
    %v3022 = vld [vmem:[#allocation10 + $0x38] sm:$0xf]
    %v3023 = vld [vmem:[#allocation10 + $0x3c] sm:$0xf]
    %3024 = vmatprep.subr.bf16.mxu0 0
    %3025 = vmatpush1.bf16.msra.mxu0 %v2983
    %3026 = vmatprep.subr.bf16.mxu0 0
    %3027 = vmatpush1.bf16.msra.mxu0 %v2982
    %3028 = vmatprep.subr.bf16.mxu0 0
    %3029 = vmatpush1.bf16.msra.mxu0 %v2981
    %3030 = vmatprep.subr.bf16.mxu0 0
    %3031 = vmatpush1.bf16.msra.mxu0 %v2980
    %3032 = vmatprep.subr.bf16.mxu0 0
    %3033 = vmatpush1.bf16.msra.mxu0 %v2979
    %3034 = vmatprep.subr.bf16.mxu0 0
    %3035 = vmatpush1.bf16.msra.mxu0 %v2978
    %3036 = vmatprep.subr.bf16.mxu0 0
    %3037 = vmatpush1.bf16.msra.mxu0 %v2977
    %3038 = vmatprep.subr.bf16.mxu0 0
    %3039 = vmatpush1.bf16.msra.mxu0 %v2976
    %3040 = vmatprep.subr.bf16.mxu0 0
    %3041 = vmatpush2.bf16.msra.mxu0 %v2991
    %3042 = vmatprep.subr.bf16.mxu0 0
    %3043 = vmatpush2.bf16.msra.mxu0 %v2990
    %3044 = vmatprep.subr.bf16.mxu0 0
    %3045 = vmatpush2.bf16.msra.mxu0 %v2989
    %3046 = vmatprep.subr.bf16.mxu0 0
    %3047 = vmatpush2.bf16.msra.mxu0 %v2988
    %3048 = vmatprep.subr.bf16.mxu0 0
    %3049 = vmatpush2.bf16.msra.mxu0 %v2987
    %3050 = vmatprep.subr.bf16.mxu0 0
    %3051 = vmatpush2.bf16.msra.mxu0 %v2986
    %3052 = vmatprep.subr.bf16.mxu0 0
    %3053 = vmatpush2.bf16.msra.mxu0 %v2985
    %3054 = vmatprep.subr.bf16.mxu0 0
    %3055 = vmatpush2.bf16.msra.mxu0 %v2984
    %3056 = vmatprep.mubr.bf16.mxu0 %v1286
    %3057 = vmatmul.mubr.bf16.gmra.mxu0 %v1285
    %v3058 = vpop.f32.mrf.mxu0
    %v3059 = vadd.f32 0.0, %v3058
    %v3060 = vpop.f32.mrf.mxu0
    %v3061 = vpop.f32.mrf.mxu0
    %v3062 = vadd.f32 0.0, %v3061
    %v3063 = vpop.f32.mrf.mxu0
    %3064 = vmatprep.mubr.bf16.mxu0 %v1290
    %3065 = vmatmul.mubr.bf16.gmra.mxu0 %v1289
    %v3066 = vpop.f32.mrf.mxu0
    %v3067 = vadd.f32 0.0, %v3066
    %v3068 = vpop.f32.mrf.mxu0
    %v3069 = vpop.f32.mrf.mxu0
    %v3070 = vadd.f32 0.0, %v3069
    %v3071 = vpop.f32.mrf.mxu0
    %3072 = vmatprep.mubr.bf16.mxu0 %v1294
    %3073 = vmatmul.mubr.bf16.gmra.mxu0 %v1293
    %v3074 = vpop.f32.mrf.mxu0
    %v3075 = vadd.f32 0.0, %v3074
    %v3076 = vpop.f32.mrf.mxu0
    %v3077 = vpop.f32.mrf.mxu0
    %v3078 = vadd.f32 0.0, %v3077
    %v3079 = vpop.f32.mrf.mxu0
    %3080 = vmatprep.mubr.bf16.mxu0 %v1298
    %3081 = vmatmul.mubr.bf16.gmra.mxu0 %v1297
    %v3082 = vpop.f32.mrf.mxu0
    %v3083 = vadd.f32 0.0, %v3082
    %v3084 = vpop.f32.mrf.mxu0
    %v3085 = vpop.f32.mrf.mxu0
    %v3086 = vadd.f32 0.0, %v3085
    %v3087 = vpop.f32.mrf.mxu0
    %3088 = vmatprep.mubr.bf16.mxu0 %v1302
    %3089 = vmatmul.mubr.bf16.gmra.mxu0 %v1301
    %v3090 = vpop.f32.mrf.mxu0
    %v3091 = vadd.f32 0.0, %v3090
    %v3092 = vpop.f32.mrf.mxu0
    %v3093 = vpop.f32.mrf.mxu0
    %v3094 = vadd.f32 0.0, %v3093
    %v3095 = vpop.f32.mrf.mxu0
    %3096 = vmatprep.mubr.bf16.mxu0 %v1306
    %3097 = vmatmul.mubr.bf16.gmra.mxu0 %v1305
    %v3098 = vpop.f32.mrf.mxu0
    %v3099 = vadd.f32 0.0, %v3098
    %v3100 = vpop.f32.mrf.mxu0
    %v3101 = vpop.f32.mrf.mxu0
    %v3102 = vadd.f32 0.0, %v3101
    %v3103 = vpop.f32.mrf.mxu0
    %3104 = vmatprep.mubr.bf16.mxu0 %v1310
    %3105 = vmatmul.mubr.bf16.gmra.mxu0 %v1309
    %v3106 = vpop.f32.mrf.mxu0
    %v3107 = vadd.f32 0.0, %v3106
    %v3108 = vpop.f32.mrf.mxu0
    %v3109 = vpop.f32.mrf.mxu0
    %v3110 = vadd.f32 0.0, %v3109
    %v3111 = vpop.f32.mrf.mxu0
    %3112 = vmatprep.mubr.bf16.mxu0 %v1314
    %3113 = vmatmul.mubr.bf16.gmra.mxu0 %v1313
    %v3114 = vpop.f32.mrf.mxu0
    %v3115 = vadd.f32 0.0, %v3114
    %v3116 = vpop.f32.mrf.mxu0
    %v3117 = vpop.f32.mrf.mxu0
    %v3118 = vadd.f32 0.0, %v3117
    %v3119 = vpop.f32.mrf.mxu0
    %3120 = vmatprep.mubr.bf16.mxu0 %v1318
    %3121 = vmatmul.mubr.bf16.gmra.mxu0 %v1317
    %v3122 = vpop.f32.mrf.mxu0
    %v3123 = vadd.f32 0.0, %v3122
    %v3124 = vpop.f32.mrf.mxu0
    %v3125 = vpop.f32.mrf.mxu0
    %v3126 = vadd.f32 0.0, %v3125
    %v3127 = vpop.f32.mrf.mxu0
    %3128 = vmatprep.mubr.bf16.mxu0 %v1322
    %3129 = vmatmul.mubr.bf16.gmra.mxu0 %v1321
    %v3130 = vpop.f32.mrf.mxu0
    %v3131 = vadd.f32 0.0, %v3130
    %v3132 = vpop.f32.mrf.mxu0
    %v3133 = vpop.f32.mrf.mxu0
    %v3134 = vadd.f32 0.0, %v3133
    %v3135 = vpop.f32.mrf.mxu0
    %3136 = vmatprep.mubr.bf16.mxu0 %v1326
    %3137 = vmatmul.mubr.bf16.gmra.mxu0 %v1325
    %v3138 = vpop.f32.mrf.mxu0
    %v3139 = vadd.f32 0.0, %v3138
    %v3140 = vpop.f32.mrf.mxu0
    %v3141 = vpop.f32.mrf.mxu0
    %v3142 = vadd.f32 0.0, %v3141
    %v3143 = vpop.f32.mrf.mxu0
    %3144 = vmatprep.mubr.bf16.mxu0 %v1330
    %3145 = vmatmul.mubr.bf16.gmra.mxu0 %v1329
    %v3146 = vpop.f32.mrf.mxu0
    %v3147 = vadd.f32 0.0, %v3146
    %v3148 = vpop.f32.mrf.mxu0
    %v3149 = vpop.f32.mrf.mxu0
    %v3150 = vadd.f32 0.0, %v3149
    %v3151 = vpop.f32.mrf.mxu0
    %3152 = vmatprep.mubr.bf16.mxu0 %v1334
    %3153 = vmatmul.mubr.bf16.gmra.mxu0 %v1333
    %v3154 = vpop.f32.mrf.mxu0
    %v3155 = vadd.f32 0.0, %v3154
    %v3156 = vpop.f32.mrf.mxu0
    %v3157 = vpop.f32.mrf.mxu0
    %v3158 = vadd.f32 0.0, %v3157
    %v3159 = vpop.f32.mrf.mxu0
    %3160 = vmatprep.mubr.bf16.mxu0 %v1338
    %3161 = vmatmul.mubr.bf16.gmra.mxu0 %v1337
    %v3162 = vpop.f32.mrf.mxu0
    %v3163 = vadd.f32 0.0, %v3162
    %v3164 = vpop.f32.mrf.mxu0
    %v3165 = vpop.f32.mrf.mxu0
    %v3166 = vadd.f32 0.0, %v3165
    %v3167 = vpop.f32.mrf.mxu0
    %3168 = vmatprep.mubr.bf16.mxu0 %v1342
    %3169 = vmatmul.mubr.bf16.gmra.mxu0 %v1341
    %v3170 = vpop.f32.mrf.mxu0
    %v3171 = vadd.f32 0.0, %v3170
    %v3172 = vpop.f32.mrf.mxu0
    %v3173 = vpop.f32.mrf.mxu0
    %v3174 = vadd.f32 0.0, %v3173
    %v3175 = vpop.f32.mrf.mxu0
    %3176 = vmatprep.mubr.bf16.mxu0 %v1346
    %3177 = vmatmul.mubr.bf16.gmra.mxu0 %v1345
    %v3178 = vpop.f32.mrf.mxu0
    %v3179 = vadd.f32 0.0, %v3178
    %v3180 = vpop.f32.mrf.mxu0
    %v3181 = vpop.f32.mrf.mxu0
    %v3182 = vadd.f32 0.0, %v3181
    %v3183 = vpop.f32.mrf.mxu0
    %3184 = vmatprep.mubr.bf16.mxu0 %v1350
    %3185 = vmatmul.mubr.bf16.gmra.mxu0 %v1349
    %v3186 = vpop.f32.mrf.mxu0
    %v3187 = vadd.f32 0.0, %v3186
    %v3188 = vpop.f32.mrf.mxu0
    %v3189 = vpop.f32.mrf.mxu0
    %v3190 = vadd.f32 0.0, %v3189
    %v3191 = vpop.f32.mrf.mxu0
    %3192 = vmatprep.mubr.bf16.mxu0 %v1354
    %3193 = vmatmul.mubr.bf16.gmra.mxu0 %v1353
    %v3194 = vpop.f32.mrf.mxu0
    %v3195 = vadd.f32 0.0, %v3194
    %v3196 = vpop.f32.mrf.mxu0
    %v3197 = vpop.f32.mrf.mxu0
    %v3198 = vadd.f32 0.0, %v3197
    %v3199 = vpop.f32.mrf.mxu0
    %3200 = vmatprep.mubr.bf16.mxu0 %v1358
    %3201 = vmatmul.mubr.bf16.gmra.mxu0 %v1357
    %v3202 = vpop.f32.mrf.mxu0
    %v3203 = vadd.f32 0.0, %v3202
    %v3204 = vpop.f32.mrf.mxu0
    %v3205 = vpop.f32.mrf.mxu0
    %v3206 = vadd.f32 0.0, %v3205
    %v3207 = vpop.f32.mrf.mxu0
    %3208 = vmatprep.mubr.bf16.mxu0 %v1362
    %3209 = vmatmul.mubr.bf16.gmra.mxu0 %v1361
    %v3210 = vpop.f32.mrf.mxu0
    %v3211 = vadd.f32 0.0, %v3210
    %v3212 = vpop.f32.mrf.mxu0
    %v3213 = vpop.f32.mrf.mxu0
    %v3214 = vadd.f32 0.0, %v3213
    %v3215 = vpop.f32.mrf.mxu0
    %3216 = vmatprep.mubr.bf16.mxu0 %v1366
    %3217 = vmatmul.mubr.bf16.gmra.mxu0 %v1365
    %v3218 = vpop.f32.mrf.mxu0
    %v3219 = vadd.f32 0.0, %v3218
    %v3220 = vpop.f32.mrf.mxu0
    %v3221 = vpop.f32.mrf.mxu0
    %v3222 = vadd.f32 0.0, %v3221
    %v3223 = vpop.f32.mrf.mxu0
    %3224 = vmatprep.mubr.bf16.mxu0 %v1370
    %3225 = vmatmul.mubr.bf16.gmra.mxu0 %v1369
    %v3226 = vpop.f32.mrf.mxu0
    %v3227 = vadd.f32 0.0, %v3226
    %v3228 = vpop.f32.mrf.mxu0
    %v3229 = vpop.f32.mrf.mxu0
    %v3230 = vadd.f32 0.0, %v3229
    %v3231 = vpop.f32.mrf.mxu0
    %3232 = vmatprep.mubr.bf16.mxu0 %v1374
    %3233 = vmatmul.mubr.bf16.gmra.mxu0 %v1373
    %v3234 = vpop.f32.mrf.mxu0
    %v3235 = vadd.f32 0.0, %v3234
    %v3236 = vpop.f32.mrf.mxu0
    %v3237 = vpop.f32.mrf.mxu0
    %v3238 = vadd.f32 0.0, %v3237
    %v3239 = vpop.f32.mrf.mxu0
    %3240 = vmatprep.mubr.bf16.mxu0 %v1378
    %3241 = vmatmul.mubr.bf16.gmra.mxu0 %v1377
    %v3242 = vpop.f32.mrf.mxu0
    %v3243 = vadd.f32 0.0, %v3242
    %v3244 = vpop.f32.mrf.mxu0
    %v3245 = vpop.f32.mrf.mxu0
    %v3246 = vadd.f32 0.0, %v3245
    %v3247 = vpop.f32.mrf.mxu0
    %3248 = vmatprep.mubr.bf16.mxu0 %v1382
    %3249 = vmatmul.mubr.bf16.gmra.mxu0 %v1381
    %v3250 = vpop.f32.mrf.mxu0
    %v3251 = vadd.f32 0.0, %v3250
    %v3252 = vpop.f32.mrf.mxu0
    %v3253 = vpop.f32.mrf.mxu0
    %v3254 = vadd.f32 0.0, %v3253
    %v3255 = vpop.f32.mrf.mxu0
    %3256 = vmatprep.mubr.bf16.mxu0 %v1386
    %3257 = vmatmul.mubr.bf16.gmra.mxu0 %v1385
    %v3258 = vpop.f32.mrf.mxu0
    %v3259 = vadd.f32 0.0, %v3258
    %v3260 = vpop.f32.mrf.mxu0
    %v3261 = vpop.f32.mrf.mxu0
    %v3262 = vadd.f32 0.0, %v3261
    %v3263 = vpop.f32.mrf.mxu0
    %3264 = vmatprep.mubr.bf16.mxu0 %v1390
    %3265 = vmatmul.mubr.bf16.gmra.mxu0 %v1389
    %v3266 = vpop.f32.mrf.mxu0
    %v3267 = vadd.f32 0.0, %v3266
    %v3268 = vpop.f32.mrf.mxu0
    %v3269 = vpop.f32.mrf.mxu0
    %v3270 = vadd.f32 0.0, %v3269
    %v3271 = vpop.f32.mrf.mxu0
    %3272 = vmatprep.mubr.bf16.mxu0 %v1394
    %3273 = vmatmul.mubr.bf16.gmra.mxu0 %v1393
    %v3274 = vpop.f32.mrf.mxu0
    %v3275 = vadd.f32 0.0, %v3274
    %v3276 = vpop.f32.mrf.mxu0
    %v3277 = vpop.f32.mrf.mxu0
    %v3278 = vadd.f32 0.0, %v3277
    %v3279 = vpop.f32.mrf.mxu0
    %3280 = vmatprep.mubr.bf16.mxu0 %v1398
    %3281 = vmatmul.mubr.bf16.gmra.mxu0 %v1397
    %v3282 = vpop.f32.mrf.mxu0
    %v3283 = vadd.f32 0.0, %v3282
    %v3284 = vpop.f32.mrf.mxu0
    %v3285 = vpop.f32.mrf.mxu0
    %v3286 = vadd.f32 0.0, %v3285
    %v3287 = vpop.f32.mrf.mxu0
    %3288 = vmatprep.mubr.bf16.mxu0 %v1402
    %3289 = vmatmul.mubr.bf16.gmra.mxu0 %v1401
    %v3290 = vpop.f32.mrf.mxu0
    %v3291 = vadd.f32 0.0, %v3290
    %v3292 = vpop.f32.mrf.mxu0
    %v3293 = vpop.f32.mrf.mxu0
    %v3294 = vadd.f32 0.0, %v3293
    %v3295 = vpop.f32.mrf.mxu0
    %3296 = vmatprep.mubr.bf16.mxu0 %v1406
    %3297 = vmatmul.mubr.bf16.gmra.mxu0 %v1405
    %v3298 = vpop.f32.mrf.mxu0
    %v3299 = vadd.f32 0.0, %v3298
    %v3300 = vpop.f32.mrf.mxu0
    %v3301 = vpop.f32.mrf.mxu0
    %v3302 = vadd.f32 0.0, %v3301
    %v3303 = vpop.f32.mrf.mxu0
    %3304 = vmatprep.mubr.bf16.mxu0 %v1410
    %3305 = vmatmul.mubr.bf16.gmra.mxu0 %v1409
    %v3306 = vpop.f32.mrf.mxu0
    %v3307 = vadd.f32 0.0, %v3306
    %v3308 = vpop.f32.mrf.mxu0
    %v3309 = vpop.f32.mrf.mxu0
    %v3310 = vadd.f32 0.0, %v3309
    %v3311 = vpop.f32.mrf.mxu0
    %3312 = vdwg.mxu0
    %3313 = vmatprep.subr.bf16.mxu0 0
    %3314 = vmatpush1.bf16.msra.mxu0 %v2999
    %3315 = vmatprep.subr.bf16.mxu0 0
    %3316 = vmatpush1.bf16.msra.mxu0 %v2998
    %3317 = vmatprep.subr.bf16.mxu0 0
    %3318 = vmatpush1.bf16.msra.mxu0 %v2997
    %3319 = vmatprep.subr.bf16.mxu0 0
    %3320 = vmatpush1.bf16.msra.mxu0 %v2996
    %3321 = vmatprep.subr.bf16.mxu0 0
    %3322 = vmatpush1.bf16.msra.mxu0 %v2995
    %3323 = vmatprep.subr.bf16.mxu0 0
    %3324 = vmatpush1.bf16.msra.mxu0 %v2994
    %3325 = vmatprep.subr.bf16.mxu0 0
    %3326 = vmatpush1.bf16.msra.mxu0 %v2993
    %3327 = vmatprep.subr.bf16.mxu0 0
    %3328 = vmatpush1.bf16.msra.mxu0 %v2992
    %3329 = vmatprep.subr.bf16.mxu0 0
    %3330 = vmatpush2.bf16.msra.mxu0 %v3007
    %3331 = vmatprep.subr.bf16.mxu0 0
    %3332 = vmatpush2.bf16.msra.mxu0 %v3006
    %3333 = vmatprep.subr.bf16.mxu0 0
    %3334 = vmatpush2.bf16.msra.mxu0 %v3005
    %3335 = vmatprep.subr.bf16.mxu0 0
    %3336 = vmatpush2.bf16.msra.mxu0 %v3004
    %3337 = vmatprep.subr.bf16.mxu0 0
    %3338 = vmatpush2.bf16.msra.mxu0 %v3003
    %3339 = vmatprep.subr.bf16.mxu0 0
    %3340 = vmatpush2.bf16.msra.mxu0 %v3002
    %3341 = vmatprep.subr.bf16.mxu0 0
    %3342 = vmatpush2.bf16.msra.mxu0 %v3001
    %3343 = vmatprep.subr.bf16.mxu0 0
    %3344 = vmatpush2.bf16.msra.mxu0 %v3000
    %3345 = vmatprep.mubr.bf16.mxu0 %v1288
    %3346 = vmatmul.mubr.bf16.gmra.mxu0 %v1287
    %v3347 = vpop.f32.mrf.mxu0
    %v3348 = vadd.f32 %v3059, %v3347
    %v3349 = vpop.f32.mrf.mxu0
    %v3350 = vpop.f32.mrf.mxu0
    %v3351 = vadd.f32 %v3062, %v3350
    %v3352 = vpop.f32.mrf.mxu0
    %3353 = vmatprep.mubr.bf16.mxu0 %v1292
    %3354 = vmatmul.mubr.bf16.gmra.mxu0 %v1291
    %v3355 = vpop.f32.mrf.mxu0
    %v3356 = vadd.f32 %v3067, %v3355
    %v3357 = vpop.f32.mrf.mxu0
    %v3358 = vpop.f32.mrf.mxu0
    %v3359 = vadd.f32 %v3070, %v3358
    %v3360 = vpop.f32.mrf.mxu0
    %3361 = vmatprep.mubr.bf16.mxu0 %v1296
    %3362 = vmatmul.mubr.bf16.gmra.mxu0 %v1295
    %v3363 = vpop.f32.mrf.mxu0
    %v3364 = vadd.f32 %v3075, %v3363
    %v3365 = vpop.f32.mrf.mxu0
    %v3366 = vpop.f32.mrf.mxu0
    %v3367 = vadd.f32 %v3078, %v3366
    %v3368 = vpop.f32.mrf.mxu0
    %3369 = vmatprep.mubr.bf16.mxu0 %v1300
    %3370 = vmatmul.mubr.bf16.gmra.mxu0 %v1299
    %v3371 = vpop.f32.mrf.mxu0
    %v3372 = vadd.f32 %v3083, %v3371
    %v3373 = vpop.f32.mrf.mxu0
    %v3374 = vpop.f32.mrf.mxu0
    %v3375 = vadd.f32 %v3086, %v3374
    %v3376 = vpop.f32.mrf.mxu0
    %3377 = vmatprep.mubr.bf16.mxu0 %v1304
    %3378 = vmatmul.mubr.bf16.gmra.mxu0 %v1303
    %v3379 = vpop.f32.mrf.mxu0
    %v3380 = vadd.f32 %v3091, %v3379
    %v3381 = vpop.f32.mrf.mxu0
    %v3382 = vpop.f32.mrf.mxu0
    %v3383 = vadd.f32 %v3094, %v3382
    %v3384 = vpop.f32.mrf.mxu0
    %3385 = vmatprep.mubr.bf16.mxu0 %v1308
    %3386 = vmatmul.mubr.bf16.gmra.mxu0 %v1307
    %v3387 = vpop.f32.mrf.mxu0
    %v3388 = vadd.f32 %v3099, %v3387
    %v3389 = vpop.f32.mrf.mxu0
    %v3390 = vpop.f32.mrf.mxu0
    %v3391 = vadd.f32 %v3102, %v3390
    %v3392 = vpop.f32.mrf.mxu0
    %3393 = vmatprep.mubr.bf16.mxu0 %v1312
    %3394 = vmatmul.mubr.bf16.gmra.mxu0 %v1311
    %v3395 = vpop.f32.mrf.mxu0
    %v3396 = vadd.f32 %v3107, %v3395
    %v3397 = vpop.f32.mrf.mxu0
    %v3398 = vpop.f32.mrf.mxu0
    %v3399 = vadd.f32 %v3110, %v3398
    %v3400 = vpop.f32.mrf.mxu0
    %3401 = vmatprep.mubr.bf16.mxu0 %v1316
    %3402 = vmatmul.mubr.bf16.gmra.mxu0 %v1315
    %v3403 = vpop.f32.mrf.mxu0
    %v3404 = vadd.f32 %v3115, %v3403
    %v3405 = vpop.f32.mrf.mxu0
    %v3406 = vpop.f32.mrf.mxu0
    %v3407 = vadd.f32 %v3118, %v3406
    %v3408 = vpop.f32.mrf.mxu0
    %3409 = vmatprep.mubr.bf16.mxu0 %v1320
    %3410 = vmatmul.mubr.bf16.gmra.mxu0 %v1319
    %v3411 = vpop.f32.mrf.mxu0
    %v3412 = vadd.f32 %v3123, %v3411
    %v3413 = vpop.f32.mrf.mxu0
    %v3414 = vpop.f32.mrf.mxu0
    %v3415 = vadd.f32 %v3126, %v3414
    %v3416 = vpop.f32.mrf.mxu0
    %3417 = vmatprep.mubr.bf16.mxu0 %v1324
    %3418 = vmatmul.mubr.bf16.gmra.mxu0 %v1323
    %v3419 = vpop.f32.mrf.mxu0
    %v3420 = vadd.f32 %v3131, %v3419
    %v3421 = vpop.f32.mrf.mxu0
    %v3422 = vpop.f32.mrf.mxu0
    %v3423 = vadd.f32 %v3134, %v3422
    %v3424 = vpop.f32.mrf.mxu0
    %3425 = vmatprep.mubr.bf16.mxu0 %v1328
    %3426 = vmatmul.mubr.bf16.gmra.mxu0 %v1327
    %v3427 = vpop.f32.mrf.mxu0
    %v3428 = vadd.f32 %v3139, %v3427
    %v3429 = vpop.f32.mrf.mxu0
    %v3430 = vpop.f32.mrf.mxu0
    %v3431 = vadd.f32 %v3142, %v3430
    %v3432 = vpop.f32.mrf.mxu0
    %3433 = vmatprep.mubr.bf16.mxu0 %v1332
    %3434 = vmatmul.mubr.bf16.gmra.mxu0 %v1331
    %v3435 = vpop.f32.mrf.mxu0
    %v3436 = vadd.f32 %v3147, %v3435
    %v3437 = vpop.f32.mrf.mxu0
    %v3438 = vpop.f32.mrf.mxu0
    %v3439 = vadd.f32 %v3150, %v3438
    %v3440 = vpop.f32.mrf.mxu0
    %3441 = vmatprep.mubr.bf16.mxu0 %v1336
    %3442 = vmatmul.mubr.bf16.gmra.mxu0 %v1335
    %v3443 = vpop.f32.mrf.mxu0
    %v3444 = vadd.f32 %v3155, %v3443
    %v3445 = vpop.f32.mrf.mxu0
    %v3446 = vpop.f32.mrf.mxu0
    %v3447 = vadd.f32 %v3158, %v3446
    %v3448 = vpop.f32.mrf.mxu0
    %3449 = vmatprep.mubr.bf16.mxu0 %v1340
    %3450 = vmatmul.mubr.bf16.gmra.mxu0 %v1339
    %v3451 = vpop.f32.mrf.mxu0
    %v3452 = vadd.f32 %v3163, %v3451
    %v3453 = vpop.f32.mrf.mxu0
    %v3454 = vpop.f32.mrf.mxu0
    %v3455 = vadd.f32 %v3166, %v3454
    %v3456 = vpop.f32.mrf.mxu0
    %3457 = vmatprep.mubr.bf16.mxu0 %v1344
    %3458 = vmatmul.mubr.bf16.gmra.mxu0 %v1343
    %v3459 = vpop.f32.mrf.mxu0
    %v3460 = vadd.f32 %v3171, %v3459
    %v3461 = vpop.f32.mrf.mxu0
    %v3462 = vpop.f32.mrf.mxu0
    %v3463 = vadd.f32 %v3174, %v3462
    %v3464 = vpop.f32.mrf.mxu0
    %3465 = vmatprep.mubr.bf16.mxu0 %v1348
    %3466 = vmatmul.mubr.bf16.gmra.mxu0 %v1347
    %v3467 = vpop.f32.mrf.mxu0
    %v3468 = vadd.f32 %v3179, %v3467
    %v3469 = vpop.f32.mrf.mxu0
    %v3470 = vpop.f32.mrf.mxu0
    %v3471 = vadd.f32 %v3182, %v3470
    %v3472 = vpop.f32.mrf.mxu0
    %3473 = vmatprep.mubr.bf16.mxu0 %v1352
    %3474 = vmatmul.mubr.bf16.gmra.mxu0 %v1351
    %v3475 = vpop.f32.mrf.mxu0
    %v3476 = vadd.f32 %v3187, %v3475
    %v3477 = vpop.f32.mrf.mxu0
    %v3478 = vpop.f32.mrf.mxu0
    %v3479 = vadd.f32 %v3190, %v3478
    %v3480 = vpop.f32.mrf.mxu0
    %3481 = vmatprep.mubr.bf16.mxu0 %v1356
    %3482 = vmatmul.mubr.bf16.gmra.mxu0 %v1355
    %v3483 = vpop.f32.mrf.mxu0
    %v3484 = vadd.f32 %v3195, %v3483
    %v3485 = vpop.f32.mrf.mxu0
    %v3486 = vpop.f32.mrf.mxu0
    %v3487 = vadd.f32 %v3198, %v3486
    %v3488 = vpop.f32.mrf.mxu0
    %3489 = vmatprep.mubr.bf16.mxu0 %v1360
    %3490 = vmatmul.mubr.bf16.gmra.mxu0 %v1359
    %v3491 = vpop.f32.mrf.mxu0
    %v3492 = vadd.f32 %v3203, %v3491
    %v3493 = vpop.f32.mrf.mxu0
    %v3494 = vpop.f32.mrf.mxu0
    %v3495 = vadd.f32 %v3206, %v3494
    %v3496 = vpop.f32.mrf.mxu0
    %3497 = vmatprep.mubr.bf16.mxu0 %v1364
    %3498 = vmatmul.mubr.bf16.gmra.mxu0 %v1363
    %v3499 = vpop.f32.mrf.mxu0
    %v3500 = vadd.f32 %v3211, %v3499
    %v3501 = vpop.f32.mrf.mxu0
    %v3502 = vpop.f32.mrf.mxu0
    %v3503 = vadd.f32 %v3214, %v3502
    %v3504 = vpop.f32.mrf.mxu0
    %3505 = vmatprep.mubr.bf16.mxu0 %v1368
    %3506 = vmatmul.mubr.bf16.gmra.mxu0 %v1367
    %v3507 = vpop.f32.mrf.mxu0
    %v3508 = vadd.f32 %v3219, %v3507
    %v3509 = vpop.f32.mrf.mxu0
    %v3510 = vpop.f32.mrf.mxu0
    %v3511 = vadd.f32 %v3222, %v3510
    %v3512 = vpop.f32.mrf.mxu0
    %3513 = vmatprep.mubr.bf16.mxu0 %v1372
    %3514 = vmatmul.mubr.bf16.gmra.mxu0 %v1371
    %v3515 = vpop.f32.mrf.mxu0
    %v3516 = vadd.f32 %v3227, %v3515
    %v3517 = vpop.f32.mrf.mxu0
    %v3518 = vpop.f32.mrf.mxu0
    %v3519 = vadd.f32 %v3230, %v3518
    %v3520 = vpop.f32.mrf.mxu0
    %3521 = vmatprep.mubr.bf16.mxu0 %v1376
    %3522 = vmatmul.mubr.bf16.gmra.mxu0 %v1375
    %v3523 = vpop.f32.mrf.mxu0
    %v3524 = vadd.f32 %v3235, %v3523
    %v3525 = vpop.f32.mrf.mxu0
    %v3526 = vpop.f32.mrf.mxu0
    %v3527 = vadd.f32 %v3238, %v3526
    %v3528 = vpop.f32.mrf.mxu0
    %3529 = vmatprep.mubr.bf16.mxu0 %v1380
    %3530 = vmatmul.mubr.bf16.gmra.mxu0 %v1379
    %v3531 = vpop.f32.mrf.mxu0
    %v3532 = vadd.f32 %v3243, %v3531
    %v3533 = vpop.f32.mrf.mxu0
    %v3534 = vpop.f32.mrf.mxu0
    %v3535 = vadd.f32 %v3246, %v3534
    %v3536 = vpop.f32.mrf.mxu0
    %3537 = vmatprep.mubr.bf16.mxu0 %v1384
    %3538 = vmatmul.mubr.bf16.gmra.mxu0 %v1383
    %v3539 = vpop.f32.mrf.mxu0
    %v3540 = vadd.f32 %v3251, %v3539
    %v3541 = vpop.f32.mrf.mxu0
    %v3542 = vpop.f32.mrf.mxu0
    %v3543 = vadd.f32 %v3254, %v3542
    %v3544 = vpop.f32.mrf.mxu0
    %3545 = vmatprep.mubr.bf16.mxu0 %v1388
    %3546 = vmatmul.mubr.bf16.gmra.mxu0 %v1387
    %v3547 = vpop.f32.mrf.mxu0
    %v3548 = vadd.f32 %v3259, %v3547
    %v3549 = vpop.f32.mrf.mxu0
    %v3550 = vpop.f32.mrf.mxu0
    %v3551 = vadd.f32 %v3262, %v3550
    %v3552 = vpop.f32.mrf.mxu0
    %3553 = vmatprep.mubr.bf16.mxu0 %v1392
    %3554 = vmatmul.mubr.bf16.gmra.mxu0 %v1391
    %v3555 = vpop.f32.mrf.mxu0
    %v3556 = vadd.f32 %v3267, %v3555
    %v3557 = vpop.f32.mrf.mxu0
    %v3558 = vpop.f32.mrf.mxu0
    %v3559 = vadd.f32 %v3270, %v3558
    %v3560 = vpop.f32.mrf.mxu0
    %3561 = vmatprep.mubr.bf16.mxu0 %v1396
    %3562 = vmatmul.mubr.bf16.gmra.mxu0 %v1395
    %v3563 = vpop.f32.mrf.mxu0
    %v3564 = vadd.f32 %v3275, %v3563
    %v3565 = vpop.f32.mrf.mxu0
    %v3566 = vpop.f32.mrf.mxu0
    %v3567 = vadd.f32 %v3278, %v3566
    %v3568 = vpop.f32.mrf.mxu0
    %3569 = vmatprep.mubr.bf16.mxu0 %v1400
    %3570 = vmatmul.mubr.bf16.gmra.mxu0 %v1399
    %v3571 = vpop.f32.mrf.mxu0
    %v3572 = vadd.f32 %v3283, %v3571
    %v3573 = vpop.f32.mrf.mxu0
    %v3574 = vpop.f32.mrf.mxu0
    %v3575 = vadd.f32 %v3286, %v3574
    %v3576 = vpop.f32.mrf.mxu0
    %3577 = vmatprep.mubr.bf16.mxu0 %v1404
    %3578 = vmatmul.mubr.bf16.gmra.mxu0 %v1403
    %v3579 = vpop.f32.mrf.mxu0
    %v3580 = vadd.f32 %v3291, %v3579
    %v3581 = vpop.f32.mrf.mxu0
    %v3582 = vpop.f32.mrf.mxu0
    %v3583 = vadd.f32 %v3294, %v3582
    %v3584 = vpop.f32.mrf.mxu0
    %3585 = vmatprep.mubr.bf16.mxu0 %v1408
    %3586 = vmatmul.mubr.bf16.gmra.mxu0 %v1407
    %v3587 = vpop.f32.mrf.mxu0
    %v3588 = vadd.f32 %v3299, %v3587
    %v3589 = vpop.f32.mrf.mxu0
    %v3590 = vpop.f32.mrf.mxu0
    %v3591 = vadd.f32 %v3302, %v3590
    %v3592 = vpop.f32.mrf.mxu0
    %3593 = vmatprep.mubr.bf16.mxu0 %v1412
    %3594 = vmatmul.mubr.bf16.gmra.mxu0 %v1411
    %v3595 = vpop.f32.mrf.mxu0
    %v3596 = vadd.f32 %v3307, %v3595
    %v3597 = vpop.f32.mrf.mxu0
    %v3598 = vpop.f32.mrf.mxu0
    %v3599 = vadd.f32 %v3310, %v3598
    %v3600 = vpop.f32.mrf.mxu0
    %3601 = vdwg.mxu0
    %v3618 = vunpack.c.l.b16 %v3008
    %v3619 = vunpack.c.l.b16 %v3009
    %v3620 = vunpack.c.l.b16 %v3010
    %v3621 = vunpack.c.l.b16 %v3011
    %v3622 = vunpack.c.l.b16 %v3012
    %v3623 = vunpack.c.l.b16 %v3013
    %v3624 = vunpack.c.l.b16 %v3014
    %v3625 = vunpack.c.l.b16 %v3015
    %v3626 = vunpack.c.l.b16 %v3016
    %v3627 = vunpack.c.l.b16 %v3017
    %v3628 = vunpack.c.l.b16 %v3018
    %v3629 = vunpack.c.l.b16 %v3019
    %v3630 = vunpack.c.l.b16 %v3020
    %v3631 = vunpack.c.l.b16 %v3021
    %v3632 = vunpack.c.l.b16 %v3022
    %v3633 = vunpack.c.l.b16 %v3023
    %v3634 = vpack.c.b16 %v3619, %v3618
    %v3635 = vpack.c.b16 %v3621, %v3620
    %v3636 = vpack.c.b16 %v3623, %v3622
    %v3637 = vpack.c.b16 %v3625, %v3624
    %v3638 = vpack.c.b16 %v3627, %v3626
    %v3639 = vpack.c.b16 %v3629, %v3628
    %v3640 = vpack.c.b16 %v3631, %v3630
    %v3641 = vpack.c.b16 %v3633, %v3632
    %3650 = vmatprep.subr.bf16.mxu0 0
    %3651 = vmatpush1.bf16.msra.mxu0 %v3641
    %3652 = vmatprep.subr.bf16.mxu0 0
    %3653 = vmatpush1.bf16.msra.mxu0 %v3640
    %3654 = vmatprep.subr.bf16.mxu0 0
    %3655 = vmatpush1.bf16.msra.mxu0 %v3639
    %3656 = vmatprep.subr.bf16.mxu0 0
    %3657 = vmatpush1.bf16.msra.mxu0 %v3638
    %3658 = vmatprep.subr.bf16.mxu0 0
    %3659 = vmatpush1.bf16.msra.mxu0 %v3637
    %3660 = vmatprep.subr.bf16.mxu0 0
    %3661 = vmatpush1.bf16.msra.mxu0 %v3636
    %3662 = vmatprep.subr.bf16.mxu0 0
    %3663 = vmatpush1.bf16.msra.mxu0 %v3635
    %3664 = vmatprep.subr.bf16.mxu0 0
    %3665 = vmatpush1.bf16.msra.mxu0 %v3634
    %3666 = vmatprep.subr.bf16.mxu0 0
    %3667 = vmatpush2.bf16.msra.mxu0 0
    %3668 = vmatprep.subr.bf16.mxu0 0
    %3669 = vmatpush2.bf16.msra.mxu0 0
    %3670 = vmatprep.subr.bf16.mxu0 0
    %3671 = vmatpush2.bf16.msra.mxu0 0
    %3672 = vmatprep.subr.bf16.mxu0 0
    %3673 = vmatpush2.bf16.msra.mxu0 0
    %3674 = vmatprep.subr.bf16.mxu0 0
    %3675 = vmatpush2.bf16.msra.mxu0 0
    %3676 = vmatprep.subr.bf16.mxu0 0
    %3677 = vmatpush2.bf16.msra.mxu0 0
    %3678 = vmatprep.subr.bf16.mxu0 0
    %3679 = vmatpush2.bf16.msra.mxu0 0
    %3680 = vmatprep.subr.bf16.mxu0 0
    %3681 = vmatpush2.bf16.msra.mxu0 0
    %3682 = vmatprep.mubr.bf16.mxu0 0
    %3683 = vmatmul.mubr.bf16.gmra.mxu0 %v2591
    %v3684 = vpop.f32.mrf.mxu0
    %v3685 = vadd.f32 %v3348, %v3684
    %v3686 = vpop.f32.mrf.mxu0
    %v3687 = vpop.f32.mrf.mxu0
    %v3688 = vadd.f32 %v3351, %v3687
    %v3689 = vpop.f32.mrf.mxu0
    %3690 = vmatprep.mubr.bf16.mxu0 0
    %3691 = vmatmul.mubr.bf16.gmra.mxu0 %v2592
    %v3692 = vpop.f32.mrf.mxu0
    %v3693 = vadd.f32 %v3356, %v3692
    %v3694 = vpop.f32.mrf.mxu0
    %v3695 = vpop.f32.mrf.mxu0
    %v3696 = vadd.f32 %v3359, %v3695
    %v3697 = vpop.f32.mrf.mxu0
    %3698 = vmatprep.mubr.bf16.mxu0 0
    %3699 = vmatmul.mubr.bf16.gmra.mxu0 %v2593
    %v3700 = vpop.f32.mrf.mxu0
    %v3701 = vadd.f32 %v3364, %v3700
    %v3702 = vpop.f32.mrf.mxu0
    %v3703 = vpop.f32.mrf.mxu0
    %v3704 = vadd.f32 %v3367, %v3703
    %v3705 = vpop.f32.mrf.mxu0
    %3706 = vmatprep.mubr.bf16.mxu0 0
    %3707 = vmatmul.mubr.bf16.gmra.mxu0 %v2594
    %v3708 = vpop.f32.mrf.mxu0
    %v3709 = vadd.f32 %v3372, %v3708
    %v3710 = vpop.f32.mrf.mxu0
    %v3711 = vpop.f32.mrf.mxu0
    %v3712 = vadd.f32 %v3375, %v3711
    %v3713 = vpop.f32.mrf.mxu0
    %3714 = vmatprep.mubr.bf16.mxu0 0
    %3715 = vmatmul.mubr.bf16.gmra.mxu0 %v2595
    %v3716 = vpop.f32.mrf.mxu0
    %v3717 = vadd.f32 %v3380, %v3716
    %v3718 = vpop.f32.mrf.mxu0
    %v3719 = vpop.f32.mrf.mxu0
    %v3720 = vadd.f32 %v3383, %v3719
    %v3721 = vpop.f32.mrf.mxu0
    %3722 = vmatprep.mubr.bf16.mxu0 0
    %3723 = vmatmul.mubr.bf16.gmra.mxu0 %v2596
    %v3724 = vpop.f32.mrf.mxu0
    %v3725 = vadd.f32 %v3388, %v3724
    %v3726 = vpop.f32.mrf.mxu0
    %v3727 = vpop.f32.mrf.mxu0
    %v3728 = vadd.f32 %v3391, %v3727
    %v3729 = vpop.f32.mrf.mxu0
    %3730 = vmatprep.mubr.bf16.mxu0 0
    %3731 = vmatmul.mubr.bf16.gmra.mxu0 %v2597
    %v3732 = vpop.f32.mrf.mxu0
    %v3733 = vadd.f32 %v3396, %v3732
    %v3734 = vpop.f32.mrf.mxu0
    %v3735 = vpop.f32.mrf.mxu0
    %v3736 = vadd.f32 %v3399, %v3735
    %v3737 = vpop.f32.mrf.mxu0
    %3738 = vmatprep.mubr.bf16.mxu0 0
    %3739 = vmatmul.mubr.bf16.gmra.mxu0 %v2598
    %v3740 = vpop.f32.mrf.mxu0
    %v3741 = vadd.f32 %v3404, %v3740
    %v3742 = vpop.f32.mrf.mxu0
    %v3743 = vpop.f32.mrf.mxu0
    %v3744 = vadd.f32 %v3407, %v3743
    %v3745 = vpop.f32.mrf.mxu0
    %3746 = vmatprep.mubr.bf16.mxu0 0
    %3747 = vmatmul.mubr.bf16.gmra.mxu0 %v2599
    %v3748 = vpop.f32.mrf.mxu0
    %v3749 = vadd.f32 %v3412, %v3748
    %v3750 = vpop.f32.mrf.mxu0
    %v3751 = vpop.f32.mrf.mxu0
    %v3752 = vadd.f32 %v3415, %v3751
    %v3753 = vpop.f32.mrf.mxu0
    %3754 = vmatprep.mubr.bf16.mxu0 0
    %3755 = vmatmul.mubr.bf16.gmra.mxu0 %v2600
    %v3756 = vpop.f32.mrf.mxu0
    %v3757 = vadd.f32 %v3420, %v3756
    %v3758 = vpop.f32.mrf.mxu0
    %v3759 = vpop.f32.mrf.mxu0
    %v3760 = vadd.f32 %v3423, %v3759
    %v3761 = vpop.f32.mrf.mxu0
    %3762 = vmatprep.mubr.bf16.mxu0 0
    %3763 = vmatmul.mubr.bf16.gmra.mxu0 %v2601
    %v3764 = vpop.f32.mrf.mxu0
    %v3765 = vadd.f32 %v3428, %v3764
    %v3766 = vpop.f32.mrf.mxu0
    %v3767 = vpop.f32.mrf.mxu0
    %v3768 = vadd.f32 %v3431, %v3767
    %v3769 = vpop.f32.mrf.mxu0
    %3770 = vmatprep.mubr.bf16.mxu0 0
    %3771 = vmatmul.mubr.bf16.gmra.mxu0 %v2602
    %v3772 = vpop.f32.mrf.mxu0
    %v3773 = vadd.f32 %v3436, %v3772
    %v3774 = vpop.f32.mrf.mxu0
    %v3775 = vpop.f32.mrf.mxu0
    %v3776 = vadd.f32 %v3439, %v3775
    %v3777 = vpop.f32.mrf.mxu0
    %3778 = vmatprep.mubr.bf16.mxu0 0
    %3779 = vmatmul.mubr.bf16.gmra.mxu0 %v2603
    %v3780 = vpop.f32.mrf.mxu0
    %v3781 = vadd.f32 %v3444, %v3780
    %v3782 = vpop.f32.mrf.mxu0
    %v3783 = vpop.f32.mrf.mxu0
    %v3784 = vadd.f32 %v3447, %v3783
    %v3785 = vpop.f32.mrf.mxu0
    %3786 = vmatprep.mubr.bf16.mxu0 0
    %3787 = vmatmul.mubr.bf16.gmra.mxu0 %v2604
    %v3788 = vpop.f32.mrf.mxu0
    %v3789 = vadd.f32 %v3452, %v3788
    %v3790 = vpop.f32.mrf.mxu0
    %v3791 = vpop.f32.mrf.mxu0
    %v3792 = vadd.f32 %v3455, %v3791
    %v3793 = vpop.f32.mrf.mxu0
    %3794 = vmatprep.mubr.bf16.mxu0 0
    %3795 = vmatmul.mubr.bf16.gmra.mxu0 %v2605
    %v3796 = vpop.f32.mrf.mxu0
    %v3797 = vadd.f32 %v3460, %v3796
    %v3798 = vpop.f32.mrf.mxu0
    %v3799 = vpop.f32.mrf.mxu0
    %v3800 = vadd.f32 %v3463, %v3799
    %v3801 = vpop.f32.mrf.mxu0
    %3802 = vmatprep.mubr.bf16.mxu0 0
    %3803 = vmatmul.mubr.bf16.gmra.mxu0 %v2606
    %v3804 = vpop.f32.mrf.mxu0
    %v3805 = vadd.f32 %v3468, %v3804
    %v3806 = vpop.f32.mrf.mxu0
    %v3807 = vpop.f32.mrf.mxu0
    %v3808 = vadd.f32 %v3471, %v3807
    %v3809 = vpop.f32.mrf.mxu0
    %3810 = vmatprep.mubr.bf16.mxu0 0
    %3811 = vmatmul.mubr.bf16.gmra.mxu0 %v2607
    %v3812 = vpop.f32.mrf.mxu0
    %v3813 = vadd.f32 %v3476, %v3812
    %v3814 = vpop.f32.mrf.mxu0
    %v3815 = vpop.f32.mrf.mxu0
    %v3816 = vadd.f32 %v3479, %v3815
    %v3817 = vpop.f32.mrf.mxu0
    %3818 = vmatprep.mubr.bf16.mxu0 0
    %3819 = vmatmul.mubr.bf16.gmra.mxu0 %v2608
    %v3820 = vpop.f32.mrf.mxu0
    %v3821 = vadd.f32 %v3484, %v3820
    %v3822 = vpop.f32.mrf.mxu0
    %v3823 = vpop.f32.mrf.mxu0
    %v3824 = vadd.f32 %v3487, %v3823
    %v3825 = vpop.f32.mrf.mxu0
    %3826 = vmatprep.mubr.bf16.mxu0 0
    %3827 = vmatmul.mubr.bf16.gmra.mxu0 %v2609
    %v3828 = vpop.f32.mrf.mxu0
    %v3829 = vadd.f32 %v3492, %v3828
    %v3830 = vpop.f32.mrf.mxu0
    %v3831 = vpop.f32.mrf.mxu0
    %v3832 = vadd.f32 %v3495, %v3831
    %v3833 = vpop.f32.mrf.mxu0
    %3834 = vmatprep.mubr.bf16.mxu0 0
    %3835 = vmatmul.mubr.bf16.gmra.mxu0 %v2610
    %v3836 = vpop.f32.mrf.mxu0
    %v3837 = vadd.f32 %v3500, %v3836
    %v3838 = vpop.f32.mrf.mxu0
    %v3839 = vpop.f32.mrf.mxu0
    %v3840 = vadd.f32 %v3503, %v3839
    %v3841 = vpop.f32.mrf.mxu0
    %3842 = vmatprep.mubr.bf16.mxu0 0
    %3843 = vmatmul.mubr.bf16.gmra.mxu0 %v2611
    %v3844 = vpop.f32.mrf.mxu0
    %v3845 = vadd.f32 %v3508, %v3844
    %v3846 = vpop.f32.mrf.mxu0
    %v3847 = vpop.f32.mrf.mxu0
    %v3848 = vadd.f32 %v3511, %v3847
    %v3849 = vpop.f32.mrf.mxu0
    %3850 = vmatprep.mubr.bf16.mxu0 0
    %3851 = vmatmul.mubr.bf16.gmra.mxu0 %v2612
    %v3852 = vpop.f32.mrf.mxu0
    %v3853 = vadd.f32 %v3516, %v3852
    %v3854 = vpop.f32.mrf.mxu0
    %v3855 = vpop.f32.mrf.mxu0
    %v3856 = vadd.f32 %v3519, %v3855
    %v3857 = vpop.f32.mrf.mxu0
    %3858 = vmatprep.mubr.bf16.mxu0 0
    %3859 = vmatmul.mubr.bf16.gmra.mxu0 %v2613
    %v3860 = vpop.f32.mrf.mxu0
    %v3861 = vadd.f32 %v3524, %v3860
    %v3862 = vpop.f32.mrf.mxu0
    %v3863 = vpop.f32.mrf.mxu0
    %v3864 = vadd.f32 %v3527, %v3863
    %v3865 = vpop.f32.mrf.mxu0
    %3866 = vmatprep.mubr.bf16.mxu0 0
    %3867 = vmatmul.mubr.bf16.gmra.mxu0 %v2614
    %v3868 = vpop.f32.mrf.mxu0
    %v3869 = vadd.f32 %v3532, %v3868
    %v3870 = vpop.f32.mrf.mxu0
    %v3871 = vpop.f32.mrf.mxu0
    %v3872 = vadd.f32 %v3535, %v3871
    %v3873 = vpop.f32.mrf.mxu0
    %3874 = vmatprep.mubr.bf16.mxu0 0
    %3875 = vmatmul.mubr.bf16.gmra.mxu0 %v2615
    %v3876 = vpop.f32.mrf.mxu0
    %v3877 = vadd.f32 %v3540, %v3876
    %v3878 = vpop.f32.mrf.mxu0
    %v3879 = vpop.f32.mrf.mxu0
    %v3880 = vadd.f32 %v3543, %v3879
    %v3881 = vpop.f32.mrf.mxu0
    %3882 = vmatprep.mubr.bf16.mxu0 0
    %3883 = vmatmul.mubr.bf16.gmra.mxu0 %v2616
    %v3884 = vpop.f32.mrf.mxu0
    %v3885 = vadd.f32 %v3548, %v3884
    %v3886 = vpop.f32.mrf.mxu0
    %v3887 = vpop.f32.mrf.mxu0
    %v3888 = vadd.f32 %v3551, %v3887
    %v3889 = vpop.f32.mrf.mxu0
    %3890 = vmatprep.mubr.bf16.mxu0 0
    %3891 = vmatmul.mubr.bf16.gmra.mxu0 %v2617
    %v3892 = vpop.f32.mrf.mxu0
    %v3893 = vadd.f32 %v3556, %v3892
    %v3894 = vpop.f32.mrf.mxu0
    %v3895 = vpop.f32.mrf.mxu0
    %v3896 = vadd.f32 %v3559, %v3895
    %v3897 = vpop.f32.mrf.mxu0
    %3898 = vmatprep.mubr.bf16.mxu0 0
    %3899 = vmatmul.mubr.bf16.gmra.mxu0 %v2618
    %v3900 = vpop.f32.mrf.mxu0
    %v3901 = vadd.f32 %v3564, %v3900
    %v3902 = vpop.f32.mrf.mxu0
    %v3903 = vpop.f32.mrf.mxu0
    %v3904 = vadd.f32 %v3567, %v3903
    %v3905 = vpop.f32.mrf.mxu0
    %3906 = vmatprep.mubr.bf16.mxu0 0
    %3907 = vmatmul.mubr.bf16.gmra.mxu0 %v2619
    %v3908 = vpop.f32.mrf.mxu0
    %v3909 = vadd.f32 %v3572, %v3908
    %v3910 = vpop.f32.mrf.mxu0
    %v3911 = vpop.f32.mrf.mxu0
    %v3912 = vadd.f32 %v3575, %v3911
    %v3913 = vpop.f32.mrf.mxu0
    %3914 = vmatprep.mubr.bf16.mxu0 0
    %3915 = vmatmul.mubr.bf16.gmra.mxu0 %v2620
    %v3916 = vpop.f32.mrf.mxu0
    %v3917 = vadd.f32 %v3580, %v3916
    %v3918 = vpop.f32.mrf.mxu0
    %v3919 = vpop.f32.mrf.mxu0
    %v3920 = vadd.f32 %v3583, %v3919
    %v3921 = vpop.f32.mrf.mxu0
    %3922 = vmatprep.mubr.bf16.mxu0 0
    %3923 = vmatmul.mubr.bf16.gmra.mxu0 %v2621
    %v3924 = vpop.f32.mrf.mxu0
    %v3925 = vadd.f32 %v3588, %v3924
    %v3926 = vpop.f32.mrf.mxu0
    %v3927 = vpop.f32.mrf.mxu0
    %v3928 = vadd.f32 %v3591, %v3927
    %v3929 = vpop.f32.mrf.mxu0
    %3930 = vmatprep.mubr.bf16.mxu0 0
    %3931 = vmatmul.mubr.bf16.gmra.mxu0 %v2622
    %v3932 = vpop.f32.mrf.mxu0
    %v3933 = vadd.f32 %v3596, %v3932
    %v3934 = vpop.f32.mrf.mxu0
    %v3935 = vpop.f32.mrf.mxu0
    %v3936 = vadd.f32 %v3599, %v3935
    %v3937 = vpop.f32.mrf.mxu0
    %3938 = vdwg.mxu0
    %v3939 = vld [vmem:[%s7] sm:$0x1]
    %v3941 = vlaneseq
    %v3942 = vshrl.u32 %v3941, 7
    %v3943 = vsub.s32 0, %v3942
    %v3944 = vrot.slane %v3939, %v3943
    %v3946 = vadd.f32 %v3685, %v3944
    %v3947 = vadd.f32 %v3688, %v3944
    %v3948 = vadd.f32 %v3693, %v3944
    %v3949 = vadd.f32 %v3696, %v3944
    %v3950 = vadd.f32 %v3701, %v3944
    %v3951 = vadd.f32 %v3704, %v3944
    %v3952 = vadd.f32 %v3709, %v3944
    %v3953 = vadd.f32 %v3712, %v3944
    %v3954 = vadd.f32 %v3717, %v3944
    %v3955 = vadd.f32 %v3720, %v3944
    %v3956 = vadd.f32 %v3725, %v3944
    %v3957 = vadd.f32 %v3728, %v3944
    %v3958 = vadd.f32 %v3733, %v3944
    %v3959 = vadd.f32 %v3736, %v3944
    %v3960 = vadd.f32 %v3741, %v3944
    %v3961 = vadd.f32 %v3744, %v3944
    %v3962 = vadd.f32 %v3749, %v3944
    %v3963 = vadd.f32 %v3752, %v3944
    %v3964 = vadd.f32 %v3757, %v3944
    %v3965 = vadd.f32 %v3760, %v3944
    %v3966 = vadd.f32 %v3765, %v3944
    %v3967 = vadd.f32 %v3768, %v3944
    %v3968 = vadd.f32 %v3773, %v3944
    %v3969 = vadd.f32 %v3776, %v3944
    %v3970 = vadd.f32 %v3781, %v3944
    %v3971 = vadd.f32 %v3784, %v3944
    %v3972 = vadd.f32 %v3789, %v3944
    %v3973 = vadd.f32 %v3792, %v3944
    %v3974 = vadd.f32 %v3797, %v3944
    %v3975 = vadd.f32 %v3800, %v3944
    %v3976 = vadd.f32 %v3805, %v3944
    %v3977 = vadd.f32 %v3808, %v3944
    %v3978 = vadd.f32 %v3813, %v3944
    %v3979 = vadd.f32 %v3816, %v3944
    %v3980 = vadd.f32 %v3821, %v3944
    %v3981 = vadd.f32 %v3824, %v3944
    %v3982 = vadd.f32 %v3829, %v3944
    %v3983 = vadd.f32 %v3832, %v3944
    %v3984 = vadd.f32 %v3837, %v3944
    %v3985 = vadd.f32 %v3840, %v3944
    %v3986 = vadd.f32 %v3845, %v3944
    %v3987 = vadd.f32 %v3848, %v3944
    %v3988 = vadd.f32 %v3853, %v3944
    %v3989 = vadd.f32 %v3856, %v3944
    %v3990 = vadd.f32 %v3861, %v3944
    %v3991 = vadd.f32 %v3864, %v3944
    %v3992 = vadd.f32 %v3869, %v3944
    %v3993 = vadd.f32 %v3872, %v3944
    %v3994 = vadd.f32 %v3877, %v3944
    %v3995 = vadd.f32 %v3880, %v3944
    %v3996 = vadd.f32 %v3885, %v3944
    %v3997 = vadd.f32 %v3888, %v3944
    %v3998 = vadd.f32 %v3893, %v3944
    %v3999 = vadd.f32 %v3896, %v3944
    %v4000 = vadd.f32 %v3901, %v3944
    %v4001 = vadd.f32 %v3904, %v3944
    %v4002 = vadd.f32 %v3909, %v3944
    %v4003 = vadd.f32 %v3912, %v3944
    %v4004 = vadd.f32 %v3917, %v3944
    %v4005 = vadd.f32 %v3920, %v3944
    %v4006 = vadd.f32 %v3925, %v3944
    %v4007 = vadd.f32 %v3928, %v3944
    %v4008 = vadd.f32 %v3933, %v3944
    %v4009 = vadd.f32 %v3936, %v3944
    %v4010 = vld [vmem:[%s8] sm:$0x1]
    %v4012 = vlaneseq
    %v4013 = vshrl.u32 %v4012, 7
    %v4014 = vsub.s32 0, %v4013
    %v4015 = vrot.slane %v4010, %v4014
    %v4017 = vadd.f32 %v3946, %v4015
    %v4018 = vadd.f32 %v3947, %v4015
    %v4019 = vadd.f32 %v3948, %v4015
    %v4020 = vadd.f32 %v3949, %v4015
    %v4021 = vadd.f32 %v3950, %v4015
    %v4022 = vadd.f32 %v3951, %v4015
    %v4023 = vadd.f32 %v3952, %v4015
    %v4024 = vadd.f32 %v3953, %v4015
    %v4025 = vadd.f32 %v3954, %v4015
    %v4026 = vadd.f32 %v3955, %v4015
    %v4027 = vadd.f32 %v3956, %v4015
    %v4028 = vadd.f32 %v3957, %v4015
    %v4029 = vadd.f32 %v3958, %v4015
    %v4030 = vadd.f32 %v3959, %v4015
    %v4031 = vadd.f32 %v3960, %v4015
    %v4032 = vadd.f32 %v3961, %v4015
    %v4033 = vadd.f32 %v3962, %v4015
    %v4034 = vadd.f32 %v3963, %v4015
    %v4035 = vadd.f32 %v3964, %v4015
    %v4036 = vadd.f32 %v3965, %v4015
    %v4037 = vadd.f32 %v3966, %v4015
    %v4038 = vadd.f32 %v3967, %v4015
    %v4039 = vadd.f32 %v3968, %v4015
    %v4040 = vadd.f32 %v3969, %v4015
    %v4041 = vadd.f32 %v3970, %v4015
    %v4042 = vadd.f32 %v3971, %v4015
    %v4043 = vadd.f32 %v3972, %v4015
    %v4044 = vadd.f32 %v3973, %v4015
    %v4045 = vadd.f32 %v3974, %v4015
    %v4046 = vadd.f32 %v3975, %v4015
    %v4047 = vadd.f32 %v3976, %v4015
    %v4048 = vadd.f32 %v3977, %v4015
    %v4049 = vadd.f32 %v3978, %v4015
    %v4050 = vadd.f32 %v3979, %v4015
    %v4051 = vadd.f32 %v3980, %v4015
    %v4052 = vadd.f32 %v3981, %v4015
    %v4053 = vadd.f32 %v3982, %v4015
    %v4054 = vadd.f32 %v3983, %v4015
    %v4055 = vadd.f32 %v3984, %v4015
    %v4056 = vadd.f32 %v3985, %v4015
    %v4057 = vadd.f32 %v3986, %v4015
    %v4058 = vadd.f32 %v3987, %v4015
    %v4059 = vadd.f32 %v3988, %v4015
    %v4060 = vadd.f32 %v3989, %v4015
    %v4061 = vadd.f32 %v3990, %v4015
    %v4062 = vadd.f32 %v3991, %v4015
    %v4063 = vadd.f32 %v3992, %v4015
    %v4064 = vadd.f32 %v3993, %v4015
    %v4065 = vadd.f32 %v3994, %v4015
    %v4066 = vadd.f32 %v3995, %v4015
    %v4067 = vadd.f32 %v3996, %v4015
    %v4068 = vadd.f32 %v3997, %v4015
    %v4069 = vadd.f32 %v3998, %v4015
    %v4070 = vadd.f32 %v3999, %v4015
    %v4071 = vadd.f32 %v4000, %v4015
    %v4072 = vadd.f32 %v4001, %v4015
    %v4073 = vadd.f32 %v4002, %v4015
    %v4074 = vadd.f32 %v4003, %v4015
    %v4075 = vadd.f32 %v4004, %v4015
    %v4076 = vadd.f32 %v4005, %v4015
    %v4077 = vadd.f32 %v4006, %v4015
    %v4078 = vadd.f32 %v4007, %v4015
    %v4079 = vadd.f32 %v4008, %v4015
    %v4080 = vadd.f32 %v4009, %v4015
    %4081 = vmax.xlane.f32.xlu0 %v4017
    %v4082 = vpop.xlane.xlu0 %4081
    %4083 = vmax.xlane.f32.xlu0 %v4018
    %v4084 = vpop.xlane.xlu0 %4083
    %4085 = vmax.xlane.f32.xlu0 %v4019
    %v4086 = vpop.xlane.xlu0 %4085
    %4087 = vmax.xlane.f32.xlu0 %v4020
    %v4088 = vpop.xlane.xlu0 %4087
    %4089 = vmax.xlane.f32.xlu0 %v4021
    %v4090 = vpop.xlane.xlu0 %4089
    %4091 = vmax.xlane.f32.xlu0 %v4022
    %v4092 = vpop.xlane.xlu0 %4091
    %4093 = vmax.xlane.f32.xlu0 %v4023
    %v4094 = vpop.xlane.xlu0 %4093
    %4095 = vmax.xlane.f32.xlu0 %v4024
    %v4096 = vpop.xlane.xlu0 %4095
    %4097 = vmax.xlane.f32.xlu0 %v4025
    %v4098 = vpop.xlane.xlu0 %4097
    %4099 = vmax.xlane.f32.xlu0 %v4026
    %v4100 = vpop.xlane.xlu0 %4099
    %4101 = vmax.xlane.f32.xlu0 %v4027
    %v4102 = vpop.xlane.xlu0 %4101
    %4103 = vmax.xlane.f32.xlu0 %v4028
    %v4104 = vpop.xlane.xlu0 %4103
    %4105 = vmax.xlane.f32.xlu0 %v4029
    %v4106 = vpop.xlane.xlu0 %4105
    %4107 = vmax.xlane.f32.xlu0 %v4030
    %v4108 = vpop.xlane.xlu0 %4107
    %4109 = vmax.xlane.f32.xlu0 %v4031
    %v4110 = vpop.xlane.xlu0 %4109
    %4111 = vmax.xlane.f32.xlu0 %v4032
    %v4112 = vpop.xlane.xlu0 %4111
    %4113 = vmax.xlane.f32.xlu0 %v4033
    %v4114 = vpop.xlane.xlu0 %4113
    %4115 = vmax.xlane.f32.xlu0 %v4034
    %v4116 = vpop.xlane.xlu0 %4115
    %4117 = vmax.xlane.f32.xlu0 %v4035
    %v4118 = vpop.xlane.xlu0 %4117
    %4119 = vmax.xlane.f32.xlu0 %v4036
    %v4120 = vpop.xlane.xlu0 %4119
    %4121 = vmax.xlane.f32.xlu0 %v4037
    %v4122 = vpop.xlane.xlu0 %4121
    %4123 = vmax.xlane.f32.xlu0 %v4038
    %v4124 = vpop.xlane.xlu0 %4123
    %4125 = vmax.xlane.f32.xlu0 %v4039
    %v4126 = vpop.xlane.xlu0 %4125
    %4127 = vmax.xlane.f32.xlu0 %v4040
    %v4128 = vpop.xlane.xlu0 %4127
    %4129 = vmax.xlane.f32.xlu0 %v4041
    %v4130 = vpop.xlane.xlu0 %4129
    %4131 = vmax.xlane.f32.xlu0 %v4042
    %v4132 = vpop.xlane.xlu0 %4131
    %4133 = vmax.xlane.f32.xlu0 %v4043
    %v4134 = vpop.xlane.xlu0 %4133
    %4135 = vmax.xlane.f32.xlu0 %v4044
    %v4136 = vpop.xlane.xlu0 %4135
    %4137 = vmax.xlane.f32.xlu0 %v4045
    %v4138 = vpop.xlane.xlu0 %4137
    %4139 = vmax.xlane.f32.xlu0 %v4046
    %v4140 = vpop.xlane.xlu0 %4139
    %4141 = vmax.xlane.f32.xlu0 %v4047
    %v4142 = vpop.xlane.xlu0 %4141
    %4143 = vmax.xlane.f32.xlu0 %v4048
    %v4144 = vpop.xlane.xlu0 %4143
    %4145 = vmax.xlane.f32.xlu0 %v4049
    %v4146 = vpop.xlane.xlu0 %4145
    %4147 = vmax.xlane.f32.xlu0 %v4050
    %v4148 = vpop.xlane.xlu0 %4147
    %4149 = vmax.xlane.f32.xlu0 %v4051
    %v4150 = vpop.xlane.xlu0 %4149
    %4151 = vmax.xlane.f32.xlu0 %v4052
    %v4152 = vpop.xlane.xlu0 %4151
    %4153 = vmax.xlane.f32.xlu0 %v4053
    %v4154 = vpop.xlane.xlu0 %4153
    %4155 = vmax.xlane.f32.xlu0 %v4054
    %v4156 = vpop.xlane.xlu0 %4155
    %4157 = vmax.xlane.f32.xlu0 %v4055
    %v4158 = vpop.xlane.xlu0 %4157
    %4159 = vmax.xlane.f32.xlu0 %v4056
    %v4160 = vpop.xlane.xlu0 %4159
    %4161 = vmax.xlane.f32.xlu0 %v4057
    %v4162 = vpop.xlane.xlu0 %4161
    %4163 = vmax.xlane.f32.xlu0 %v4058
    %v4164 = vpop.xlane.xlu0 %4163
    %4165 = vmax.xlane.f32.xlu0 %v4059
    %v4166 = vpop.xlane.xlu0 %4165
    %4167 = vmax.xlane.f32.xlu0 %v4060
    %v4168 = vpop.xlane.xlu0 %4167
    %4169 = vmax.xlane.f32.xlu0 %v4061
    %v4170 = vpop.xlane.xlu0 %4169
    %4171 = vmax.xlane.f32.xlu0 %v4062
    %v4172 = vpop.xlane.xlu0 %4171
    %4173 = vmax.xlane.f32.xlu0 %v4063
    %v4174 = vpop.xlane.xlu0 %4173
    %4175 = vmax.xlane.f32.xlu0 %v4064
    %v4176 = vpop.xlane.xlu0 %4175
    %4177 = vmax.xlane.f32.xlu0 %v4065
    %v4178 = vpop.xlane.xlu0 %4177
    %4179 = vmax.xlane.f32.xlu0 %v4066
    %v4180 = vpop.xlane.xlu0 %4179
    %4181 = vmax.xlane.f32.xlu0 %v4067
    %v4182 = vpop.xlane.xlu0 %4181
    %4183 = vmax.xlane.f32.xlu0 %v4068
    %v4184 = vpop.xlane.xlu0 %4183
    %4185 = vmax.xlane.f32.xlu0 %v4069
    %v4186 = vpop.xlane.xlu0 %4185
    %4187 = vmax.xlane.f32.xlu0 %v4070
    %v4188 = vpop.xlane.xlu0 %4187
    %4189 = vmax.xlane.f32.xlu0 %v4071
    %v4190 = vpop.xlane.xlu0 %4189
    %4191 = vmax.xlane.f32.xlu0 %v4072
    %v4192 = vpop.xlane.xlu0 %4191
    %4193 = vmax.xlane.f32.xlu0 %v4073
    %v4194 = vpop.xlane.xlu0 %4193
    %4195 = vmax.xlane.f32.xlu0 %v4074
    %v4196 = vpop.xlane.xlu0 %4195
    %4197 = vmax.xlane.f32.xlu0 %v4075
    %v4198 = vpop.xlane.xlu0 %4197
    %4199 = vmax.xlane.f32.xlu0 %v4076
    %v4200 = vpop.xlane.xlu0 %4199
    %4201 = vmax.xlane.f32.xlu0 %v4077
    %v4202 = vpop.xlane.xlu0 %4201
    %4203 = vmax.xlane.f32.xlu0 %v4078
    %v4204 = vpop.xlane.xlu0 %4203
    %4205 = vmax.xlane.f32.xlu0 %v4079
    %v4206 = vpop.xlane.xlu0 %4205
    %4207 = vmax.xlane.f32.xlu0 %v4080
    %v4208 = vpop.xlane.xlu0 %4207
    %v4209 = vsub.f32 %v4017, %v4082
    %v4210 = vsub.f32 %v4018, %v4084
    %v4211 = vsub.f32 %v4019, %v4086
    %v4212 = vsub.f32 %v4020, %v4088
    %v4213 = vsub.f32 %v4021, %v4090
    %v4214 = vsub.f32 %v4022, %v4092
    %v4215 = vsub.f32 %v4023, %v4094
    %v4216 = vsub.f32 %v4024, %v4096
    %v4217 = vsub.f32 %v4025, %v4098
    %v4218 = vsub.f32 %v4026, %v4100
    %v4219 = vsub.f32 %v4027, %v4102
    %v4220 = vsub.f32 %v4028, %v4104
    %v4221 = vsub.f32 %v4029, %v4106
    %v4222 = vsub.f32 %v4030, %v4108
    %v4223 = vsub.f32 %v4031, %v4110
    %v4224 = vsub.f32 %v4032, %v4112
    %v4225 = vsub.f32 %v4033, %v4114
    %v4226 = vsub.f32 %v4034, %v4116
    %v4227 = vsub.f32 %v4035, %v4118
    %v4228 = vsub.f32 %v4036, %v4120
    %v4229 = vsub.f32 %v4037, %v4122
    %v4230 = vsub.f32 %v4038, %v4124
    %v4231 = vsub.f32 %v4039, %v4126
    %v4232 = vsub.f32 %v4040, %v4128
    %v4233 = vsub.f32 %v4041, %v4130
    %v4234 = vsub.f32 %v4042, %v4132
    %v4235 = vsub.f32 %v4043, %v4134
    %v4236 = vsub.f32 %v4044, %v4136
    %v4237 = vsub.f32 %v4045, %v4138
    %v4238 = vsub.f32 %v4046, %v4140
    %v4239 = vsub.f32 %v4047, %v4142
    %v4240 = vsub.f32 %v4048, %v4144
    %v4241 = vsub.f32 %v4049, %v4146
    %v4242 = vsub.f32 %v4050, %v4148
    %v4243 = vsub.f32 %v4051, %v4150
    %v4244 = vsub.f32 %v4052, %v4152
    %v4245 = vsub.f32 %v4053, %v4154
    %v4246 = vsub.f32 %v4054, %v4156
    %v4247 = vsub.f32 %v4055, %v4158
    %v4248 = vsub.f32 %v4056, %v4160
    %v4249 = vsub.f32 %v4057, %v4162
    %v4250 = vsub.f32 %v4058, %v4164
    %v4251 = vsub.f32 %v4059, %v4166
    %v4252 = vsub.f32 %v4060, %v4168
    %v4253 = vsub.f32 %v4061, %v4170
    %v4254 = vsub.f32 %v4062, %v4172
    %v4255 = vsub.f32 %v4063, %v4174
    %v4256 = vsub.f32 %v4064, %v4176
    %v4257 = vsub.f32 %v4065, %v4178
    %v4258 = vsub.f32 %v4066, %v4180
    %v4259 = vsub.f32 %v4067, %v4182
    %v4260 = vsub.f32 %v4068, %v4184
    %v4261 = vsub.f32 %v4069, %v4186
    %v4262 = vsub.f32 %v4070, %v4188
    %v4263 = vsub.f32 %v4071, %v4190
    %v4264 = vsub.f32 %v4072, %v4192
    %v4265 = vsub.f32 %v4073, %v4194
    %v4266 = vsub.f32 %v4074, %v4196
    %v4267 = vsub.f32 %v4075, %v4198
    %v4268 = vsub.f32 %v4076, %v4200
    %v4269 = vsub.f32 %v4077, %v4202
    %v4270 = vsub.f32 %v4078, %v4204
    %v4271 = vsub.f32 %v4079, %v4206
    %v4272 = vsub.f32 %v4080, %v4208
    %v4273 = vmul.f32 %v4209, 1.442695
    %v4274 = vpow.pop %v4273
    %v4275 = vmul.f32 %v4210, 1.442695
    %v4276 = vpow.pop %v4275
    %v4277 = vmul.f32 %v4211, 1.442695
    %v4278 = vpow.pop %v4277
    %v4279 = vmul.f32 %v4212, 1.442695
    %v4280 = vpow.pop %v4279
    %v4281 = vmul.f32 %v4213, 1.442695
    %v4282 = vpow.pop %v4281
    %v4283 = vmul.f32 %v4214, 1.442695
    %v4284 = vpow.pop %v4283
    %v4285 = vmul.f32 %v4215, 1.442695
    %v4286 = vpow.pop %v4285
    %v4287 = vmul.f32 %v4216, 1.442695
    %v4288 = vpow.pop %v4287
    %v4289 = vmul.f32 %v4217, 1.442695
    %v4290 = vpow.pop %v4289
    %v4291 = vmul.f32 %v4218, 1.442695
    %v4292 = vpow.pop %v4291
    %v4293 = vmul.f32 %v4219, 1.442695
    %v4294 = vpow.pop %v4293
    %v4295 = vmul.f32 %v4220, 1.442695
    %v4296 = vpow.pop %v4295
    %v4297 = vmul.f32 %v4221, 1.442695
    %v4298 = vpow.pop %v4297
    %v4299 = vmul.f32 %v4222, 1.442695
    %v4300 = vpow.pop %v4299
    %v4301 = vmul.f32 %v4223, 1.442695
    %v4302 = vpow.pop %v4301
    %v4303 = vmul.f32 %v4224, 1.442695
    %v4304 = vpow.pop %v4303
    %v4305 = vmul.f32 %v4225, 1.442695
    %v4306 = vpow.pop %v4305
    %v4307 = vmul.f32 %v4226, 1.442695
    %v4308 = vpow.pop %v4307
    %v4309 = vmul.f32 %v4227, 1.442695
    %v4310 = vpow.pop %v4309
    %v4311 = vmul.f32 %v4228, 1.442695
    %v4312 = vpow.pop %v4311
    %v4313 = vmul.f32 %v4229, 1.442695
    %v4314 = vpow.pop %v4313
    %v4315 = vmul.f32 %v4230, 1.442695
    %v4316 = vpow.pop %v4315
    %v4317 = vmul.f32 %v4231, 1.442695
    %v4318 = vpow.pop %v4317
    %v4319 = vmul.f32 %v4232, 1.442695
    %v4320 = vpow.pop %v4319
    %v4321 = vmul.f32 %v4233, 1.442695
    %v4322 = vpow.pop %v4321
    %v4323 = vmul.f32 %v4234, 1.442695
    %v4324 = vpow.pop %v4323
    %v4325 = vmul.f32 %v4235, 1.442695
    %v4326 = vpow.pop %v4325
    %v4327 = vmul.f32 %v4236, 1.442695
    %v4328 = vpow.pop %v4327
    %v4329 = vmul.f32 %v4237, 1.442695
    %v4330 = vpow.pop %v4329
    %v4331 = vmul.f32 %v4238, 1.442695
    %v4332 = vpow.pop %v4331
    %v4333 = vmul.f32 %v4239, 1.442695
    %v4334 = vpow.pop %v4333
    %v4335 = vmul.f32 %v4240, 1.442695
    %v4336 = vpow.pop %v4335
    %v4337 = vmul.f32 %v4241, 1.442695
    %v4338 = vpow.pop %v4337
    %v4339 = vmul.f32 %v4242, 1.442695
    %v4340 = vpow.pop %v4339
    %v4341 = vmul.f32 %v4243, 1.442695
    %v4342 = vpow.pop %v4341
    %v4343 = vmul.f32 %v4244, 1.442695
    %v4344 = vpow.pop %v4343
    %v4345 = vmul.f32 %v4245, 1.442695
    %v4346 = vpow.pop %v4345
    %v4347 = vmul.f32 %v4246, 1.442695
    %v4348 = vpow.pop %v4347
    %v4349 = vmul.f32 %v4247, 1.442695
    %v4350 = vpow.pop %v4349
    %v4351 = vmul.f32 %v4248, 1.442695
    %v4352 = vpow.pop %v4351
    %v4353 = vmul.f32 %v4249, 1.442695
    %v4354 = vpow.pop %v4353
    %v4355 = vmul.f32 %v4250, 1.442695
    %v4356 = vpow.pop %v4355
    %v4357 = vmul.f32 %v4251, 1.442695
    %v4358 = vpow.pop %v4357
    %v4359 = vmul.f32 %v4252, 1.442695
    %v4360 = vpow.pop %v4359
    %v4361 = vmul.f32 %v4253, 1.442695
    %v4362 = vpow.pop %v4361
    %v4363 = vmul.f32 %v4254, 1.442695
    %v4364 = vpow.pop %v4363
    %v4365 = vmul.f32 %v4255, 1.442695
    %v4366 = vpow.pop %v4365
    %v4367 = vmul.f32 %v4256, 1.442695
    %v4368 = vpow.pop %v4367
    %v4369 = vmul.f32 %v4257, 1.442695
    %v4370 = vpow.pop %v4369
    %v4371 = vmul.f32 %v4258, 1.442695
    %v4372 = vpow.pop %v4371
    %v4373 = vmul.f32 %v4259, 1.442695
    %v4374 = vpow.pop %v4373
    %v4375 = vmul.f32 %v4260, 1.442695
    %v4376 = vpow.pop %v4375
    %v4377 = vmul.f32 %v4261, 1.442695
    %v4378 = vpow.pop %v4377
    %v4379 = vmul.f32 %v4262, 1.442695
    %v4380 = vpow.pop %v4379
    %v4381 = vmul.f32 %v4263, 1.442695
    %v4382 = vpow.pop %v4381
    %v4383 = vmul.f32 %v4264, 1.442695
    %v4384 = vpow.pop %v4383
    %v4385 = vmul.f32 %v4265, 1.442695
    %v4386 = vpow.pop %v4385
    %v4387 = vmul.f32 %v4266, 1.442695
    %v4388 = vpow.pop %v4387
    %v4389 = vmul.f32 %v4267, 1.442695
    %v4390 = vpow.pop %v4389
    %v4391 = vmul.f32 %v4268, 1.442695
    %v4392 = vpow.pop %v4391
    %v4393 = vmul.f32 %v4269, 1.442695
    %v4394 = vpow.pop %v4393
    %v4395 = vmul.f32 %v4270, 1.442695
    %v4396 = vpow.pop %v4395
    %v4397 = vmul.f32 %v4271, 1.442695
    %v4398 = vpow.pop %v4397
    %v4399 = vmul.f32 %v4272, 1.442695
    %v4400 = vpow.pop %v4399
    %4401 = vadd.xlane.f32.xlu0 %v4274
    %v4402 = vpop.xlane.xlu0 %4401
    %4403 = vadd.xlane.f32.xlu0 %v4276
    %v4404 = vpop.xlane.xlu0 %4403
    %4405 = vadd.xlane.f32.xlu0 %v4278
    %v4406 = vpop.xlane.xlu0 %4405
    %4407 = vadd.xlane.f32.xlu0 %v4280
    %v4408 = vpop.xlane.xlu0 %4407
    %4409 = vadd.xlane.f32.xlu0 %v4282
    %v4410 = vpop.xlane.xlu0 %4409
    %4411 = vadd.xlane.f32.xlu0 %v4284
    %v4412 = vpop.xlane.xlu0 %4411
    %4413 = vadd.xlane.f32.xlu0 %v4286
    %v4414 = vpop.xlane.xlu0 %4413
    %4415 = vadd.xlane.f32.xlu0 %v4288
    %v4416 = vpop.xlane.xlu0 %4415
    %4417 = vadd.xlane.f32.xlu0 %v4290
    %v4418 = vpop.xlane.xlu0 %4417
    %4419 = vadd.xlane.f32.xlu0 %v4292
    %v4420 = vpop.xlane.xlu0 %4419
    %4421 = vadd.xlane.f32.xlu0 %v4294
    %v4422 = vpop.xlane.xlu0 %4421
    %4423 = vadd.xlane.f32.xlu0 %v4296
    %v4424 = vpop.xlane.xlu0 %4423
    %4425 = vadd.xlane.f32.xlu0 %v4298
    %v4426 = vpop.xlane.xlu0 %4425
    %4427 = vadd.xlane.f32.xlu0 %v4300
    %v4428 = vpop.xlane.xlu0 %4427
    %4429 = vadd.xlane.f32.xlu0 %v4302
    %v4430 = vpop.xlane.xlu0 %4429
    %4431 = vadd.xlane.f32.xlu0 %v4304
    %v4432 = vpop.xlane.xlu0 %4431
    %4433 = vadd.xlane.f32.xlu0 %v4306
    %v4434 = vpop.xlane.xlu0 %4433
    %4435 = vadd.xlane.f32.xlu0 %v4308
    %v4436 = vpop.xlane.xlu0 %4435
    %4437 = vadd.xlane.f32.xlu0 %v4310
    %v4438 = vpop.xlane.xlu0 %4437
    %4439 = vadd.xlane.f32.xlu0 %v4312
    %v4440 = vpop.xlane.xlu0 %4439
    %4441 = vadd.xlane.f32.xlu0 %v4314
    %v4442 = vpop.xlane.xlu0 %4441
    %4443 = vadd.xlane.f32.xlu0 %v4316
    %v4444 = vpop.xlane.xlu0 %4443
    %4445 = vadd.xlane.f32.xlu0 %v4318
    %v4446 = vpop.xlane.xlu0 %4445
    %4447 = vadd.xlane.f32.xlu0 %v4320
    %v4448 = vpop.xlane.xlu0 %4447
    %4449 = vadd.xlane.f32.xlu0 %v4322
    %v4450 = vpop.xlane.xlu0 %4449
    %4451 = vadd.xlane.f32.xlu0 %v4324
    %v4452 = vpop.xlane.xlu0 %4451
    %4453 = vadd.xlane.f32.xlu0 %v4326
    %v4454 = vpop.xlane.xlu0 %4453
    %4455 = vadd.xlane.f32.xlu0 %v4328
    %v4456 = vpop.xlane.xlu0 %4455
    %4457 = vadd.xlane.f32.xlu0 %v4330
    %v4458 = vpop.xlane.xlu0 %4457
    %4459 = vadd.xlane.f32.xlu0 %v4332
    %v4460 = vpop.xlane.xlu0 %4459
    %4461 = vadd.xlane.f32.xlu0 %v4334
    %v4462 = vpop.xlane.xlu0 %4461
    %4463 = vadd.xlane.f32.xlu0 %v4336
    %v4464 = vpop.xlane.xlu0 %4463
    %4465 = vadd.xlane.f32.xlu0 %v4338
    %v4466 = vpop.xlane.xlu0 %4465
    %4467 = vadd.xlane.f32.xlu0 %v4340
    %v4468 = vpop.xlane.xlu0 %4467
    %4469 = vadd.xlane.f32.xlu0 %v4342
    %v4470 = vpop.xlane.xlu0 %4469
    %4471 = vadd.xlane.f32.xlu0 %v4344
    %v4472 = vpop.xlane.xlu0 %4471
    %4473 = vadd.xlane.f32.xlu0 %v4346
    %v4474 = vpop.xlane.xlu0 %4473
    %4475 = vadd.xlane.f32.xlu0 %v4348
    %v4476 = vpop.xlane.xlu0 %4475
    %4477 = vadd.xlane.f32.xlu0 %v4350
    %v4478 = vpop.xlane.xlu0 %4477
    %4479 = vadd.xlane.f32.xlu0 %v4352
    %v4480 = vpop.xlane.xlu0 %4479
    %4481 = vadd.xlane.f32.xlu0 %v4354
    %v4482 = vpop.xlane.xlu0 %4481
    %4483 = vadd.xlane.f32.xlu0 %v4356
    %v4484 = vpop.xlane.xlu0 %4483
    %4485 = vadd.xlane.f32.xlu0 %v4358
    %v4486 = vpop.xlane.xlu0 %4485
    %4487 = vadd.xlane.f32.xlu0 %v4360
    %v4488 = vpop.xlane.xlu0 %4487
    %4489 = vadd.xlane.f32.xlu0 %v4362
    %v4490 = vpop.xlane.xlu0 %4489
    %4491 = vadd.xlane.f32.xlu0 %v4364
    %v4492 = vpop.xlane.xlu0 %4491
    %4493 = vadd.xlane.f32.xlu0 %v4366
    %v4494 = vpop.xlane.xlu0 %4493
    %4495 = vadd.xlane.f32.xlu0 %v4368
    %v4496 = vpop.xlane.xlu0 %4495
    %4497 = vadd.xlane.f32.xlu0 %v4370
    %v4498 = vpop.xlane.xlu0 %4497
    %4499 = vadd.xlane.f32.xlu0 %v4372
    %v4500 = vpop.xlane.xlu0 %4499
    %4501 = vadd.xlane.f32.xlu0 %v4374
    %v4502 = vpop.xlane.xlu0 %4501
    %4503 = vadd.xlane.f32.xlu0 %v4376
    %v4504 = vpop.xlane.xlu0 %4503
    %4505 = vadd.xlane.f32.xlu0 %v4378
    %v4506 = vpop.xlane.xlu0 %4505
    %4507 = vadd.xlane.f32.xlu0 %v4380
    %v4508 = vpop.xlane.xlu0 %4507
    %4509 = vadd.xlane.f32.xlu0 %v4382
    %v4510 = vpop.xlane.xlu0 %4509
    %4511 = vadd.xlane.f32.xlu0 %v4384
    %v4512 = vpop.xlane.xlu0 %4511
    %4513 = vadd.xlane.f32.xlu0 %v4386
    %v4514 = vpop.xlane.xlu0 %4513
    %4515 = vadd.xlane.f32.xlu0 %v4388
    %v4516 = vpop.xlane.xlu0 %4515
    %4517 = vadd.xlane.f32.xlu0 %v4390
    %v4518 = vpop.xlane.xlu0 %4517
    %4519 = vadd.xlane.f32.xlu0 %v4392
    %v4520 = vpop.xlane.xlu0 %4519
    %4521 = vadd.xlane.f32.xlu0 %v4394
    %v4522 = vpop.xlane.xlu0 %4521
    %4523 = vadd.xlane.f32.xlu0 %v4396
    %v4524 = vpop.xlane.xlu0 %4523
    %4525 = vadd.xlane.f32.xlu0 %v4398
    %v4526 = vpop.xlane.xlu0 %4525
    %4527 = vadd.xlane.f32.xlu0 %v4400
    %v4528 = vpop.xlane.xlu0 %4527
    %v4529 = vlog2.pop %v4402
    %v4530 = vmul.f32 %v4529, 0.6931472
    %v4531 = vlog2.pop %v4404
    %v4532 = vmul.f32 %v4531, 0.6931472
    %v4533 = vlog2.pop %v4406
    %v4534 = vmul.f32 %v4533, 0.6931472
    %v4535 = vlog2.pop %v4408
    %v4536 = vmul.f32 %v4535, 0.6931472
    %v4537 = vlog2.pop %v4410
    %v4538 = vmul.f32 %v4537, 0.6931472
    %v4539 = vlog2.pop %v4412
    %v4540 = vmul.f32 %v4539, 0.6931472
    %v4541 = vlog2.pop %v4414
    %v4542 = vmul.f32 %v4541, 0.6931472
    %v4543 = vlog2.pop %v4416
    %v4544 = vmul.f32 %v4543, 0.6931472
    %v4545 = vlog2.pop %v4418
    %v4546 = vmul.f32 %v4545, 0.6931472
    %v4547 = vlog2.pop %v4420
    %v4548 = vmul.f32 %v4547, 0.6931472
    %v4549 = vlog2.pop %v4422
    %v4550 = vmul.f32 %v4549, 0.6931472
    %v4551 = vlog2.pop %v4424
    %v4552 = vmul.f32 %v4551, 0.6931472
    %v4553 = vlog2.pop %v4426
    %v4554 = vmul.f32 %v4553, 0.6931472
    %v4555 = vlog2.pop %v4428
    %v4556 = vmul.f32 %v4555, 0.6931472
    %v4557 = vlog2.pop %v4430
    %v4558 = vmul.f32 %v4557, 0.6931472
    %v4559 = vlog2.pop %v4432
    %v4560 = vmul.f32 %v4559, 0.6931472
    %v4561 = vlog2.pop %v4434
    %v4562 = vmul.f32 %v4561, 0.6931472
    %v4563 = vlog2.pop %v4436
    %v4564 = vmul.f32 %v4563, 0.6931472
    %v4565 = vlog2.pop %v4438
    %v4566 = vmul.f32 %v4565, 0.6931472
    %v4567 = vlog2.pop %v4440
    %v4568 = vmul.f32 %v4567, 0.6931472
    %v4569 = vlog2.pop %v4442
    %v4570 = vmul.f32 %v4569, 0.6931472
    %v4571 = vlog2.pop %v4444
    %v4572 = vmul.f32 %v4571, 0.6931472
    %v4573 = vlog2.pop %v4446
    %v4574 = vmul.f32 %v4573, 0.6931472
    %v4575 = vlog2.pop %v4448
    %v4576 = vmul.f32 %v4575, 0.6931472
    %v4577 = vlog2.pop %v4450
    %v4578 = vmul.f32 %v4577, 0.6931472
    %v4579 = vlog2.pop %v4452
    %v4580 = vmul.f32 %v4579, 0.6931472
    %v4581 = vlog2.pop %v4454
    %v4582 = vmul.f32 %v4581, 0.6931472
    %v4583 = vlog2.pop %v4456
    %v4584 = vmul.f32 %v4583, 0.6931472
    %v4585 = vlog2.pop %v4458
    %v4586 = vmul.f32 %v4585, 0.6931472
    %v4587 = vlog2.pop %v4460
    %v4588 = vmul.f32 %v4587, 0.6931472
    %v4589 = vlog2.pop %v4462
    %v4590 = vmul.f32 %v4589, 0.6931472
    %v4591 = vlog2.pop %v4464
    %v4592 = vmul.f32 %v4591, 0.6931472
    %v4593 = vlog2.pop %v4466
    %v4594 = vmul.f32 %v4593, 0.6931472
    %v4595 = vlog2.pop %v4468
    %v4596 = vmul.f32 %v4595, 0.6931472
    %v4597 = vlog2.pop %v4470
    %v4598 = vmul.f32 %v4597, 0.6931472
    %v4599 = vlog2.pop %v4472
    %v4600 = vmul.f32 %v4599, 0.6931472
    %v4601 = vlog2.pop %v4474
    %v4602 = vmul.f32 %v4601, 0.6931472
    %v4603 = vlog2.pop %v4476
    %v4604 = vmul.f32 %v4603, 0.6931472
    %v4605 = vlog2.pop %v4478
    %v4606 = vmul.f32 %v4605, 0.6931472
    %v4607 = vlog2.pop %v4480
    %v4608 = vmul.f32 %v4607, 0.6931472
    %v4609 = vlog2.pop %v4482
    %v4610 = vmul.f32 %v4609, 0.6931472
    %v4611 = vlog2.pop %v4484
    %v4612 = vmul.f32 %v4611, 0.6931472
    %v4613 = vlog2.pop %v4486
    %v4614 = vmul.f32 %v4613, 0.6931472
    %v4615 = vlog2.pop %v4488
    %v4616 = vmul.f32 %v4615, 0.6931472
    %v4617 = vlog2.pop %v4490
    %v4618 = vmul.f32 %v4617, 0.6931472
    %v4619 = vlog2.pop %v4492
    %v4620 = vmul.f32 %v4619, 0.6931472
    %v4621 = vlog2.pop %v4494
    %v4622 = vmul.f32 %v4621, 0.6931472
    %v4623 = vlog2.pop %v4496
    %v4624 = vmul.f32 %v4623, 0.6931472
    %v4625 = vlog2.pop %v4498
    %v4626 = vmul.f32 %v4625, 0.6931472
    %v4627 = vlog2.pop %v4500
    %v4628 = vmul.f32 %v4627, 0.6931472
    %v4629 = vlog2.pop %v4502
    %v4630 = vmul.f32 %v4629, 0.6931472
    %v4631 = vlog2.pop %v4504
    %v4632 = vmul.f32 %v4631, 0.6931472
    %v4633 = vlog2.pop %v4506
    %v4634 = vmul.f32 %v4633, 0.6931472
    %v4635 = vlog2.pop %v4508
    %v4636 = vmul.f32 %v4635, 0.6931472
    %v4637 = vlog2.pop %v4510
    %v4638 = vmul.f32 %v4637, 0.6931472
    %v4639 = vlog2.pop %v4512
    %v4640 = vmul.f32 %v4639, 0.6931472
    %v4641 = vlog2.pop %v4514
    %v4642 = vmul.f32 %v4641, 0.6931472
    %v4643 = vlog2.pop %v4516
    %v4644 = vmul.f32 %v4643, 0.6931472
    %v4645 = vlog2.pop %v4518
    %v4646 = vmul.f32 %v4645, 0.6931472
    %v4647 = vlog2.pop %v4520
    %v4648 = vmul.f32 %v4647, 0.6931472
    %v4649 = vlog2.pop %v4522
    %v4650 = vmul.f32 %v4649, 0.6931472
    %v4651 = vlog2.pop %v4524
    %v4652 = vmul.f32 %v4651, 0.6931472
    %v4653 = vlog2.pop %v4526
    %v4654 = vmul.f32 %v4653, 0.6931472
    %v4655 = vlog2.pop %v4528
    %v4656 = vmul.f32 %v4655, 0.6931472
    %v4657 = vsub.f32 %v4209, %v4530
    %v4658 = vsub.f32 %v4210, %v4532
    %v4659 = vsub.f32 %v4211, %v4534
    %v4660 = vsub.f32 %v4212, %v4536
    %v4661 = vsub.f32 %v4213, %v4538
    %v4662 = vsub.f32 %v4214, %v4540
    %v4663 = vsub.f32 %v4215, %v4542
    %v4664 = vsub.f32 %v4216, %v4544
    %v4665 = vsub.f32 %v4217, %v4546
    %v4666 = vsub.f32 %v4218, %v4548
    %v4667 = vsub.f32 %v4219, %v4550
    %v4668 = vsub.f32 %v4220, %v4552
    %v4669 = vsub.f32 %v4221, %v4554
    %v4670 = vsub.f32 %v4222, %v4556
    %v4671 = vsub.f32 %v4223, %v4558
    %v4672 = vsub.f32 %v4224, %v4560
    %v4673 = vsub.f32 %v4225, %v4562
    %v4674 = vsub.f32 %v4226, %v4564
    %v4675 = vsub.f32 %v4227, %v4566
    %v4676 = vsub.f32 %v4228, %v4568
    %v4677 = vsub.f32 %v4229, %v4570
    %v4678 = vsub.f32 %v4230, %v4572
    %v4679 = vsub.f32 %v4231, %v4574
    %v4680 = vsub.f32 %v4232, %v4576
    %v4681 = vsub.f32 %v4233, %v4578
    %v4682 = vsub.f32 %v4234, %v4580
    %v4683 = vsub.f32 %v4235, %v4582
    %v4684 = vsub.f32 %v4236, %v4584
    %v4685 = vsub.f32 %v4237, %v4586
    %v4686 = vsub.f32 %v4238, %v4588
    %v4687 = vsub.f32 %v4239, %v4590
    %v4688 = vsub.f32 %v4240, %v4592
    %v4689 = vsub.f32 %v4241, %v4594
    %v4690 = vsub.f32 %v4242, %v4596
    %v4691 = vsub.f32 %v4243, %v4598
    %v4692 = vsub.f32 %v4244, %v4600
    %v4693 = vsub.f32 %v4245, %v4602
    %v4694 = vsub.f32 %v4246, %v4604
    %v4695 = vsub.f32 %v4247, %v4606
    %v4696 = vsub.f32 %v4248, %v4608
    %v4697 = vsub.f32 %v4249, %v4610
    %v4698 = vsub.f32 %v4250, %v4612
    %v4699 = vsub.f32 %v4251, %v4614
    %v4700 = vsub.f32 %v4252, %v4616
    %v4701 = vsub.f32 %v4253, %v4618
    %v4702 = vsub.f32 %v4254, %v4620
    %v4703 = vsub.f32 %v4255, %v4622
    %v4704 = vsub.f32 %v4256, %v4624
    %v4705 = vsub.f32 %v4257, %v4626
    %v4706 = vsub.f32 %v4258, %v4628
    %v4707 = vsub.f32 %v4259, %v4630
    %v4708 = vsub.f32 %v4260, %v4632
    %v4709 = vsub.f32 %v4261, %v4634
    %v4710 = vsub.f32 %v4262, %v4636
    %v4711 = vsub.f32 %v4263, %v4638
    %v4712 = vsub.f32 %v4264, %v4640
    %v4713 = vsub.f32 %v4265, %v4642
    %v4714 = vsub.f32 %v4266, %v4644
    %v4715 = vsub.f32 %v4267, %v4646
    %v4716 = vsub.f32 %v4268, %v4648
    %v4717 = vsub.f32 %v4269, %v4650
    %v4718 = vsub.f32 %v4270, %v4652
    %v4719 = vsub.f32 %v4271, %v4654
    %v4720 = vsub.f32 %v4272, %v4656
    %4721 = vst [vmem:[#allocation13] sm:$0xff] %v4657
    %4722 = vst [vmem:[#allocation13 + $0x8] sm:$0xff] %v4658
    %4723 = vst [vmem:[#allocation13 + $0x10] sm:$0xff] %v4659
    %4724 = vst [vmem:[#allocation13 + $0x18] sm:$0xff] %v4660
    %4725 = vst [vmem:[#allocation13 + $0x20] sm:$0xff] %v4661
    %4726 = vst [vmem:[#allocation13 + $0x28] sm:$0xff] %v4662
    %4727 = vst [vmem:[#allocation13 + $0x30] sm:$0xff] %v4663
    %4728 = vst [vmem:[#allocation13 + $0x38] sm:$0xff] %v4664
    %4729 = vst [vmem:[#allocation13 + $0x40] sm:$0xff] %v4665
    %4730 = vst [vmem:[#allocation13 + $0x48] sm:$0xff] %v4666
    %4731 = vst [vmem:[#allocation13 + $0x50] sm:$0xff] %v4667
    %4732 = vst [vmem:[#allocation13 + $0x58] sm:$0xff] %v4668
    %4733 = vst [vmem:[#allocation13 + $0x60] sm:$0xff] %v4669
    %4734 = vst [vmem:[#allocation13 + $0x68] sm:$0xff] %v4670
    %4735 = vst [vmem:[#allocation13 + $0x70] sm:$0xff] %v4671
    %4736 = vst [vmem:[#allocation13 + $0x78] sm:$0xff] %v4672
    %4737 = vst [vmem:[#allocation13 + $0x80] sm:$0xff] %v4673
    %4738 = vst [vmem:[#allocation13 + $0x88] sm:$0xff] %v4674
    %4739 = vst [vmem:[#allocation13 + $0x90] sm:$0xff] %v4675
    %4740 = vst [vmem:[#allocation13 + $0x98] sm:$0xff] %v4676
    %4741 = vst [vmem:[#allocation13 + $0xa0] sm:$0xff] %v4677
    %4742 = vst [vmem:[#allocation13 + $0xa8] sm:$0xff] %v4678
    %4743 = vst [vmem:[#allocation13 + $0xb0] sm:$0xff] %v4679
    %4744 = vst [vmem:[#allocation13 + $0xb8] sm:$0xff] %v4680
    %4745 = vst [vmem:[#allocation13 + $0xc0] sm:$0xff] %v4681
    %4746 = vst [vmem:[#allocation13 + $0xc8] sm:$0xff] %v4682
    %4747 = vst [vmem:[#allocation13 + $0xd0] sm:$0xff] %v4683
    %4748 = vst [vmem:[#allocation13 + $0xd8] sm:$0xff] %v4684
    %4749 = vst [vmem:[#allocation13 + $0xe0] sm:$0xff] %v4685
    %4750 = vst [vmem:[#allocation13 + $0xe8] sm:$0xff] %v4686
    %4751 = vst [vmem:[#allocation13 + $0xf0] sm:$0xff] %v4687
    %4752 = vst [vmem:[#allocation13 + $0xf8] sm:$0xff] %v4688
    %4753 = vst [vmem:[#allocation13 + $0x100] sm:$0xff] %v4689
    %4754 = vst [vmem:[#allocation13 + $0x108] sm:$0xff] %v4690
    %4755 = vst [vmem:[#allocation13 + $0x110] sm:$0xff] %v4691
    %4756 = vst [vmem:[#allocation13 + $0x118] sm:$0xff] %v4692
    %4757 = vst [vmem:[#allocation13 + $0x120] sm:$0xff] %v4693
    %4758 = vst [vmem:[#allocation13 + $0x128] sm:$0xff] %v4694
    %4759 = vst [vmem:[#allocation13 + $0x130] sm:$0xff] %v4695
    %4760 = vst [vmem:[#allocation13 + $0x138] sm:$0xff] %v4696
    %4761 = vst [vmem:[#allocation13 + $0x140] sm:$0xff] %v4697
    %4762 = vst [vmem:[#allocation13 + $0x148] sm:$0xff] %v4698
    %4763 = vst [vmem:[#allocation13 + $0x150] sm:$0xff] %v4699
    %4764 = vst [vmem:[#allocation13 + $0x158] sm:$0xff] %v4700
    %4765 = vst [vmem:[#allocation13 + $0x160] sm:$0xff] %v4701
    %4766 = vst [vmem:[#allocation13 + $0x168] sm:$0xff] %v4702
    %4767 = vst [vmem:[#allocation13 + $0x170] sm:$0xff] %v4703
    %4768 = vst [vmem:[#allocation13 + $0x178] sm:$0xff] %v4704
    %4769 = vst [vmem:[#allocation13 + $0x180] sm:$0xff] %v4705
    %4770 = vst [vmem:[#allocation13 + $0x188] sm:$0xff] %v4706
    %4771 = vst [vmem:[#allocation13 + $0x190] sm:$0xff] %v4707
    %4772 = vst [vmem:[#allocation13 + $0x198] sm:$0xff] %v4708
    %4773 = vst [vmem:[#allocation13 + $0x1a0] sm:$0xff] %v4709
    %4774 = vst [vmem:[#allocation13 + $0x1a8] sm:$0xff] %v4710
    %4775 = vst [vmem:[#allocation13 + $0x1b0] sm:$0xff] %v4711
    %4776 = vst [vmem:[#allocation13 + $0x1b8] sm:$0xff] %v4712
    %4777 = vst [vmem:[#allocation13 + $0x1c0] sm:$0xff] %v4713
    %4778 = vst [vmem:[#allocation13 + $0x1c8] sm:$0xff] %v4714
    %4779 = vst [vmem:[#allocation13 + $0x1d0] sm:$0xff] %v4715
    %4780 = vst [vmem:[#allocation13 + $0x1d8] sm:$0xff] %v4716
    %4781 = vst [vmem:[#allocation13 + $0x1e0] sm:$0xff] %v4717
    %4782 = vst [vmem:[#allocation13 + $0x1e8] sm:$0xff] %v4718
    %4783 = vst [vmem:[#allocation13 + $0x1f0] sm:$0xff] %v4719
    %4784 = vst [vmem:[#allocation13 + $0x1f8] sm:$0xff] %v4720
    // Predicated region
    $region62: #{tpu_custom_call.1} parent=1 // pred_check
      _
    $region63: #{tpu_custom_call.1} parent=1 // pred_check_branch
      %4786 = sbr.rel (0) target = $region65
    $region64: #{tpu_custom_call.1} parent=1 // pred_region
      %s4788 = ssub.s32 8192, 8192
      %4789 = vsyncadd [#allocation4], %s4788
      %s4790 = sshll.u32 [#allocation13], 4
      %s4791 = int_to_ptr.vmem [resolvable:$true] %s4790
      %4796 = dma.vmem_to_hbm [thread:$0]  %s4791, 8192, %s9, [#allocation4], 128, 128, 8
    $region65: #{tpu_custom_call.1} parent=1 // pred_fallthru
      _
    // Predicated region
    $region66: #{tpu_custom_call.1} parent=1 // pred_check
      _
    $region67: #{tpu_custom_call.1} parent=1 // pred_check_branch
      %4798 = sbr.rel (0) target = $region69
    $region68: #{tpu_custom_call.1} parent=1 // pred_region
      %4799 = dma.done [#allocation4], 8192
    $region69: #{tpu_custom_call.1} parent=1 // pred_fallthru
      _
    %4800 = vsyncpa [#allocation3], 1
    %4801 = vsyncpa [#allocation6], 1
    %4802 = vsyncpa [#allocation9], 1
    %4803 = vsyncpa [#allocation12], 1
    %4804 = vsyncpa [#allocation4], 1

</llo_original>
